<compile_context>
chip_gen: v7x
topology: tpu7x:2x2x1
jax: 0.10.0
libtpu: 0.0.40
codegen_flags: <defaults>
</compile_context>

<pallas_src>
from functools import partial

import jax
import jax.numpy as jnp
import numpy as np
from jax.experimental import pallas as pl
from jax.experimental.pallas import tpu as pltpu


def _layernorm(t, gamma, beta, eps=1e-5):
    t = t.astype(jnp.float32)
    mean = jnp.mean(t, axis=-1, keepdims=True)
    var = jnp.mean((t - mean) ** 2, axis=-1, keepdims=True)
    return (t - mean) * jax.lax.rsqrt(var + eps) * gamma + beta


def perceiver_attn_kernel(x_ref, lat_ref,
                          gm_ref, bm_ref, gl_ref, bl_ref,
                          wq_ref, wk_ref, wv_ref, wo_ref,
                          out_ref, *, heads, dim_head):
    """One block of TB flattened (b, t) slices of PerceiverAttention.

    x_ref  : (TB, Nx, D)   media tokens (native dtype)
    lat_ref: (TB, Nl, D)   latent tokens
    gm/bm  : (1, D)        LayerNorm(media) gamma/beta (f32)
    gl/bl  : (1, D)        LayerNorm(latents) gamma/beta (f32)
    wq_ref : (D, H*Dh)     fused query projection (1/sqrt(Dh) pre-folded)
    wk_ref : (D, H*Dh)     fused key projection
    wv_ref : (D, H*Dh)     fused value projection
    wo_ref : (H*Dh, D)     output projection
    out_ref: (TB, Nl, D)
    """
    TB, Nx, D = x_ref.shape
    Nl = lat_ref.shape[1]
    Nkv = Nx + Nl
    H, Dh = heads, dim_head
    inner = H * Dh
    cdt = x_ref.dtype                         # matmul operand dtype (bf16 demo)

    gm = gm_ref[0].astype(jnp.float32)
    bm = bm_ref[0].astype(jnp.float32)
    gl = gl_ref[0].astype(jnp.float32)
    bl = bl_ref[0].astype(jnp.float32)

    # LayerNorms in f32; cast once to the compute dtype.
    xn = _layernorm(x_ref[...], gm, bm).astype(cdt)        # (TB, Nx, D)
    latn = _layernorm(lat_ref[...], gl, bl).astype(cdt)    # (TB, Nl, D)

    # K/V input = concat(media, latents) along the sequence axis, held in
    # registers (no VMEM scratch store/reload).
    kv = jnp.concatenate([xn, latn], axis=1)               # (TB, Nkv, D)

    lat2 = latn.reshape(TB * Nl, D)                        # (TB*Nl,  D)
    kv2 = kv.reshape(TB * Nkv, D)                          # (TB*Nkv, D)

    # Head-fused projections (f32 accumulation on the MXU).
    q = jnp.dot(lat2, wq_ref[...], preferred_element_type=jnp.float32).astype(cdt)
    k = jnp.dot(kv2, wk_ref[...], preferred_element_type=jnp.float32).astype(cdt)
    v = jnp.dot(kv2, wv_ref[...], preferred_element_type=jnp.float32).astype(cdt)

    # One up-front relayout to (TB*H, N, Dh); every head runs inside one
    # batched score / softmax / PV sequence.
    def to_heads(t, n):
        t = t.reshape(TB, n, H, Dh)
        return jnp.transpose(t, (0, 2, 1, 3)).reshape(TB * H, n, Dh)

    qh = to_heads(q, Nl)                                   # (TB*H, Nl,  Dh)
    kh = to_heads(k, Nkv)                                  # (TB*H, Nkv, Dh)
    vh = to_heads(v, Nkv)                                  # (TB*H, Nkv, Dh)

    s = jnp.einsum("bnd,bmd->bnm", qh, kh,
                   preferred_element_type=jnp.float32)     # (TB*H, Nl, Nkv)
    s = s - jnp.max(s, axis=-1, keepdims=True)
    p = jnp.exp(s)
    inv = pl.reciprocal(jnp.sum(p, axis=-1, keepdims=True), approx=True)

    if Nkv > Dh:
        # Normalize the smaller (Nl, Dh) tensor after the PV matmul.
        o = jnp.einsum("bnm,bmd->bnd", p.astype(cdt), vh,
                       preferred_element_type=jnp.float32)
        o = o * inv
    else:
        o = jnp.einsum("bnm,bmd->bnd", (p * inv).astype(cdt), vh,
                       preferred_element_type=jnp.float32)

    # Deferred output projection: merge heads back to (TB*Nl, inner), then a
    # single full-depth K=inner matmul with Wo.
    o = jnp.transpose(o.reshape(TB, H, Nl, Dh), (0, 2, 1, 3))
    o = o.astype(cdt).reshape(TB * Nl, inner)
    out = jnp.dot(o, wo_ref[...], preferred_element_type=jnp.float32)
    out_ref[...] = out.reshape(TB, Nl, D).astype(out_ref.dtype)


def perceiver_attention(x, latents, params, *, heads, dim_head, block_bt=None):
    B, T, Nx, D = x.shape
    Nl = latents.shape[2]
    Nkv = Nx + Nl
    BT = B * T
    inner = heads * dim_head
    cdt = x.dtype
    scale = dim_head ** -0.5

    def nb(shape, dt):
        return int(np.prod(shape)) * np.dtype(dt).itemsize

    # Generation-aware VMEM budget (leave ~24 MiB headroom below capacity).
    try:
        info = pltpu.get_tpu_info()
        vmem_cap = int(getattr(info, "vmem_capacity_bytes", 64 << 20))
    except Exception:  # pragma: no cover - conservative fallback
        vmem_cap = 64 << 20
    vmem_budget = max(32 << 20, min(vmem_cap - (24 << 20), 100 << 20))

    def vmem_est(tb):
        io = 2 * (nb((tb, Nx, D), cdt) + 2 * nb((tb, Nl, D), cdt))          # dbl-buffered blocks
        wts = 2 * (3 * nb((D, inner), cdt) + nb((inner, D), cdt)
                   + 4 * nb((1, D), jnp.float32))                           # resident weights
        work = (nb((tb, Nx, D), jnp.float32) + nb((tb, Nl, D), jnp.float32) # LN intermediates
                + nb((tb, Nkv, D), cdt)                                     # kv concat
                + nb((tb * (Nl + 2 * Nkv), inner), cdt)                     # q, k, v
                + 2 * nb((tb * heads, Nl, Nkv), jnp.float32)                # scores / probs
                + nb((tb * Nl, inner), jnp.float32)                         # head outputs
                + nb((tb * Nl, D), jnp.float32))                            # out accumulator
        return io + wts + 2 * work                                          # 2x relayout headroom

    if block_bt is None:
        # Want tb*Nl >= 256 projection rows when the batch allows, but keep
        # at least 2 grid steps (pipeline overlap / v7x two TensorCores) and
        # stay inside the VMEM budget.
        want = min(BT, max(1, -(-256 // Nl)))
        while want > 1 and vmem_est(want) > vmem_budget:
            want -= 1
        if BT // want < 2 and BT >= 2:
            want = max(1, BT // 2)
        tb = 1
        for c in range(1, want + 1):
            if BT % c == 0:
                tb = c
    else:
        tb = block_bt
    assert BT % tb == 0, "block size must divide B*T"
    steps = BT // tb

    xf = x.reshape(BT, Nx, D)
    lf = latents.reshape(BT, Nl, D)

    gm = params["ln_media_g"].astype(jnp.float32).reshape(1, D)
    bm = params["ln_media_b"].astype(jnp.float32).reshape(1, D)
    gl = params["ln_lat_g"].astype(jnp.float32).reshape(1, D)
    bl = params["ln_lat_b"].astype(jnp.float32).reshape(1, D)

    # Head-fused weights; fold the 1/sqrt(dim_head) query scale into wq.
    wq = (params["wq"].astype(jnp.float32) * scale).astype(cdt)   # (D, inner)
    wk = params["wk"].astype(cdt)                                 # (D, inner)
    wv = params["wv"].astype(cdt)                                 # (D, inner)
    wo = params["wo"].astype(cdt)                                 # (inner, D)

    full = lambda shape: pl.BlockSpec(shape, lambda i: (0,) * len(shape))

    flops_per_step = (2 * tb * Nl * D * inner                      # Q proj
                      + 2 * 2 * tb * Nkv * D * inner               # K, V proj
                      + 2 * 2 * tb * heads * Nl * Nkv * dim_head   # scores + PV
                      + 2 * tb * Nl * inner * D)                   # out proj
    bytes_per_step = (nb((tb, Nx, D), cdt) + 2 * nb((tb, Nl, D), cdt)
                      + nb((tb, Nl, D), x.dtype)
                      + 3 * nb((D, inner), cdt) + nb((inner, D), cdt)
                      + 4 * nb((1, D), jnp.float32))
    cost = pl.CostEstimate(
        flops=int(steps * flops_per_step),
        transcendentals=int(steps * tb * heads * Nl * Nkv),
        bytes_accessed=int(steps * bytes_per_step))

    vmem_limit = int(min(max(2 * vmem_est(tb), 32 << 20), vmem_budget))

    out = pl.pallas_call(
        partial(perceiver_attn_kernel, heads=heads, dim_head=dim_head),
        out_shape=jax.ShapeDtypeStruct((BT, Nl, D), x.dtype),
        grid=(steps,),
        in_specs=[
            pl.BlockSpec((tb, Nx, D), lambda i: (i, 0, 0)),
            pl.BlockSpec((tb, Nl, D), lambda i: (i, 0, 0)),
            full((1, D)), full((1, D)), full((1, D)), full((1, D)),
            full((D, inner)), full((D, inner)), full((D, inner)),
            full((inner, D)),
        ],
        out_specs=pl.BlockSpec((tb, Nl, D), lambda i: (i, 0, 0)),
        compiler_params=pltpu.CompilerParams(
            dimension_semantics=("parallel",),
            vmem_limit_bytes=vmem_limit),
        cost_estimate=cost,
    )(xf, lf, gm, bm, gl, bl, wq, wk, wv, wo)

    return out.reshape(B, T, Nl, D)


def ref_forward(x, latents, params, *, heads, dim_head):
    """Pure-JAX f32 reference matching the PyTorch forward exactly."""
    f32 = jnp.float32
    x = x.astype(f32)
    latents = latents.astype(f32)
    xn = _layernorm(x, params["ln_media_g"].astype(f32), params["ln_media_b"].astype(f32))
    latn = _layernorm(latents, params["ln_lat_g"].astype(f32), params["ln_lat_b"].astype(f32))

    q = latn @ params["wq"].astype(f32)                       # (B,T,Nl,H*Dh)
    kv_in = jnp.concatenate([xn, latn], axis=-2)
    k = kv_in @ params["wk"].astype(f32)
    v = kv_in @ params["wv"].astype(f32)

    def split_heads(t):
        Bt, Tt, N, _ = t.shape
        return t.reshape(Bt, Tt, N, heads, dim_head).transpose(0, 3, 1, 2, 4)

    q, k, v = map(split_heads, (q, k, v))
    q = q * dim_head ** -0.5
    sim = jnp.einsum("bhtid,bhtjd->bhtij", q, k)
    sim = sim - jnp.max(sim, axis=-1, keepdims=True)
    attn = jax.nn.softmax(sim, axis=-1)
    out = jnp.einsum("bhtij,bhtjd->bhtid", attn, v)
    Bo, H, To, Nl, Dh = out.shape
    out = out.transpose(0, 2, 3, 1, 4).reshape(Bo, To, Nl, H * Dh)
    return out @ params["wo"].astype(f32)


if __name__ == "__main__":
    # Small shapes consistent with the module; dim chosen lane-dense (128).
    B, T, Nx, Nl = 2, 2, 16, 16
    dim, dim_head, heads = 128, 32, 4
    inner = dim_head * heads

    key = jax.random.PRNGKey(0)
    ks = jax.random.split(key, 6)
    # Activations / weights in bf16 (native model dtype, no wrapper upcast).
    x = jax.random.normal(ks[0], (B, T, Nx, dim), jnp.float32).astype(jnp.bfloat16)
    latents = jax.random.normal(ks[1], (B, T, Nl, dim), jnp.float32).astype(jnp.bfloat16)

    wscale = dim ** -0.5
    params = {
        # LayerNorm defaults (gamma=1, beta=0) as in nn.LayerNorm.__init__
        "ln_media_g": jnp.ones((dim,), jnp.float32),
        "ln_media_b": jnp.zeros((dim,), jnp.float32),
        "ln_lat_g": jnp.ones((dim,), jnp.float32),
        "ln_lat_b": jnp.zeros((dim,), jnp.float32),
        # Linear weights stored (in, out) so y = x @ W (torch: x @ W.T).
        "wq": (jax.random.normal(ks[2], (dim, inner), jnp.float32) * wscale).astype(jnp.bfloat16),
        "wk": (jax.random.normal(ks[3], (dim, inner), jnp.float32) * wscale).astype(jnp.bfloat16),
        "wv": (jax.random.normal(ks[4], (dim, inner), jnp.float32) * wscale).astype(jnp.bfloat16),
        "wo": (jax.random.normal(ks[5], (inner, dim), jnp.float32) * (inner ** -0.5)).astype(jnp.bfloat16),
    }

    out = perceiver_attention(x, latents, params, heads=heads, dim_head=dim_head)
    out = jax.block_until_ready(out)

    ref = ref_forward(x, latents, params, heads=heads, dim_head=dim_head)

    out_f = np.asarray(out, dtype=np.float32)
    ref_f = np.asarray(ref, dtype=np.float32)
    # bf16 operands with f32 accumulation (+ approx softmax reciprocal):
    # few-percent elementwise tolerance, plus a tighter relative-Frobenius
    # check for structural correctness.
    np.testing.assert_allclose(out_f, ref_f, rtol=5e-2, atol=5e-2)
    rel = float(np.linalg.norm(out_f - ref_f) / np.linalg.norm(ref_f))
    assert rel < 2e-2, f"relative error too large: {rel}"

    print("KERNEL_OK")
</pallas_src>

<mosaic_0001>
module attributes {stable_mosaic.version = 11 : i64} {
  func.func @perceiver_attn_kernel(%arg0: i32, %arg1: memref<2x16x128xbf16, #tpu.memory_space<vmem>>, %arg2: memref<2x16x128xbf16, #tpu.memory_space<vmem>>, %arg3: memref<1x128xf32, #tpu.memory_space<vmem>>, %arg4: memref<1x128xf32, #tpu.memory_space<vmem>>, %arg5: memref<1x128xf32, #tpu.memory_space<vmem>>, %arg6: memref<1x128xf32, #tpu.memory_space<vmem>>, %arg7: memref<128x128xbf16, #tpu.memory_space<vmem>>, %arg8: memref<128x128xbf16, #tpu.memory_space<vmem>>, %arg9: memref<128x128xbf16, #tpu.memory_space<vmem>>, %arg10: memref<128x128xbf16, #tpu.memory_space<vmem>>, %arg11: memref<2x16x128xbf16, #tpu.memory_space<vmem>>) attributes {dimension_semantics = [#tpu.dimension_semantics<parallel>], iteration_bounds = array<i64: 2>, scalar_prefetch = 0 : i64, scratch_operands = 0 : i64, tpu.core_type = #tpu.core_type<tc>, window_params = [{transform_indices = @transform_0, window_bounds = array<i64: 2, 16, 128>}, {transform_indices = @transform_1, window_bounds = array<i64: 2, 16, 128>}, {pipeline_mode = #tpu.pipeline_mode<synchronous>, transform_indices = @transform_2, window_bounds = array<i64: 1, 128>}, {pipeline_mode = #tpu.pipeline_mode<synchronous>, transform_indices = @transform_3, window_bounds = array<i64: 1, 128>}, {pipeline_mode = #tpu.pipeline_mode<synchronous>, transform_indices = @transform_4, window_bounds = array<i64: 1, 128>}, {pipeline_mode = #tpu.pipeline_mode<synchronous>, transform_indices = @transform_5, window_bounds = array<i64: 1, 128>}, {pipeline_mode = #tpu.pipeline_mode<synchronous>, transform_indices = @transform_6, window_bounds = array<i64: 128, 128>}, {pipeline_mode = #tpu.pipeline_mode<synchronous>, transform_indices = @transform_7, window_bounds = array<i64: 128, 128>}, {pipeline_mode = #tpu.pipeline_mode<synchronous>, transform_indices = @transform_8, window_bounds = array<i64: 128, 128>}, {pipeline_mode = #tpu.pipeline_mode<synchronous>, transform_indices = @transform_9, window_bounds = array<i64: 128, 128>}, {transform_indices = @transform_10, window_bounds = array<i64: 2, 16, 128>}]} {
    %c0 = arith.constant 0 : index
    %c0_0 = arith.constant 0 : index
    %0 = vector.load %arg3[%c0, %c0_0] : memref<1x128xf32, #tpu.memory_space<vmem>>, vector<1x128xf32>
    %1 = vector.shape_cast %0 : vector<1x128xf32> to vector<128xf32>
    %c0_1 = arith.constant 0 : index
    %c0_2 = arith.constant 0 : index
    %2 = vector.load %arg4[%c0_1, %c0_2] : memref<1x128xf32, #tpu.memory_space<vmem>>, vector<1x128xf32>
    %3 = vector.shape_cast %2 : vector<1x128xf32> to vector<128xf32>
    %c0_3 = arith.constant 0 : index
    %c0_4 = arith.constant 0 : index
    %4 = vector.load %arg5[%c0_3, %c0_4] : memref<1x128xf32, #tpu.memory_space<vmem>>, vector<1x128xf32>
    %5 = vector.shape_cast %4 : vector<1x128xf32> to vector<128xf32>
    %c0_5 = arith.constant 0 : index
    %c0_6 = arith.constant 0 : index
    %6 = vector.load %arg6[%c0_5, %c0_6] : memref<1x128xf32, #tpu.memory_space<vmem>>, vector<1x128xf32>
    %7 = vector.shape_cast %6 : vector<1x128xf32> to vector<128xf32>
    %c0_7 = arith.constant 0 : index
    %c0_8 = arith.constant 0 : index
    %c0_9 = arith.constant 0 : index
    %8 = vector.load %arg1[%c0_7, %c0_8, %c0_9] : memref<2x16x128xbf16, #tpu.memory_space<vmem>>, vector<2x16x128xbf16>
    %9 = arith.extf %8 : vector<2x16x128xbf16> to vector<2x16x128xf32>
    %cst = arith.constant dense<0.000000e+00> : vector<2x16xf32>
    %10 = vector.multi_reduction <add>, %9, %cst [2] : vector<2x16x128xf32> to vector<2x16xf32>
    %11 = vector.shape_cast %10 : vector<2x16xf32> to vector<2x16x1xf32>
    %cst_10 = arith.constant 1.280000e+02 : f32
    %12 = vector.broadcast %cst_10 : f32 to vector<2x16x1xf32>
    %13 = arith.divf %11, %12 : vector<2x16x1xf32>
    %14 = vector.broadcast %13 : vector<2x16x1xf32> to vector<2x16x128xf32>
    %15 = arith.subf %9, %14 : vector<2x16x128xf32>
    %16 = arith.mulf %15, %15 : vector<2x16x128xf32>
    %cst_11 = arith.constant dense<0.000000e+00> : vector<2x16xf32>
    %17 = vector.multi_reduction <add>, %16, %cst_11 [2] : vector<2x16x128xf32> to vector<2x16xf32>
    %18 = vector.shape_cast %17 : vector<2x16xf32> to vector<2x16x1xf32>
    %cst_12 = arith.constant 1.280000e+02 : f32
    %19 = vector.broadcast %cst_12 : f32 to vector<2x16x1xf32>
    %20 = arith.divf %18, %19 : vector<2x16x1xf32>
    %21 = vector.broadcast %13 : vector<2x16x1xf32> to vector<2x16x128xf32>
    %22 = arith.subf %9, %21 : vector<2x16x128xf32>
    %cst_13 = arith.constant 9.99999974E-6 : f32
    %23 = vector.broadcast %cst_13 : f32 to vector<2x16x1xf32>
    %24 = arith.addf %20, %23 : vector<2x16x1xf32>
    %25 = math.rsqrt %24 : vector<2x16x1xf32>
    %26 = vector.broadcast %25 : vector<2x16x1xf32> to vector<2x16x128xf32>
    %27 = arith.mulf %22, %26 : vector<2x16x128xf32>
    %28 = vector.shape_cast %1 : vector<128xf32> to vector<1x1x128xf32>
    %29 = vector.broadcast %28 : vector<1x1x128xf32> to vector<2x16x128xf32>
    %30 = arith.mulf %27, %29 : vector<2x16x128xf32>
    %31 = vector.shape_cast %3 : vector<128xf32> to vector<1x1x128xf32>
    %32 = vector.broadcast %31 : vector<1x1x128xf32> to vector<2x16x128xf32>
    %33 = arith.addf %30, %32 : vector<2x16x128xf32>
    %34 = arith.truncf %33 : vector<2x16x128xf32> to vector<2x16x128xbf16>
    %c0_14 = arith.constant 0 : index
    %c0_15 = arith.constant 0 : index
    %c0_16 = arith.constant 0 : index
    %35 = vector.load %arg2[%c0_14, %c0_15, %c0_16] : memref<2x16x128xbf16, #tpu.memory_space<vmem>>, vector<2x16x128xbf16>
    %36 = arith.extf %35 : vector<2x16x128xbf16> to vector<2x16x128xf32>
    %cst_17 = arith.constant dense<0.000000e+00> : vector<2x16xf32>
    %37 = vector.multi_reduction <add>, %36, %cst_17 [2] : vector<2x16x128xf32> to vector<2x16xf32>
    %38 = vector.shape_cast %37 : vector<2x16xf32> to vector<2x16x1xf32>
    %cst_18 = arith.constant 1.280000e+02 : f32
    %39 = vector.broadcast %cst_18 : f32 to vector<2x16x1xf32>
    %40 = arith.divf %38, %39 : vector<2x16x1xf32>
    %41 = vector.broadcast %40 : vector<2x16x1xf32> to vector<2x16x128xf32>
    %42 = arith.subf %36, %41 : vector<2x16x128xf32>
    %43 = arith.mulf %42, %42 : vector<2x16x128xf32>
    %cst_19 = arith.constant dense<0.000000e+00> : vector<2x16xf32>
    %44 = vector.multi_reduction <add>, %43, %cst_19 [2] : vector<2x16x128xf32> to vector<2x16xf32>
    %45 = vector.shape_cast %44 : vector<2x16xf32> to vector<2x16x1xf32>
    %cst_20 = arith.constant 1.280000e+02 : f32
    %46 = vector.broadcast %cst_20 : f32 to vector<2x16x1xf32>
    %47 = arith.divf %45, %46 : vector<2x16x1xf32>
    %48 = vector.broadcast %40 : vector<2x16x1xf32> to vector<2x16x128xf32>
    %49 = arith.subf %36, %48 : vector<2x16x128xf32>
    %cst_21 = arith.constant 9.99999974E-6 : f32
    %50 = vector.broadcast %cst_21 : f32 to vector<2x16x1xf32>
    %51 = arith.addf %47, %50 : vector<2x16x1xf32>
    %52 = math.rsqrt %51 : vector<2x16x1xf32>
    %53 = vector.broadcast %52 : vector<2x16x1xf32> to vector<2x16x128xf32>
    %54 = arith.mulf %49, %53 : vector<2x16x128xf32>
    %55 = vector.shape_cast %5 : vector<128xf32> to vector<1x1x128xf32>
    %56 = vector.broadcast %55 : vector<1x1x128xf32> to vector<2x16x128xf32>
    %57 = arith.mulf %54, %56 : vector<2x16x128xf32>
    %58 = vector.shape_cast %7 : vector<128xf32> to vector<1x1x128xf32>
    %59 = vector.broadcast %58 : vector<1x1x128xf32> to vector<2x16x128xf32>
    %60 = arith.addf %57, %59 : vector<2x16x128xf32>
    %61 = arith.truncf %60 : vector<2x16x128xf32> to vector<2x16x128xbf16>
    %62 = tpu.concatenate %34, %61 in 1 : vector<2x16x128xbf16>, vector<2x16x128xbf16> -> vector<2x32x128xbf16>
    %63 = vector.shape_cast %61 : vector<2x16x128xbf16> to vector<32x128xbf16>
    %64 = vector.shape_cast %62 : vector<2x32x128xbf16> to vector<64x128xbf16>
    %c0_22 = arith.constant 0 : index
    %c0_23 = arith.constant 0 : index
    %65 = vector.load %arg7[%c0_22, %c0_23] : memref<128x128xbf16, #tpu.memory_space<vmem>>, vector<128x128xbf16>
    %cst_24 = arith.constant dense<0.000000e+00> : vector<32x128xf32>
    %66 = tpu.matmul %63, %65, %cst_24 {dimension_numbers = #tpu.dot_dimension_numbers<[1], [0], [0], [1], [0, 0, 1, 1], [], []>} : vector<32x128xbf16>, vector<128x128xbf16>, vector<32x128xf32> -> vector<32x128xf32>
    %67 = arith.truncf %66 : vector<32x128xf32> to vector<32x128xbf16>
    %c0_25 = arith.constant 0 : index
    %c0_26 = arith.constant 0 : index
    %68 = vector.load %arg8[%c0_25, %c0_26] : memref<128x128xbf16, #tpu.memory_space<vmem>>, vector<128x128xbf16>
    %cst_27 = arith.constant dense<0.000000e+00> : vector<64x128xf32>
    %69 = tpu.matmul %64, %68, %cst_27 {dimension_numbers = #tpu.dot_dimension_numbers<[1], [0], [0], [1], [0, 0, 1, 1], [], []>} : vector<64x128xbf16>, vector<128x128xbf16>, vector<64x128xf32> -> vector<64x128xf32>
    %70 = arith.truncf %69 : vector<64x128xf32> to vector<64x128xbf16>
    %c0_28 = arith.constant 0 : index
    %c0_29 = arith.constant 0 : index
    %71 = vector.load %arg9[%c0_28, %c0_29] : memref<128x128xbf16, #tpu.memory_space<vmem>>, vector<128x128xbf16>
    %cst_30 = arith.constant dense<0.000000e+00> : vector<64x128xf32>
    %72 = tpu.matmul %64, %71, %cst_30 {dimension_numbers = #tpu.dot_dimension_numbers<[1], [0], [0], [1], [0, 0, 1, 1], [], []>} : vector<64x128xbf16>, vector<128x128xbf16>, vector<64x128xf32> -> vector<64x128xf32>
    %73 = arith.truncf %72 : vector<64x128xf32> to vector<64x128xbf16>
    %74 = vector.shape_cast %67 : vector<32x128xbf16> to vector<2x16x4x32xbf16>
    %75 = tpu.transpose %74, [0, 2, 1, 3] : vector<2x16x4x32xbf16> -> vector<2x4x16x32xbf16>
    %76 = vector.shape_cast %75 : vector<2x4x16x32xbf16> to vector<8x16x32xbf16>
    %77 = vector.shape_cast %70 : vector<64x128xbf16> to vector<2x32x4x32xbf16>
    %78 = tpu.transpose %77, [0, 2, 1, 3] : vector<2x32x4x32xbf16> -> vector<2x4x32x32xbf16>
    %79 = vector.shape_cast %78 : vector<2x4x32x32xbf16> to vector<8x32x32xbf16>
    %80 = vector.shape_cast %73 : vector<64x128xbf16> to vector<2x32x4x32xbf16>
    %81 = tpu.transpose %80, [0, 2, 1, 3] : vector<2x32x4x32xbf16> -> vector<2x4x32x32xbf16>
    %82 = vector.shape_cast %81 : vector<2x4x32x32xbf16> to vector<8x32x32xbf16>
    "tpu.trace_start"() <{level = 10 : i32, message = "bnd,bmd->bnm"}> : () -> ()
    %cst_31 = arith.constant dense<0.000000e+00> : vector<8x16x32xf32>
    %83 = tpu.matmul %76, %79, %cst_31 {dimension_numbers = #tpu.dot_dimension_numbers<[2], [2], [1], [1], [0, 0, 0, 1, 1, 1], [0], [0]>} : vector<8x16x32xbf16>, vector<8x32x32xbf16>, vector<8x16x32xf32> -> vector<8x16x32xf32>
    "tpu.trace_stop"() : () -> ()
    %cst_32 = arith.constant dense<0xFF800000> : vector<8x16xf32>
    %84 = vector.multi_reduction <maximumf>, %83, %cst_32 [2] : vector<8x16x32xf32> to vector<8x16xf32>
    %85 = vector.shape_cast %84 : vector<8x16xf32> to vector<8x16x1xf32>
    %86 = vector.broadcast %85 : vector<8x16x1xf32> to vector<8x16x32xf32>
    %87 = arith.subf %83, %86 : vector<8x16x32xf32>
    %88 = math.exp %87 : vector<8x16x32xf32>
    %cst_33 = arith.constant dense<0.000000e+00> : vector<8x16xf32>
    %89 = vector.multi_reduction <add>, %88, %cst_33 [2] : vector<8x16x32xf32> to vector<8x16xf32>
    %90 = vector.shape_cast %89 : vector<8x16xf32> to vector<8x16x1xf32>
    %91 = tpu.reciprocal %90 {approx = true} : vector<8x16x1xf32> -> vector<8x16x1xf32>
    %92 = vector.broadcast %91 : vector<8x16x1xf32> to vector<8x16x32xf32>
    %93 = arith.mulf %88, %92 : vector<8x16x32xf32>
    %94 = arith.truncf %93 : vector<8x16x32xf32> to vector<8x16x32xbf16>
    "tpu.trace_start"() <{level = 10 : i32, message = "bnm,bmd->bnd"}> : () -> ()
    %cst_34 = arith.constant dense<0.000000e+00> : vector<8x16x32xf32>
    %95 = tpu.matmul %94, %82, %cst_34 {dimension_numbers = #tpu.dot_dimension_numbers<[2], [1], [1], [2], [0, 0, 0, 1, 1, 2], [0], [0]>} : vector<8x16x32xbf16>, vector<8x32x32xbf16>, vector<8x16x32xf32> -> vector<8x16x32xf32>
    "tpu.trace_stop"() : () -> ()
    %96 = vector.shape_cast %95 : vector<8x16x32xf32> to vector<2x4x16x32xf32>
    %97 = tpu.transpose %96, [0, 2, 1, 3] : vector<2x4x16x32xf32> -> vector<2x16x4x32xf32>
    %98 = arith.truncf %97 : vector<2x16x4x32xf32> to vector<2x16x4x32xbf16>
    %99 = vector.shape_cast %98 : vector<2x16x4x32xbf16> to vector<32x128xbf16>
    %c0_35 = arith.constant 0 : index
    %c0_36 = arith.constant 0 : index
    %100 = vector.load %arg10[%c0_35, %c0_36] : memref<128x128xbf16, #tpu.memory_space<vmem>>, vector<128x128xbf16>
    %cst_37 = arith.constant dense<0.000000e+00> : vector<32x128xf32>
    %101 = tpu.matmul %99, %100, %cst_37 {dimension_numbers = #tpu.dot_dimension_numbers<[1], [0], [0], [1], [0, 0, 1, 1], [], []>} : vector<32x128xbf16>, vector<128x128xbf16>, vector<32x128xf32> -> vector<32x128xf32>
    %102 = vector.shape_cast %101 : vector<32x128xf32> to vector<2x16x128xf32>
    %103 = arith.truncf %102 : vector<2x16x128xf32> to vector<2x16x128xbf16>
    %c0_38 = arith.constant 0 : index
    %c0_39 = arith.constant 0 : index
    %c0_40 = arith.constant 0 : index
    %104 = vector.load %arg11[%c0_38, %c0_39, %c0_40] : memref<2x16x128xbf16, #tpu.memory_space<vmem>>, vector<2x16x128xbf16>
    tpu.vector_store %arg11[%c0_38, %c0_39, %c0_40], %103 {strides = array<i32>} : memref<2x16x128xbf16, #tpu.memory_space<vmem>>, vector<2x16x128xbf16>,
    return
  }
  func.func @transform_0(%arg0: i32) -> (i32, i32, i32) {
    %c0_i32 = arith.constant 0 : i32
    %c0_i32_0 = arith.constant 0 : i32
    %c0_i32_1 = arith.constant 0 : i32
    return %arg0, %c0_i32, %c0_i32_0 : i32, i32, i32
  }
  func.func @transform_1(%arg0: i32) -> (i32, i32, i32) {
    %c0_i32 = arith.constant 0 : i32
    %c0_i32_0 = arith.constant 0 : i32
    %c0_i32_1 = arith.constant 0 : i32
    return %arg0, %c0_i32, %c0_i32_0 : i32, i32, i32
  }
  func.func @transform_2(%arg0: i32) -> (i32, i32) {
    %c0_i32 = arith.constant 0 : i32
    %c0_i32_0 = arith.constant 0 : i32
    %c0_i32_1 = arith.constant 0 : i32
    return %c0_i32, %c0_i32_0 : i32, i32
  }
  func.func @transform_3(%arg0: i32) -> (i32, i32) {
    %c0_i32 = arith.constant 0 : i32
    %c0_i32_0 = arith.constant 0 : i32
    %c0_i32_1 = arith.constant 0 : i32
    return %c0_i32, %c0_i32_0 : i32, i32
  }
  func.func @transform_4(%arg0: i32) -> (i32, i32) {
    %c0_i32 = arith.constant 0 : i32
    %c0_i32_0 = arith.constant 0 : i32
    %c0_i32_1 = arith.constant 0 : i32
    return %c0_i32, %c0_i32_0 : i32, i32
  }
  func.func @transform_5(%arg0: i32) -> (i32, i32) {
    %c0_i32 = arith.constant 0 : i32
    %c0_i32_0 = arith.constant 0 : i32
    %c0_i32_1 = arith.constant 0 : i32
    return %c0_i32, %c0_i32_0 : i32, i32
  }
  func.func @transform_6(%arg0: i32) -> (i32, i32) {
    %c0_i32 = arith.constant 0 : i32
    %c0_i32_0 = arith.constant 0 : i32
    %c0_i32_1 = arith.constant 0 : i32
    return %c0_i32, %c0_i32_0 : i32, i32
  }
  func.func @transform_7(%arg0: i32) -> (i32, i32) {
    %c0_i32 = arith.constant 0 : i32
    %c0_i32_0 = arith.constant 0 : i32
    %c0_i32_1 = arith.constant 0 : i32
    return %c0_i32, %c0_i32_0 : i32, i32
  }
  func.func @transform_8(%arg0: i32) -> (i32, i32) {
    %c0_i32 = arith.constant 0 : i32
    %c0_i32_0 = arith.constant 0 : i32
    %c0_i32_1 = arith.constant 0 : i32
    return %c0_i32, %c0_i32_0 : i32, i32
  }
  func.func @transform_9(%arg0: i32) -> (i32, i32) {
    %c0_i32 = arith.constant 0 : i32
    %c0_i32_0 = arith.constant 0 : i32
    %c0_i32_1 = arith.constant 0 : i32
    return %c0_i32, %c0_i32_0 : i32, i32
  }
  func.func @transform_10(%arg0: i32) -> (i32, i32, i32) {
    %c0_i32 = arith.constant 0 : i32
    %c0_i32_0 = arith.constant 0 : i32
    %c0_i32_1 = arith.constant 0 : i32
    return %arg0, %c0_i32, %c0_i32_0 : i32, i32, i32
  }
}

</mosaic_0001>

<llo_original>
// kernel: tpu_custom_call.1
$region0: #{tpu_custom_call.1}
  #allocation0 [shape = 'u32[]', space=smem, size = 0x4, offset = 0x4, fixed_abs, tag = 'smem constant byte address 0x4 - core index']
  #allocation1 [shape = 'u32[144,128]{1,0:T(1,128)}', space=vmem, size = 0x12000, scoped, tag = 'internal scratch']
  %s0 = inlined_call_operand.hbm [shape: bf16[4,16,128], index: 0, kind: input, shape index: {}]
  %s1 = inlined_call_operand.hbm [shape: bf16[4,16,128], index: 1, kind: input, shape index: {}]
  %s2 = inlined_call_operand.vmem [shape: f32[1,128], index: 2, kind: input, shape index: {}]
  %s3 = inlined_call_operand.vmem [shape: f32[1,128], index: 3, kind: input, shape index: {}]
  %s4 = inlined_call_operand.vmem [shape: f32[1,128], index: 4, kind: input, shape index: {}]
  %s5 = inlined_call_operand.vmem [shape: f32[1,128], index: 5, kind: input, shape index: {}]
  %s6 = inlined_call_operand.hbm [shape: bf16[128,128], index: 6, kind: input, shape index: {}]
  %s7 = inlined_call_operand.hbm [shape: bf16[128,128], index: 7, kind: input, shape index: {}]
  %s8 = inlined_call_operand.hbm [shape: bf16[128,128], index: 8, kind: input, shape index: {}]
  %s9 = inlined_call_operand.hbm [shape: bf16[128,128], index: 9, kind: input, shape index: {}]
  %s10 = inlined_call_operand.hbm [shape: bf16[4,16,128], index: 10, kind: output, shape index: {}]
  %s11 = sld [smem:[#allocation0]]
  $region97: #{tpu_custom_call.1} parent=0
    _
  %s13 = ssub.s32 1, %s11
  %s14 = scalar_select 0, %s13, %s11
  $region1: #{tpu_custom_call.1} parent=0
    #allocation2 [shape = 'u8[16384]{0}', space=vmem, size = 0x4000, scoped, tag = 'input window, operand 0']
    #allocation3 [shape = 's32[2]{0}', space=sflag, size = 0x8, scoped, tag = 'scoped memory for tpu_custom_call.1']
    #allocation4 [shape = 's32[2]{0}', space=sflag, size = 0x8, scoped, tag = 'scoped memory for tpu_custom_call.1']
    #allocation5 [shape = 'u8[16384]{0}', space=vmem, size = 0x4000, scoped, tag = 'input window, operand 1']
    #allocation6 [shape = 's32[2]{0}', space=sflag, size = 0x8, scoped, tag = 'scoped memory for tpu_custom_call.1']
    #allocation7 [shape = 'u8[32768]{0}', space=vmem, size = 0x8000, scoped, tag = 'input window, operand 6, single buffered']
    #allocation8 [shape = 'u8[32768]{0}', space=vmem, size = 0x8000, scoped, tag = 'input window, operand 7, single buffered']
    #allocation9 [shape = 's32[1]{0}', space=sflag, size = 0x4, scoped, tag = 'scoped memory for tpu_custom_call.1']
    #allocation10 [shape = 'u8[32768]{0}', space=vmem, size = 0x8000, scoped, tag = 'input window, operand 8, single buffered']
    #allocation11 [shape = 'u8[32768]{0}', space=vmem, size = 0x8000, scoped, tag = 'input window, operand 9, single buffered']
    #allocation12 [shape = 's32[1]{0}', space=sflag, size = 0x4, scoped, tag = 'scoped memory for tpu_custom_call.1']
    #allocation13 [shape = 'u8[16384]{0}', space=vmem, size = 0x4000, scoped, tag = 'output window, operand 0']
    %15 = vsyncpa [#allocation3], 0
    %s16 = scalar_lea.sflag [#allocation3], 1
    %17 = vsyncpa %s16, 0
    %18 = vsyncpa [#allocation6], 0
    %s19 = scalar_lea.sflag [#allocation6], 1
    %20 = vsyncpa %s19, 0
    %21 = vsyncpa [#allocation9], 0
    %22 = vsyncpa [#allocation12], 0
    %23 = vsyncpa [#allocation4], 0
    %s24 = scalar_lea.sflag [#allocation4], 1
    %25 = vsyncpa %s24, 0
    loop: start=0, step=1, limit=4
    $region2: #{tpu_custom_call.1} parent=1 // loop_pre_header
      _
    $region3: #{tpu_custom_call.1} parent=1 // loop_header
      %s27 = sphi 0, %s31
      %p28 = scmp.ge.s32.totalorder %s27, 4
      %s37 = sphi 0, %s39
      %s40 = sphi 0, %s37
      %s41 = sphi 0, %s40
      %s57 = sphi 0, %s41
      %s63 = sphi 0, %s65
      %s66 = sphi 0, %s63
      %s67 = sphi 0, %s66
      %s83 = sphi 0, %s67
      %s87 = sphi 0, %s87
      %s89 = sphi 0, %s87
      %s90 = sphi 0, %s89
      %s104 = sphi 0, %s90
      %s108 = sphi 0, %s108
      %s110 = sphi 0, %s108
      %s111 = sphi 0, %s110
      %s125 = sphi 0, %s111
      %s129 = sphi 0, %s129
      %s131 = sphi 0, %s129
      %s132 = sphi 0, %s131
      %s146 = sphi 0, %s132
      %s150 = sphi 0, %s150
      %s152 = sphi 0, %s150
      %s153 = sphi 0, %s152
      %s167 = sphi 0, %s153
      %s171 = sphi 0, %s171
      %s173 = sphi 0, %s171
      %s174 = sphi 0, %s173
      %s188 = sphi 0, %s174
      %s192 = sphi 0, %s192
      %s194 = sphi 0, %s192
      %s195 = sphi 0, %s194
      %s209 = sphi 0, %s195
      %s213 = sphi 0, %s213
      %s215 = sphi 0, %s213
      %s216 = sphi 0, %s215
      %s230 = sphi 0, %s216
      %s234 = sphi 0, %s234
      %s236 = sphi 0, %s234
      %s237 = sphi 0, %s236
      %s251 = sphi 0, %s237
      %s257 = sphi 0, %s259
      %s260 = sphi 0, %s257
      %s261 = sphi 0, %s260
      %s277 = sphi 0, %s261
    $region4: #{tpu_custom_call.1} parent=1 // loop_header_branch
      %30 = sbr.rel (%p28) target = $region8
    $region5: #{tpu_custom_call.1} parent=1 // loop_body
      %s32 = ssub.s32 %s27, 1
      %s33 = ssub.s32 %s27, 2
      %s34 = sadd.s32 %s27, 1
      %s35 = ssub.s32 %s27, %s34
      %p36 = scmp.eq.s32.totalorder %s35, 0
      %s38 = sadd.s32 %s37, 1
      %s39 = scalar_select %p36, %s37, %s38
      %p42 = pneg %p36
      %p43 = scmp.eq.s32.totalorder %s27, 1
      %p44 = por %p42, %p43
      %p45 = scmp.ne.s32.totalorder %s37, %s40
      %p46 = scmp.eq.s32.totalorder %s27, 0
      %p47 = por %p45, %p46
      %p48 = scmp.ne.s32.totalorder %s37, %s40
      %p49 = scmp.eq.s32.totalorder %s32, 1
      %p50 = por %p48, %p49
      %p51 = scmp.ne.s32.totalorder %s40, %s41
      %p52 = scmp.eq.s32.totalorder %s32, 0
      %p53 = por %p51, %p52
      %p54 = scmp.ne.s32.totalorder %s40, %s41
      %p55 = scmp.eq.s32.totalorder %s33, 1
      %p56 = por %p54, %p55
      %p58 = scmp.ne.s32.totalorder %s41, %s57
      %p59 = scmp.eq.s32.totalorder %s33, 0
      %p60 = por %p58, %p59
      %s61 = ssub.s32 %s27, %s34
      %p62 = scmp.eq.s32.totalorder %s61, 0
      %s64 = sadd.s32 %s63, 1
      %s65 = scalar_select %p62, %s63, %s64
      %p68 = pneg %p62
      %p69 = scmp.eq.s32.totalorder %s27, 1
      %p70 = por %p68, %p69
      %p71 = scmp.ne.s32.totalorder %s63, %s66
      %p72 = scmp.eq.s32.totalorder %s27, 0
      %p73 = por %p71, %p72
      %p74 = scmp.ne.s32.totalorder %s63, %s66
      %p75 = scmp.eq.s32.totalorder %s32, 1
      %p76 = por %p74, %p75
      %p77 = scmp.ne.s32.totalorder %s66, %s67
      %p78 = scmp.eq.s32.totalorder %s32, 0
      %p79 = por %p77, %p78
      %p80 = scmp.ne.s32.totalorder %s66, %s67
      %p81 = scmp.eq.s32.totalorder %s33, 1
      %p82 = por %p80, %p81
      %p84 = scmp.ne.s32.totalorder %s67, %s83
      %p85 = scmp.eq.s32.totalorder %s33, 0
      %p86 = por %p84, %p85
      %s88 = sadd.s32 %s87, 1
      %p91 = scmp.eq.s32.totalorder %s27, 1
      %p92 = scmp.ne.s32.totalorder %s87, %s89
      %p93 = scmp.eq.s32.totalorder %s27, 0
      %p94 = por %p92, %p93
      %p95 = scmp.ne.s32.totalorder %s87, %s89
      %p96 = scmp.eq.s32.totalorder %s32, 1
      %p97 = por %p95, %p96
      %p98 = scmp.ne.s32.totalorder %s89, %s90
      %p99 = scmp.eq.s32.totalorder %s32, 0
      %p100 = por %p98, %p99
      %p101 = scmp.ne.s32.totalorder %s89, %s90
      %p102 = scmp.eq.s32.totalorder %s33, 1
      %p103 = por %p101, %p102
      %p105 = scmp.ne.s32.totalorder %s90, %s104
      %p106 = scmp.eq.s32.totalorder %s33, 0
      %p107 = por %p105, %p106
      %s109 = sadd.s32 %s108, 1
      %p112 = scmp.eq.s32.totalorder %s27, 1
      %p113 = scmp.ne.s32.totalorder %s108, %s110
      %p114 = scmp.eq.s32.totalorder %s27, 0
      %p115 = por %p113, %p114
      %p116 = scmp.ne.s32.totalorder %s108, %s110
      %p117 = scmp.eq.s32.totalorder %s32, 1
      %p118 = por %p116, %p117
      %p119 = scmp.ne.s32.totalorder %s110, %s111
      %p120 = scmp.eq.s32.totalorder %s32, 0
      %p121 = por %p119, %p120
      %p122 = scmp.ne.s32.totalorder %s110, %s111
      %p123 = scmp.eq.s32.totalorder %s33, 1
      %p124 = por %p122, %p123
      %p126 = scmp.ne.s32.totalorder %s111, %s125
      %p127 = scmp.eq.s32.totalorder %s33, 0
      %p128 = por %p126, %p127
      %s130 = sadd.s32 %s129, 1
      %p133 = scmp.eq.s32.totalorder %s27, 1
      %p134 = scmp.ne.s32.totalorder %s129, %s131
      %p135 = scmp.eq.s32.totalorder %s27, 0
      %p136 = por %p134, %p135
      %p137 = scmp.ne.s32.totalorder %s129, %s131
      %p138 = scmp.eq.s32.totalorder %s32, 1
      %p139 = por %p137, %p138
      %p140 = scmp.ne.s32.totalorder %s131, %s132
      %p141 = scmp.eq.s32.totalorder %s32, 0
      %p142 = por %p140, %p141
      %p143 = scmp.ne.s32.totalorder %s131, %s132
      %p144 = scmp.eq.s32.totalorder %s33, 1
      %p145 = por %p143, %p144
      %p147 = scmp.ne.s32.totalorder %s132, %s146
      %p148 = scmp.eq.s32.totalorder %s33, 0
      %p149 = por %p147, %p148
      %s151 = sadd.s32 %s150, 1
      %p154 = scmp.eq.s32.totalorder %s27, 1
      %p155 = scmp.ne.s32.totalorder %s150, %s152
      %p156 = scmp.eq.s32.totalorder %s27, 0
      %p157 = por %p155, %p156
      %p158 = scmp.ne.s32.totalorder %s150, %s152
      %p159 = scmp.eq.s32.totalorder %s32, 1
      %p160 = por %p158, %p159
      %p161 = scmp.ne.s32.totalorder %s152, %s153
      %p162 = scmp.eq.s32.totalorder %s32, 0
      %p163 = por %p161, %p162
      %p164 = scmp.ne.s32.totalorder %s152, %s153
      %p165 = scmp.eq.s32.totalorder %s33, 1
      %p166 = por %p164, %p165
      %p168 = scmp.ne.s32.totalorder %s153, %s167
      %p169 = scmp.eq.s32.totalorder %s33, 0
      %p170 = por %p168, %p169
      %s172 = sadd.s32 %s171, 1
      %p175 = scmp.eq.s32.totalorder %s27, 1
      %p176 = scmp.ne.s32.totalorder %s171, %s173
      %p177 = scmp.eq.s32.totalorder %s27, 0
      %p178 = por %p176, %p177
      %p179 = scmp.ne.s32.totalorder %s171, %s173
      %p180 = scmp.eq.s32.totalorder %s32, 1
      %p181 = por %p179, %p180
      %p182 = scmp.ne.s32.totalorder %s173, %s174
      %p183 = scmp.eq.s32.totalorder %s32, 0
      %p184 = por %p182, %p183
      %p185 = scmp.ne.s32.totalorder %s173, %s174
      %p186 = scmp.eq.s32.totalorder %s33, 1
      %p187 = por %p185, %p186
      %p189 = scmp.ne.s32.totalorder %s174, %s188
      %p190 = scmp.eq.s32.totalorder %s33, 0
      %p191 = por %p189, %p190
      %s193 = sadd.s32 %s192, 1
      %p196 = scmp.eq.s32.totalorder %s27, 1
      %p197 = scmp.ne.s32.totalorder %s192, %s194
      %p198 = scmp.eq.s32.totalorder %s27, 0
      %p199 = por %p197, %p198
      %p200 = scmp.ne.s32.totalorder %s192, %s194
      %p201 = scmp.eq.s32.totalorder %s32, 1
      %p202 = por %p200, %p201
      %p203 = scmp.ne.s32.totalorder %s194, %s195
      %p204 = scmp.eq.s32.totalorder %s32, 0
      %p205 = por %p203, %p204
      %p206 = scmp.ne.s32.totalorder %s194, %s195
      %p207 = scmp.eq.s32.totalorder %s33, 1
      %p208 = por %p206, %p207
      %p210 = scmp.ne.s32.totalorder %s195, %s209
      %p211 = scmp.eq.s32.totalorder %s33, 0
      %p212 = por %p210, %p211
      %s214 = sadd.s32 %s213, 1
      %p217 = scmp.eq.s32.totalorder %s27, 1
      %p218 = scmp.ne.s32.totalorder %s213, %s215
      %p219 = scmp.eq.s32.totalorder %s27, 0
      %p220 = por %p218, %p219
      %p221 = scmp.ne.s32.totalorder %s213, %s215
      %p222 = scmp.eq.s32.totalorder %s32, 1
      %p223 = por %p221, %p222
      %p224 = scmp.ne.s32.totalorder %s215, %s216
      %p225 = scmp.eq.s32.totalorder %s32, 0
      %p226 = por %p224, %p225
      %p227 = scmp.ne.s32.totalorder %s215, %s216
      %p228 = scmp.eq.s32.totalorder %s33, 1
      %p229 = por %p227, %p228
      %p231 = scmp.ne.s32.totalorder %s216, %s230
      %p232 = scmp.eq.s32.totalorder %s33, 0
      %p233 = por %p231, %p232
      %s235 = sadd.s32 %s234, 1
      %p238 = scmp.eq.s32.totalorder %s27, 1
      %p239 = scmp.ne.s32.totalorder %s234, %s236
      %p240 = scmp.eq.s32.totalorder %s27, 0
      %p241 = por %p239, %p240
      %p242 = scmp.ne.s32.totalorder %s234, %s236
      %p243 = scmp.eq.s32.totalorder %s32, 1
      %p244 = por %p242, %p243
      %p245 = scmp.ne.s32.totalorder %s236, %s237
      %p246 = scmp.eq.s32.totalorder %s32, 0
      %p247 = por %p245, %p246
      %p248 = scmp.ne.s32.totalorder %s236, %s237
      %p249 = scmp.eq.s32.totalorder %s33, 1
      %p250 = por %p248, %p249
      %p252 = scmp.ne.s32.totalorder %s237, %s251
      %p253 = scmp.eq.s32.totalorder %s33, 0
      %p254 = por %p252, %p253
      %s255 = ssub.s32 %s27, %s34
      %p256 = scmp.eq.s32.totalorder %s255, 0
      %s258 = sadd.s32 %s257, 1
      %s259 = scalar_select %p256, %s257, %s258
      %p262 = pneg %p256
      %p263 = scmp.eq.s32.totalorder %s27, 1
      %p264 = por %p262, %p263
      %p265 = scmp.ne.s32.totalorder %s257, %s260
      %p266 = scmp.eq.s32.totalorder %s27, 0
      %p267 = por %p265, %p266
      %p268 = scmp.ne.s32.totalorder %s257, %s260
      %p269 = scmp.eq.s32.totalorder %s32, 1
      %p270 = por %p268, %p269
      %p271 = scmp.ne.s32.totalorder %s260, %s261
      %p272 = scmp.eq.s32.totalorder %s32, 0
      %p273 = por %p271, %p272
      %p274 = scmp.ne.s32.totalorder %s260, %s261
      %p275 = scmp.eq.s32.totalorder %s33, 1
      %p276 = por %p274, %p275
      %p278 = scmp.ne.s32.totalorder %s261, %s277
      %p279 = scmp.eq.s32.totalorder %s33, 0
      %p280 = por %p278, %p279
      %p281 = scmp.le.s32.totalorder 1, %s27
      %p282 = scmp.lt.s32.totalorder %s27, 3
      %p283 = pnand %p281, %p282
      %p284 = pneg %p283
      // Predicated region
      $region9: #{tpu_custom_call.1} parent=5 // pred_check
        _
      $region10: #{tpu_custom_call.1} parent=5 // pred_check_branch
        %286 = sbr.rel (%p283) target = $region12
      $region11: #{tpu_custom_call.1} parent=5 // pred_region
        %s287 = ssub.s32 %s27, 1
        // Predicated region
        $region13: #{tpu_custom_call.1} parent=11 // pred_check
          %p288 = pneg %p100
        $region14: #{tpu_custom_call.1} parent=11 // pred_check_branch
          %290 = sbr.rel (%p288) target = $region16
        $region15: #{tpu_custom_call.1} parent=11 // pred_region
          _
        $region16: #{tpu_custom_call.1} parent=11 // pred_fallthru
          _
        // Predicated region
        $region17: #{tpu_custom_call.1} parent=11 // pred_check
          %p291 = pneg %p121
        $region18: #{tpu_custom_call.1} parent=11 // pred_check_branch
          %293 = sbr.rel (%p291) target = $region20
        $region19: #{tpu_custom_call.1} parent=11 // pred_region
          _
        $region20: #{tpu_custom_call.1} parent=11 // pred_fallthru
          _
        // Predicated region
        $region21: #{tpu_custom_call.1} parent=11 // pred_check
          %p294 = pneg %p142
        $region22: #{tpu_custom_call.1} parent=11 // pred_check_branch
          %296 = sbr.rel (%p294) target = $region24
        $region23: #{tpu_custom_call.1} parent=11 // pred_region
          _
        $region24: #{tpu_custom_call.1} parent=11 // pred_fallthru
          _
        // Predicated region
        $region25: #{tpu_custom_call.1} parent=11 // pred_check
          %p297 = pneg %p163
        $region26: #{tpu_custom_call.1} parent=11 // pred_check_branch
          %299 = sbr.rel (%p297) target = $region28
        $region27: #{tpu_custom_call.1} parent=11 // pred_region
          _
        $region28: #{tpu_custom_call.1} parent=11 // pred_fallthru
          _
        // Predicated region
        $region29: #{tpu_custom_call.1} parent=11 // pred_check
          %p300 = pneg %p184
        $region30: #{tpu_custom_call.1} parent=11 // pred_check_branch
          %302 = sbr.rel (%p300) target = $region32
        $region31: #{tpu_custom_call.1} parent=11 // pred_region
          %s304 = ssub.s32 1024, 1024
          %305 = vsyncadd [#allocation6], %s304
          %s306 = sshll.u32 [#allocation7], 4
          %s307 = int_to_ptr.vmem [resolvable:$true] %s306
          %312 = dma.hbm_to_vmem [thread:$0]  %s6, 1024, %s307, [#allocation6], 64, 64, 4
        $region32: #{tpu_custom_call.1} parent=11 // pred_fallthru
          _
        // Predicated region
        $region33: #{tpu_custom_call.1} parent=11 // pred_check
          %p313 = pneg %p205
        $region34: #{tpu_custom_call.1} parent=11 // pred_check_branch
          %315 = sbr.rel (%p313) target = $region36
        $region35: #{tpu_custom_call.1} parent=11 // pred_region
          %s317 = ssub.s32 1024, 1024
          %318 = vsyncadd [#allocation9], %s317
          %s319 = sshll.u32 [#allocation8], 4
          %s320 = int_to_ptr.vmem [resolvable:$true] %s319
          %325 = dma.hbm_to_vmem [thread:$0]  %s7, 1024, %s320, [#allocation9], 64, 64, 4
        $region36: #{tpu_custom_call.1} parent=11 // pred_fallthru
          _
        // Predicated region
        $region37: #{tpu_custom_call.1} parent=11 // pred_check
          %p326 = pneg %p226
        $region38: #{tpu_custom_call.1} parent=11 // pred_check_branch
          %328 = sbr.rel (%p326) target = $region40
        $region39: #{tpu_custom_call.1} parent=11 // pred_region
          %s330 = ssub.s32 1024, 1024
          %331 = vsyncadd [#allocation9], %s330
          %s332 = sshll.u32 [#allocation10], 4
          %s333 = int_to_ptr.vmem [resolvable:$true] %s332
          %338 = dma.hbm_to_vmem [thread:$0]  %s8, 1024, %s333, [#allocation9], 64, 64, 4
        $region40: #{tpu_custom_call.1} parent=11 // pred_fallthru
          _
        // Predicated region
        $region41: #{tpu_custom_call.1} parent=11 // pred_check
          %p339 = pneg %p247
        $region42: #{tpu_custom_call.1} parent=11 // pred_check_branch
          %341 = sbr.rel (%p339) target = $region44
        $region43: #{tpu_custom_call.1} parent=11 // pred_region
          %s343 = ssub.s32 1024, 1024
          %344 = vsyncadd [#allocation12], %s343
          %s345 = sshll.u32 [#allocation11], 4
          %s346 = int_to_ptr.vmem [resolvable:$true] %s345
          %351 = dma.hbm_to_vmem [thread:$0]  %s9, 1024, %s346, [#allocation12], 64, 64, 4
        $region44: #{tpu_custom_call.1} parent=11 // pred_fallthru
          _
      $region12: #{tpu_custom_call.1} parent=5 // pred_fallthru
        _
      %p352 = scmp.lt.s32.totalorder %s27, 2
      // Predicated region
      $region45: #{tpu_custom_call.1} parent=5 // pred_check
        %p353 = pneg %p352
      $region46: #{tpu_custom_call.1} parent=5 // pred_check_branch
        %355 = sbr.rel (%p353) target = $region48
      $region47: #{tpu_custom_call.1} parent=5 // pred_region
        // Predicated region
        $region49: #{tpu_custom_call.1} parent=47 // pred_check
          %p356 = pneg %p47
        $region50: #{tpu_custom_call.1} parent=47 // pred_check_branch
          %358 = sbr.rel (%p356) target = $region52
        $region51: #{tpu_custom_call.1} parent=47 // pred_region
          %s359 = sand.u32 %s37, 1
          %s360 = scalar_lea.sflag [#allocation3], %s359
          %s361 = sand.u32 %s37, 1
          %s362 = smul.addr %s361, 16
          %s363 = scalar_lea.vmem [#allocation2], %s362
          %s364 = smul.u32 2, %s27
          %s366 = ssub.s32 256, 256
          %367 = vsyncadd %s360, %s366
          %s368 = smul.addr %s364, 2
          %s369 = smul.addr %s368, 64
          %s370 = scalar_lea.hbm %s0, %s369
          %s371 = sshll.u32 %s363, 4
          %s372 = int_to_ptr.vmem [resolvable:$true] %s371
          %377 = dma.hbm_to_vmem [thread:$0]  %s370, 256, %s372, %s360, 64, 64, 4
        $region52: #{tpu_custom_call.1} parent=47 // pred_fallthru
          _
        // Predicated region
        $region53: #{tpu_custom_call.1} parent=47 // pred_check
          %p378 = pneg %p73
        $region54: #{tpu_custom_call.1} parent=47 // pred_check_branch
          %380 = sbr.rel (%p378) target = $region56
        $region55: #{tpu_custom_call.1} parent=47 // pred_region
          %s381 = sand.u32 %s27, 1
          %s382 = scalar_lea.sflag [#allocation6], %s381
          %s383 = sand.u32 %s63, 1
          %s384 = smul.addr %s383, 16
          %s385 = scalar_lea.vmem [#allocation5], %s384
          %s386 = smul.u32 2, %s27
          %s388 = ssub.s32 256, 256
          %389 = vsyncadd %s382, %s388
          %s390 = smul.addr %s386, 2
          %s391 = smul.addr %s390, 64
          %s392 = scalar_lea.hbm %s1, %s391
          %s393 = sshll.u32 %s385, 4
          %s394 = int_to_ptr.vmem [resolvable:$true] %s393
          %399 = dma.hbm_to_vmem [thread:$0]  %s392, 256, %s394, %s382, 64, 64, 4
        $region56: #{tpu_custom_call.1} parent=47 // pred_fallthru
          _
      $region48: #{tpu_custom_call.1} parent=5 // pred_fallthru
        _
      %p400 = scmp.le.s32.totalorder 1, %s27
      %p401 = scmp.lt.s32.totalorder %s27, 3
      %p402 = pnand %p400, %p401
      %p403 = pneg %p402
      // Predicated region
      $region57: #{tpu_custom_call.1} parent=5 // pred_check
        _
      $region58: #{tpu_custom_call.1} parent=5 // pred_check_branch
        %405 = sbr.rel (%p402) target = $region60
      $region59: #{tpu_custom_call.1} parent=5 // pred_region
        %s406 = ssub.s32 %s27, 1
        %s407 = sand.u32 %s40, 1
        %s408 = scalar_lea.sflag [#allocation3], %s407
        %s409 = sand.u32 %s40, 1
        %s410 = smul.addr %s409, 16
        %s411 = scalar_lea.vmem [#allocation2], %s410
        // Predicated region
        $region61: #{tpu_custom_call.1} parent=59 // pred_check
          %p412 = pneg %p53
        $region62: #{tpu_custom_call.1} parent=59 // pred_check_branch
          %414 = sbr.rel (%p412) target = $region64
        $region63: #{tpu_custom_call.1} parent=59 // pred_region
          %415 = dma.done %s408, 256
        $region64: #{tpu_custom_call.1} parent=59 // pred_fallthru
          _
        %s416 = sand.u32 %s32, 1
        %s417 = scalar_lea.sflag [#allocation6], %s416
        %s418 = sand.u32 %s66, 1
        %s419 = smul.addr %s418, 16
        %s420 = scalar_lea.vmem [#allocation5], %s419
        // Predicated region
        $region65: #{tpu_custom_call.1} parent=59 // pred_check
          %p421 = pneg %p79
        $region66: #{tpu_custom_call.1} parent=59 // pred_check_branch
          %423 = sbr.rel (%p421) target = $region68
        $region67: #{tpu_custom_call.1} parent=59 // pred_region
          %424 = dma.done %s417, 256
        $region68: #{tpu_custom_call.1} parent=59 // pred_fallthru
          _
        // Predicated region
        $region69: #{tpu_custom_call.1} parent=59 // pred_check
          %p425 = pneg %p184
        $region70: #{tpu_custom_call.1} parent=59 // pred_check_branch
          %427 = sbr.rel (%p425) target = $region72
        $region71: #{tpu_custom_call.1} parent=59 // pred_region
          %428 = dma.done [#allocation6], 1024
        $region72: #{tpu_custom_call.1} parent=59 // pred_fallthru
          _
        // Predicated region
        $region73: #{tpu_custom_call.1} parent=59 // pred_check
          %p429 = pneg %p205
        $region74: #{tpu_custom_call.1} parent=59 // pred_check_branch
          %431 = sbr.rel (%p429) target = $region76
        $region75: #{tpu_custom_call.1} parent=59 // pred_region
          %432 = dma.done [#allocation9], 1024
        $region76: #{tpu_custom_call.1} parent=59 // pred_fallthru
          _
        // Predicated region
        $region77: #{tpu_custom_call.1} parent=59 // pred_check
          %p433 = pneg %p226
        $region78: #{tpu_custom_call.1} parent=59 // pred_check_branch
          %435 = sbr.rel (%p433) target = $region80
        $region79: #{tpu_custom_call.1} parent=59 // pred_region
          %436 = dma.done [#allocation9], 1024
        $region80: #{tpu_custom_call.1} parent=59 // pred_fallthru
          _
        // Predicated region
        $region81: #{tpu_custom_call.1} parent=59 // pred_check
          %p437 = pneg %p247
        $region82: #{tpu_custom_call.1} parent=59 // pred_check_branch
          %439 = sbr.rel (%p437) target = $region84
        $region83: #{tpu_custom_call.1} parent=59 // pred_region
          %440 = dma.done [#allocation12], 1024
        $region84: #{tpu_custom_call.1} parent=59 // pred_fallthru
          _
        %s441 = sand.u32 %s40, 1
        %s442 = scalar_lea.sflag [#allocation3], %s441
        %s443 = sand.u32 %s40, 1
        %s444 = smul.addr %s443, 16
        %s445 = scalar_lea.vmem [#allocation2], %s444
        %p446 = pneg %p53
        %p447 = pneg %p50
        %s448 = sand.u32 %s32, 1
        %s449 = scalar_lea.sflag [#allocation6], %s448
        %s450 = sand.u32 %s66, 1
        %s451 = smul.addr %s450, 16
        %s452 = scalar_lea.vmem [#allocation5], %s451
        %p453 = pneg %p79
        %p454 = pneg %p76
        %p455 = pneg %p100
        %p456 = pneg %p97
        %p457 = pneg %p121
        %p458 = pneg %p118
        %p459 = pneg %p142
        %p460 = pneg %p139
        %p461 = pneg %p163
        %p462 = pneg %p160
        %p463 = pneg %p184
        %p464 = pneg %p181
        %p465 = pneg %p205
        %p466 = pneg %p202
        %p467 = pneg %p226
        %p468 = pneg %p223
        %p469 = pneg %p247
        %p470 = pneg %p244
        %p471 = pneg %p273
        %p472 = pneg %p270
        %s473 = sand.u32 %s260, 1
        %s474 = scalar_lea.sflag [#allocation4], %s473
        %s475 = sand.u32 %s260, 1
        %s476 = smul.addr %s475, 16
        %s477 = scalar_lea.vmem [#allocation13], %s476
        %s478 = smul.u32 2, %s32
        %s479 = smul.u32 2, %s32
        %s480 = smul.u32 2, %s32
        %v482 = vld [vmem:[%s2] sm:$0x1]
        %v483 = vld [vmem:[%s3] sm:$0x1]
        %v484 = vld [vmem:[%s4] sm:$0x1]
        %v485 = vld [vmem:[%s5] sm:$0x1]
        %v486 = vld [vmem:[%s411] sm:$0xf]
        %v487 = vld [vmem:[%s411 + $0x4] sm:$0xf]
        %v488 = vld [vmem:[%s411 + $0x8] sm:$0xf]
        %v489 = vld [vmem:[%s411 + $0xc] sm:$0xf]
        %v490 = vunpack.c.l.bf16 %v486
        %v491 = vunpack.c.l.bf16 %v487
        %v492 = vunpack.c.l.bf16 %v488
        %v493 = vunpack.c.l.bf16 %v489
        %494 = vadd.xlane.f32.xlu0 %v490
        %v495 = vpop.xlane.xlu0 %494
        %496 = vadd.xlane.f32.xlu0 %v491
        %v497 = vpop.xlane.xlu0 %496
        %498 = vadd.xlane.f32.xlu0 %v492
        %v499 = vpop.xlane.xlu0 %498
        %500 = vadd.xlane.f32.xlu0 %v493
        %v501 = vpop.xlane.xlu0 %500
        %v502 = vrcp.pop 128.0
        %v503 = vmul.f32 %v495, %v502
        %v504 = vmul.f32 %v497, %v502
        %v505 = vmul.f32 %v499, %v502
        %v506 = vmul.f32 %v501, %v502
        %v507 = vsub.f32 %v490, %v503
        %v508 = vsub.f32 %v491, %v504
        %v509 = vsub.f32 %v492, %v505
        %v510 = vsub.f32 %v493, %v506
        %v511 = vmul.f32 %v507, %v507
        %v512 = vmul.f32 %v508, %v508
        %v513 = vmul.f32 %v509, %v509
        %v514 = vmul.f32 %v510, %v510
        %515 = vadd.xlane.f32.xlu0 %v511
        %v516 = vpop.xlane.xlu0 %515
        %517 = vadd.xlane.f32.xlu0 %v512
        %v518 = vpop.xlane.xlu0 %517
        %519 = vadd.xlane.f32.xlu0 %v513
        %v520 = vpop.xlane.xlu0 %519
        %521 = vadd.xlane.f32.xlu0 %v514
        %v522 = vpop.xlane.xlu0 %521
        %v523 = vmul.f32 %v516, %v502
        %v524 = vmul.f32 %v518, %v502
        %v525 = vmul.f32 %v520, %v502
        %v526 = vmul.f32 %v522, %v502
        %v527 = vadd.f32 %v523, 1e-05
        %v528 = vadd.f32 %v524, 1e-05
        %v529 = vadd.f32 %v525, 1e-05
        %v530 = vadd.f32 %v526, 1e-05
        %v531 = vrsqrt.pop %v527
        %v532 = vrsqrt.pop %v528
        %v533 = vrsqrt.pop %v529
        %v534 = vrsqrt.pop %v530
        %v535 = vmul.f32 %v507, %v531
        %v536 = vmul.f32 %v508, %v532
        %v537 = vmul.f32 %v509, %v533
        %v538 = vmul.f32 %v510, %v534
        %v540 = vlaneseq
        %v541 = vshrl.u32 %v540, 7
        %v542 = vsub.s32 0, %v541
        %v543 = vrot.slane %v482, %v542
        %v545 = vmul.f32 %v535, %v543
        %v546 = vmul.f32 %v536, %v543
        %v547 = vmul.f32 %v537, %v543
        %v548 = vmul.f32 %v538, %v543
        %v550 = vlaneseq
        %v551 = vshrl.u32 %v550, 7
        %v552 = vsub.s32 0, %v551
        %v553 = vrot.slane %v483, %v552
        %v555 = vadd.f32 %v545, %v553
        %v556 = vadd.f32 %v546, %v553
        %v557 = vadd.f32 %v547, %v553
        %v558 = vadd.f32 %v548, %v553
        %v559 = vpack.c.bf16 %v556, %v555
        %v560 = vpack.c.bf16 %v558, %v557
        %v561 = vld [vmem:[%s420] sm:$0xf]
        %v562 = vld [vmem:[%s420 + $0x4] sm:$0xf]
        %v563 = vld [vmem:[%s420 + $0x8] sm:$0xf]
        %v564 = vld [vmem:[%s420 + $0xc] sm:$0xf]
        %v565 = vunpack.c.l.bf16 %v561
        %v566 = vunpack.c.l.bf16 %v562
        %v567 = vunpack.c.l.bf16 %v563
        %v568 = vunpack.c.l.bf16 %v564
        %569 = vadd.xlane.f32.xlu0 %v565
        %v570 = vpop.xlane.xlu0 %569
        %571 = vadd.xlane.f32.xlu0 %v566
        %v572 = vpop.xlane.xlu0 %571
        %573 = vadd.xlane.f32.xlu0 %v567
        %v574 = vpop.xlane.xlu0 %573
        %575 = vadd.xlane.f32.xlu0 %v568
        %v576 = vpop.xlane.xlu0 %575
        %v577 = vmul.f32 %v570, %v502
        %v578 = vmul.f32 %v572, %v502
        %v579 = vmul.f32 %v574, %v502
        %v580 = vmul.f32 %v576, %v502
        %v581 = vsub.f32 %v565, %v577
        %v582 = vsub.f32 %v566, %v578
        %v583 = vsub.f32 %v567, %v579
        %v584 = vsub.f32 %v568, %v580
        %v585 = vmul.f32 %v581, %v581
        %v586 = vmul.f32 %v582, %v582
        %v587 = vmul.f32 %v583, %v583
        %v588 = vmul.f32 %v584, %v584
        %589 = vadd.xlane.f32.xlu0 %v585
        %v590 = vpop.xlane.xlu0 %589
        %591 = vadd.xlane.f32.xlu0 %v586
        %v592 = vpop.xlane.xlu0 %591
        %593 = vadd.xlane.f32.xlu0 %v587
        %v594 = vpop.xlane.xlu0 %593
        %595 = vadd.xlane.f32.xlu0 %v588
        %v596 = vpop.xlane.xlu0 %595
        %v597 = vmul.f32 %v590, %v502
        %v598 = vmul.f32 %v592, %v502
        %v599 = vmul.f32 %v594, %v502
        %v600 = vmul.f32 %v596, %v502
        %v601 = vadd.f32 %v597, 1e-05
        %v602 = vadd.f32 %v598, 1e-05
        %v603 = vadd.f32 %v599, 1e-05
        %v604 = vadd.f32 %v600, 1e-05
        %v605 = vrsqrt.pop %v601
        %v606 = vrsqrt.pop %v602
        %v607 = vrsqrt.pop %v603
        %v608 = vrsqrt.pop %v604
        %v609 = vmul.f32 %v581, %v605
        %v610 = vmul.f32 %v582, %v606
        %v611 = vmul.f32 %v583, %v607
        %v612 = vmul.f32 %v584, %v608
        %v614 = vlaneseq
        %v615 = vshrl.u32 %v614, 7
        %v616 = vsub.s32 0, %v615
        %v617 = vrot.slane %v484, %v616
        %v619 = vmul.f32 %v609, %v617
        %v620 = vmul.f32 %v610, %v617
        %v621 = vmul.f32 %v611, %v617
        %v622 = vmul.f32 %v612, %v617
        %v624 = vlaneseq
        %v625 = vshrl.u32 %v624, 7
        %v626 = vsub.s32 0, %v625
        %v627 = vrot.slane %v485, %v626
        %v629 = vadd.f32 %v619, %v627
        %v630 = vadd.f32 %v620, %v627
        %v631 = vadd.f32 %v621, %v627
        %v632 = vadd.f32 %v622, %v627
        %v633 = vpack.c.bf16 %v630, %v629
        %v634 = vpack.c.bf16 %v632, %v631
        %v635 = vld [vmem:[#allocation7] sm:$0xf]
        %v636 = vld [vmem:[#allocation7 + $0x4] sm:$0xf]
        %v637 = vld [vmem:[#allocation7 + $0x8] sm:$0xf]
        %v638 = vld [vmem:[#allocation7 + $0xc] sm:$0xf]
        %v639 = vld [vmem:[#allocation7 + $0x10] sm:$0xf]
        %v640 = vld [vmem:[#allocation7 + $0x14] sm:$0xf]
        %v641 = vld [vmem:[#allocation7 + $0x18] sm:$0xf]
        %v642 = vld [vmem:[#allocation7 + $0x1c] sm:$0xf]
        %v643 = vld [vmem:[#allocation7 + $0x20] sm:$0xf]
        %v644 = vld [vmem:[#allocation7 + $0x24] sm:$0xf]
        %v645 = vld [vmem:[#allocation7 + $0x28] sm:$0xf]
        %v646 = vld [vmem:[#allocation7 + $0x2c] sm:$0xf]
        %v647 = vld [vmem:[#allocation7 + $0x30] sm:$0xf]
        %v648 = vld [vmem:[#allocation7 + $0x34] sm:$0xf]
        %v649 = vld [vmem:[#allocation7 + $0x38] sm:$0xf]
        %v650 = vld [vmem:[#allocation7 + $0x3c] sm:$0xf]
        %v667 = vunpack.c.l.b16 %v635
        %v668 = vunpack.c.l.b16 %v636
        %v669 = vunpack.c.l.b16 %v637
        %v670 = vunpack.c.l.b16 %v638
        %v671 = vunpack.c.l.b16 %v639
        %v672 = vunpack.c.l.b16 %v640
        %v673 = vunpack.c.l.b16 %v641
        %v674 = vunpack.c.l.b16 %v642
        %v675 = vunpack.c.l.b16 %v643
        %v676 = vunpack.c.l.b16 %v644
        %v677 = vunpack.c.l.b16 %v645
        %v678 = vunpack.c.l.b16 %v646
        %v679 = vunpack.c.l.b16 %v647
        %v680 = vunpack.c.l.b16 %v648
        %v681 = vunpack.c.l.b16 %v649
        %v682 = vunpack.c.l.b16 %v650
        %v683 = vpack.c.b16 %v668, %v667
        %v684 = vpack.c.b16 %v670, %v669
        %v685 = vpack.c.b16 %v672, %v671
        %v686 = vpack.c.b16 %v674, %v673
        %v687 = vpack.c.b16 %v676, %v675
        %v688 = vpack.c.b16 %v678, %v677
        %v689 = vpack.c.b16 %v680, %v679
        %v690 = vpack.c.b16 %v682, %v681
        %699 = vmatprep.subr.bf16.mxu0 0
        %700 = vmatpush1.bf16.msra.mxu0 %v683
        %701 = vmatprep.subr.bf16.mxu0 0
        %702 = vmatpush1.bf16.msra.mxu0 %v684
        %703 = vmatprep.subr.bf16.mxu0 0
        %704 = vmatpush1.bf16.msra.mxu0 %v685
        %705 = vmatprep.subr.bf16.mxu0 0
        %706 = vmatpush1.bf16.msra.mxu0 %v686
        %707 = vmatprep.subr.bf16.mxu0 0
        %708 = vmatpush1.bf16.msra.mxu0 %v687
        %709 = vmatprep.subr.bf16.mxu0 0
        %710 = vmatpush1.bf16.msra.mxu0 %v688
        %711 = vmatprep.subr.bf16.mxu0 0
        %712 = vmatpush1.bf16.msra.mxu0 %v689
        %713 = vmatprep.subr.bf16.mxu0 0
        %714 = vmatpush1.bf16.msra.mxu0 %v690
        %715 = vmatprep.subr.bf16.mxu0 0
        %716 = vmatpush1.bf16.msra.mxu0 0
        %717 = vmatprep.subr.bf16.mxu0 0
        %718 = vmatpush1.bf16.msra.mxu0 0
        %719 = vmatprep.subr.bf16.mxu0 0
        %720 = vmatpush1.bf16.msra.mxu0 0
        %721 = vmatprep.subr.bf16.mxu0 0
        %722 = vmatpush1.bf16.msra.mxu0 0
        %723 = vmatprep.subr.bf16.mxu0 0
        %724 = vmatpush1.bf16.msra.mxu0 0
        %725 = vmatprep.subr.bf16.mxu0 0
        %726 = vmatpush1.bf16.msra.mxu0 0
        %727 = vmatprep.subr.bf16.mxu0 0
        %728 = vmatpush1.bf16.msra.mxu0 0
        %729 = vmatprep.subr.bf16.mxu0 0
        %730 = vmatpush1.bf16.msra.mxu0 0
        %731 = vmatprep.mubr.bf16.mxu0 0
        %732 = vmatmul.mubr.bf16.gmra.mrb[0].mxu0 %v633
        %v733 = vpop.f32.mrb[0].mxu0
        %v734 = vadd.f32 0.0, %v733
        %v735 = vpop.f32.mrb[0].mxu0
        %v736 = vpop.f32.mrb[0].mxu0
        %v737 = vadd.f32 0.0, %v736
        %v738 = vpop.f32.mrb[0].mxu0
        %739 = vmatprep.mubr.bf16.mxu0 0
        %740 = vmatmul.mubr.bf16.gmra.mrb[0].mxu0 %v634
        %v741 = vpop.f32.mrb[0].mxu0
        %v742 = vadd.f32 0.0, %v741
        %v743 = vpop.f32.mrb[0].mxu0
        %v744 = vpop.f32.mrb[0].mxu0
        %v745 = vadd.f32 0.0, %v744
        %v746 = vpop.f32.mrb[0].mxu0
        %747 = vdwg.mxu0
        %v748 = vpack.c.bf16 %v737, %v734
        %v749 = vpack.c.bf16 %v745, %v742
        %v750 = vld [vmem:[#allocation8] sm:$0xf]
        %v751 = vld [vmem:[#allocation8 + $0x4] sm:$0xf]
        %v752 = vld [vmem:[#allocation8 + $0x8] sm:$0xf]
        %v753 = vld [vmem:[#allocation8 + $0xc] sm:$0xf]
        %v754 = vld [vmem:[#allocation8 + $0x10] sm:$0xf]
        %v755 = vld [vmem:[#allocation8 + $0x14] sm:$0xf]
        %v756 = vld [vmem:[#allocation8 + $0x18] sm:$0xf]
        %v757 = vld [vmem:[#allocation8 + $0x1c] sm:$0xf]
        %v758 = vld [vmem:[#allocation8 + $0x20] sm:$0xf]
        %v759 = vld [vmem:[#allocation8 + $0x24] sm:$0xf]
        %v760 = vld [vmem:[#allocation8 + $0x28] sm:$0xf]
        %v761 = vld [vmem:[#allocation8 + $0x2c] sm:$0xf]
        %v762 = vld [vmem:[#allocation8 + $0x30] sm:$0xf]
        %v763 = vld [vmem:[#allocation8 + $0x34] sm:$0xf]
        %v764 = vld [vmem:[#allocation8 + $0x38] sm:$0xf]
        %v765 = vld [vmem:[#allocation8 + $0x3c] sm:$0xf]
        %v782 = vunpack.c.l.b16 %v750
        %v783 = vunpack.c.l.b16 %v751
        %v784 = vunpack.c.l.b16 %v752
        %v785 = vunpack.c.l.b16 %v753
        %v786 = vunpack.c.l.b16 %v754
        %v787 = vunpack.c.l.b16 %v755
        %v788 = vunpack.c.l.b16 %v756
        %v789 = vunpack.c.l.b16 %v757
        %v790 = vunpack.c.l.b16 %v758
        %v791 = vunpack.c.l.b16 %v759
        %v792 = vunpack.c.l.b16 %v760
        %v793 = vunpack.c.l.b16 %v761
        %v794 = vunpack.c.l.b16 %v762
        %v795 = vunpack.c.l.b16 %v763
        %v796 = vunpack.c.l.b16 %v764
        %v797 = vunpack.c.l.b16 %v765
        %v798 = vpack.c.b16 %v783, %v782
        %v799 = vpack.c.b16 %v785, %v784
        %v800 = vpack.c.b16 %v787, %v786
        %v801 = vpack.c.b16 %v789, %v788
        %v802 = vpack.c.b16 %v791, %v790
        %v803 = vpack.c.b16 %v793, %v792
        %v804 = vpack.c.b16 %v795, %v794
        %v805 = vpack.c.b16 %v797, %v796
        %814 = vmatprep.subr.bf16.mxu0 0
        %815 = vmatpush1.bf16.msra.mxu0 %v798
        %816 = vmatprep.subr.bf16.mxu0 0
        %817 = vmatpush1.bf16.msra.mxu0 %v799
        %818 = vmatprep.subr.bf16.mxu0 0
        %819 = vmatpush1.bf16.msra.mxu0 %v800
        %820 = vmatprep.subr.bf16.mxu0 0
        %821 = vmatpush1.bf16.msra.mxu0 %v801
        %822 = vmatprep.subr.bf16.mxu0 0
        %823 = vmatpush1.bf16.msra.mxu0 %v802
        %824 = vmatprep.subr.bf16.mxu0 0
        %825 = vmatpush1.bf16.msra.mxu0 %v803
        %826 = vmatprep.subr.bf16.mxu0 0
        %827 = vmatpush1.bf16.msra.mxu0 %v804
        %828 = vmatprep.subr.bf16.mxu0 0
        %829 = vmatpush1.bf16.msra.mxu0 %v805
        %830 = vmatprep.subr.bf16.mxu0 0
        %831 = vmatpush1.bf16.msra.mxu0 0
        %832 = vmatprep.subr.bf16.mxu0 0
        %833 = vmatpush1.bf16.msra.mxu0 0
        %834 = vmatprep.subr.bf16.mxu0 0
        %835 = vmatpush1.bf16.msra.mxu0 0
        %836 = vmatprep.subr.bf16.mxu0 0
        %837 = vmatpush1.bf16.msra.mxu0 0
        %838 = vmatprep.subr.bf16.mxu0 0
        %839 = vmatpush1.bf16.msra.mxu0 0
        %840 = vmatprep.subr.bf16.mxu0 0
        %841 = vmatpush1.bf16.msra.mxu0 0
        %842 = vmatprep.subr.bf16.mxu0 0
        %843 = vmatpush1.bf16.msra.mxu0 0
        %844 = vmatprep.subr.bf16.mxu0 0
        %845 = vmatpush1.bf16.msra.mxu0 0
        %846 = vmatprep.mubr.bf16.mxu0 0
        %847 = vmatmul.mubr.bf16.gmra.mrb[0].mxu0 %v559
        %v848 = vpop.f32.mrb[0].mxu0
        %v849 = vadd.f32 0.0, %v848
        %v850 = vpop.f32.mrb[0].mxu0
        %v851 = vpop.f32.mrb[0].mxu0
        %v852 = vadd.f32 0.0, %v851
        %v853 = vpop.f32.mrb[0].mxu0
        %854 = vmatprep.mubr.bf16.mxu0 0
        %855 = vmatmul.mubr.bf16.gmra.mrb[0].mxu0 %v633
        %v856 = vpop.f32.mrb[0].mxu0
        %v857 = vadd.f32 0.0, %v856
        %v858 = vpop.f32.mrb[0].mxu0
        %v859 = vpop.f32.mrb[0].mxu0
        %v860 = vadd.f32 0.0, %v859
        %v861 = vpop.f32.mrb[0].mxu0
        %862 = vmatprep.mubr.bf16.mxu0 0
        %863 = vmatmul.mubr.bf16.gmra.mrb[0].mxu0 %v560
        %v864 = vpop.f32.mrb[0].mxu0
        %v865 = vadd.f32 0.0, %v864
        %v866 = vpop.f32.mrb[0].mxu0
        %v867 = vpop.f32.mrb[0].mxu0
        %v868 = vadd.f32 0.0, %v867
        %v869 = vpop.f32.mrb[0].mxu0
        %870 = vmatprep.mubr.bf16.mxu0 0
        %871 = vmatmul.mubr.bf16.gmra.mrb[0].mxu0 %v634
        %v872 = vpop.f32.mrb[0].mxu0
        %v873 = vadd.f32 0.0, %v872
        %v874 = vpop.f32.mrb[0].mxu0
        %v875 = vpop.f32.mrb[0].mxu0
        %v876 = vadd.f32 0.0, %v875
        %v877 = vpop.f32.mrb[0].mxu0
        %878 = vdwg.mxu0
        %v879 = vpack.c.bf16 %v852, %v849
        %v880 = vpack.c.bf16 %v860, %v857
        %v881 = vpack.c.bf16 %v868, %v865
        %v882 = vpack.c.bf16 %v876, %v873
        %v883 = vld [vmem:[#allocation10] sm:$0xf]
        %v884 = vld [vmem:[#allocation10 + $0x4] sm:$0xf]
        %v885 = vld [vmem:[#allocation10 + $0x8] sm:$0xf]
        %v886 = vld [vmem:[#allocation10 + $0xc] sm:$0xf]
        %v887 = vld [vmem:[#allocation10 + $0x10] sm:$0xf]
        %v888 = vld [vmem:[#allocation10 + $0x14] sm:$0xf]
        %v889 = vld [vmem:[#allocation10 + $0x18] sm:$0xf]
        %v890 = vld [vmem:[#allocation10 + $0x1c] sm:$0xf]
        %v891 = vld [vmem:[#allocation10 + $0x20] sm:$0xf]
        %v892 = vld [vmem:[#allocation10 + $0x24] sm:$0xf]
        %v893 = vld [vmem:[#allocation10 + $0x28] sm:$0xf]
        %v894 = vld [vmem:[#allocation10 + $0x2c] sm:$0xf]
        %v895 = vld [vmem:[#allocation10 + $0x30] sm:$0xf]
        %v896 = vld [vmem:[#allocation10 + $0x34] sm:$0xf]
        %v897 = vld [vmem:[#allocation10 + $0x38] sm:$0xf]
        %v898 = vld [vmem:[#allocation10 + $0x3c] sm:$0xf]
        %v915 = vunpack.c.l.b16 %v883
        %v916 = vunpack.c.l.b16 %v884
        %v917 = vunpack.c.l.b16 %v885
        %v918 = vunpack.c.l.b16 %v886
        %v919 = vunpack.c.l.b16 %v887
        %v920 = vunpack.c.l.b16 %v888
        %v921 = vunpack.c.l.b16 %v889
        %v922 = vunpack.c.l.b16 %v890
        %v923 = vunpack.c.l.b16 %v891
        %v924 = vunpack.c.l.b16 %v892
        %v925 = vunpack.c.l.b16 %v893
        %v926 = vunpack.c.l.b16 %v894
        %v927 = vunpack.c.l.b16 %v895
        %v928 = vunpack.c.l.b16 %v896
        %v929 = vunpack.c.l.b16 %v897
        %v930 = vunpack.c.l.b16 %v898
        %v931 = vpack.c.b16 %v916, %v915
        %v932 = vpack.c.b16 %v918, %v917
        %v933 = vpack.c.b16 %v920, %v919
        %v934 = vpack.c.b16 %v922, %v921
        %v935 = vpack.c.b16 %v924, %v923
        %v936 = vpack.c.b16 %v926, %v925
        %v937 = vpack.c.b16 %v928, %v927
        %v938 = vpack.c.b16 %v930, %v929
        %947 = vmatprep.subr.bf16.mxu0 0
        %948 = vmatpush1.bf16.msra.mxu0 %v931
        %949 = vmatprep.subr.bf16.mxu0 0
        %950 = vmatpush1.bf16.msra.mxu0 %v932
        %951 = vmatprep.subr.bf16.mxu0 0
        %952 = vmatpush1.bf16.msra.mxu0 %v933
        %953 = vmatprep.subr.bf16.mxu0 0
        %954 = vmatpush1.bf16.msra.mxu0 %v934
        %955 = vmatprep.subr.bf16.mxu0 0
        %956 = vmatpush1.bf16.msra.mxu0 %v935
        %957 = vmatprep.subr.bf16.mxu0 0
        %958 = vmatpush1.bf16.msra.mxu0 %v936
        %959 = vmatprep.subr.bf16.mxu0 0
        %960 = vmatpush1.bf16.msra.mxu0 %v937
        %961 = vmatprep.subr.bf16.mxu0 0
        %962 = vmatpush1.bf16.msra.mxu0 %v938
        %963 = vmatprep.subr.bf16.mxu0 0
        %964 = vmatpush1.bf16.msra.mxu0 0
        %965 = vmatprep.subr.bf16.mxu0 0
        %966 = vmatpush1.bf16.msra.mxu0 0
        %967 = vmatprep.subr.bf16.mxu0 0
        %968 = vmatpush1.bf16.msra.mxu0 0
        %969 = vmatprep.subr.bf16.mxu0 0
        %970 = vmatpush1.bf16.msra.mxu0 0
        %971 = vmatprep.subr.bf16.mxu0 0
        %972 = vmatpush1.bf16.msra.mxu0 0
        %973 = vmatprep.subr.bf16.mxu0 0
        %974 = vmatpush1.bf16.msra.mxu0 0
        %975 = vmatprep.subr.bf16.mxu0 0
        %976 = vmatpush1.bf16.msra.mxu0 0
        %977 = vmatprep.subr.bf16.mxu0 0
        %978 = vmatpush1.bf16.msra.mxu0 0
        %979 = vmatprep.mubr.bf16.mxu0 0
        %980 = vmatmul.mubr.bf16.gmra.mrb[0].mxu0 %v559
        %v981 = vpop.f32.mrb[0].mxu0
        %v982 = vadd.f32 0.0, %v981
        %v983 = vpop.f32.mrb[0].mxu0
        %v984 = vpop.f32.mrb[0].mxu0
        %v985 = vadd.f32 0.0, %v984
        %v986 = vpop.f32.mrb[0].mxu0
        %987 = vmatprep.mubr.bf16.mxu0 0
        %988 = vmatmul.mubr.bf16.gmra.mrb[0].mxu0 %v633
        %v989 = vpop.f32.mrb[0].mxu0
        %v990 = vadd.f32 0.0, %v989
        %v991 = vpop.f32.mrb[0].mxu0
        %v992 = vpop.f32.mrb[0].mxu0
        %v993 = vadd.f32 0.0, %v992
        %v994 = vpop.f32.mrb[0].mxu0
        %995 = vmatprep.mubr.bf16.mxu0 0
        %996 = vmatmul.mubr.bf16.gmra.mrb[0].mxu0 %v560
        %v997 = vpop.f32.mrb[0].mxu0
        %v998 = vadd.f32 0.0, %v997
        %v999 = vpop.f32.mrb[0].mxu0
        %v1000 = vpop.f32.mrb[0].mxu0
        %v1001 = vadd.f32 0.0, %v1000
        %v1002 = vpop.f32.mrb[0].mxu0
        %1003 = vmatprep.mubr.bf16.mxu0 0
        %1004 = vmatmul.mubr.bf16.gmra.mrb[0].mxu0 %v634
        %v1005 = vpop.f32.mrb[0].mxu0
        %v1006 = vadd.f32 0.0, %v1005
        %v1007 = vpop.f32.mrb[0].mxu0
        %v1008 = vpop.f32.mrb[0].mxu0
        %v1009 = vadd.f32 0.0, %v1008
        %v1010 = vpop.f32.mrb[0].mxu0
        %1011 = vdwg.mxu0
        %v1012 = vpack.c.bf16 %v985, %v982
        %v1013 = vpack.c.bf16 %v993, %v990
        %v1014 = vpack.c.bf16 %v1001, %v998
        %v1015 = vpack.c.bf16 %v1009, %v1006
        %1018 = vrot.lane.b32.xlu0 %v748, 96
        %v1019 = vpop.permute.xlu0 %1018
        %1020 = vrot.lane.b32.xlu0 %v749, 96
        %v1021 = vpop.permute.xlu0 %1020
        %1022 = vrot.lane.b32.xlu0 %v748, 64
        %v1023 = vpop.permute.xlu0 %1022
        %1024 = vrot.lane.b32.xlu0 %v749, 64
        %v1025 = vpop.permute.xlu0 %1024
        %1026 = vrot.lane.b32.xlu0 %v748, 32
        %v1027 = vpop.permute.xlu0 %1026
        %1028 = vrot.lane.b32.xlu0 %v749, 32
        %v1029 = vpop.permute.xlu0 %1028
        %v1032 = vpack.i.b16 %v1019, %v748
        %v1034 = vshrl.u32 %v748, 16
        %v1035 = vshrl.u32 %v1019, 16
        %v1036 = vpack.i.b16 %v1035, %v1034
        %v1040 = vpack.i.b16 %v1027, %v1023
        %v1042 = vshrl.u32 %v1023, 16
        %v1043 = vshrl.u32 %v1027, 16
        %v1044 = vpack.i.b16 %v1043, %v1042
        %v1047 = vpack.i.b16 0, 0
        %v1049 = vshrl.u32 0, 16
        %v1050 = vpack.i.b16 %v1049, %v1049
        %v1054 = vpack.i.b16 %v1021, %v749
        %v1056 = vshrl.u32 %v749, 16
        %v1057 = vshrl.u32 %v1021, 16
        %v1058 = vpack.i.b16 %v1057, %v1056
        %v1062 = vpack.i.b16 %v1029, %v1025
        %v1064 = vshrl.u32 %v1025, 16
        %v1065 = vshrl.u32 %v1029, 16
        %v1066 = vpack.i.b16 %v1065, %v1064
        %v1068 = vcombine.high %v1032, %v1047
        %v1070 = vunpack.c.l.s4 1983009808
        %v1071 = vunpack.c.0.s8 %v1070
        %v1072 = vlaneseq
        %v1073 = vshrl.u32 %v1072, 7
        %v1074 = vsub.s32 %v1071, %v1073
        %v1075 = vrot.slane %v1032, %v1074
        %v1077 = vunpack.c.l.s4 1983009808
        %v1078 = vunpack.c.0.s8 %v1077
        %v1079 = vlaneseq
        %v1080 = vshrl.u32 %v1079, 7
        %v1081 = vsub.s32 %v1078, %v1080
        %v1082 = vrot.slane %v1068, %v1081
        %v1083 = vcombine.high %v1040, %v1047
        %v1085 = vunpack.c.l.s4 1983009808
        %v1086 = vunpack.c.0.s8 %v1085
        %v1087 = vlaneseq
        %v1088 = vshrl.u32 %v1087, 7
        %v1089 = vsub.s32 %v1086, %v1088
        %v1090 = vrot.slane %v1040, %v1089
        %v1092 = vunpack.c.l.s4 1983009808
        %v1093 = vunpack.c.0.s8 %v1092
        %v1094 = vlaneseq
        %v1095 = vshrl.u32 %v1094, 7
        %v1096 = vsub.s32 %v1093, %v1095
        %v1097 = vrot.slane %v1083, %v1096
        %v1098 = vcombine.low %v1075, %v1090
        %v1099 = vcombine.high %v1075, %v1090
        %v1101 = vunpack.c.l.s4 1934713408
        %v1102 = vunpack.c.0.s8 %v1101
        %v1103 = vlaneseq
        %v1104 = vshrl.u32 %v1103, 7
        %v1105 = vsub.s32 %v1102, %v1104
        %v1106 = vrot.slane %v1098, %v1105
        %v1108 = vunpack.c.l.s4 1934713408
        %v1109 = vunpack.c.0.s8 %v1108
        %v1110 = vlaneseq
        %v1111 = vshrl.u32 %v1110, 7
        %v1112 = vsub.s32 %v1109, %v1111
        %v1113 = vrot.slane %v1099, %v1112
        %v1114 = vcombine.low %v1082, %v1097
        %v1115 = vcombine.high %v1082, %v1097
        %v1117 = vunpack.c.l.s4 1934713408
        %v1118 = vunpack.c.0.s8 %v1117
        %v1119 = vlaneseq
        %v1120 = vshrl.u32 %v1119, 7
        %v1121 = vsub.s32 %v1118, %v1120
        %v1122 = vrot.slane %v1114, %v1121
        %v1124 = vunpack.c.l.s4 1934713408
        %v1125 = vunpack.c.0.s8 %v1124
        %v1126 = vlaneseq
        %v1127 = vshrl.u32 %v1126, 7
        %v1128 = vsub.s32 %v1125, %v1127
        %v1129 = vrot.slane %v1115, %v1128
        %v1130 = vcombine.high %v1106, 0
        %v1131 = vcombine.high %v1113, 0
        %v1132 = vcombine.high %v1122, 0
        %v1133 = vcombine.high %v1129, 0
        %v1134 = vcombine.high %v1036, %v1050
        %v1136 = vunpack.c.l.s4 1983009808
        %v1137 = vunpack.c.0.s8 %v1136
        %v1138 = vlaneseq
        %v1139 = vshrl.u32 %v1138, 7
        %v1140 = vsub.s32 %v1137, %v1139
        %v1141 = vrot.slane %v1036, %v1140
        %v1143 = vunpack.c.l.s4 1983009808
        %v1144 = vunpack.c.0.s8 %v1143
        %v1145 = vlaneseq
        %v1146 = vshrl.u32 %v1145, 7
        %v1147 = vsub.s32 %v1144, %v1146
        %v1148 = vrot.slane %v1134, %v1147
        %v1149 = vcombine.high %v1044, %v1050
        %v1151 = vunpack.c.l.s4 1983009808
        %v1152 = vunpack.c.0.s8 %v1151
        %v1153 = vlaneseq
        %v1154 = vshrl.u32 %v1153, 7
        %v1155 = vsub.s32 %v1152, %v1154
        %v1156 = vrot.slane %v1044, %v1155
        %v1158 = vunpack.c.l.s4 1983009808
        %v1159 = vunpack.c.0.s8 %v1158
        %v1160 = vlaneseq
        %v1161 = vshrl.u32 %v1160, 7
        %v1162 = vsub.s32 %v1159, %v1161
        %v1163 = vrot.slane %v1149, %v1162
        %v1164 = vcombine.low %v1141, %v1156
        %v1165 = vcombine.high %v1141, %v1156
        %v1167 = vunpack.c.l.s4 1934713408
        %v1168 = vunpack.c.0.s8 %v1167
        %v1169 = vlaneseq
        %v1170 = vshrl.u32 %v1169, 7
        %v1171 = vsub.s32 %v1168, %v1170
        %v1172 = vrot.slane %v1164, %v1171
        %v1174 = vunpack.c.l.s4 1934713408
        %v1175 = vunpack.c.0.s8 %v1174
        %v1176 = vlaneseq
        %v1177 = vshrl.u32 %v1176, 7
        %v1178 = vsub.s32 %v1175, %v1177
        %v1179 = vrot.slane %v1165, %v1178
        %v1180 = vcombine.low %v1148, %v1163
        %v1181 = vcombine.high %v1148, %v1163
        %v1183 = vunpack.c.l.s4 1934713408
        %v1184 = vunpack.c.0.s8 %v1183
        %v1185 = vlaneseq
        %v1186 = vshrl.u32 %v1185, 7
        %v1187 = vsub.s32 %v1184, %v1186
        %v1188 = vrot.slane %v1180, %v1187
        %v1190 = vunpack.c.l.s4 1934713408
        %v1191 = vunpack.c.0.s8 %v1190
        %v1192 = vlaneseq
        %v1193 = vshrl.u32 %v1192, 7
        %v1194 = vsub.s32 %v1191, %v1193
        %v1195 = vrot.slane %v1181, %v1194
        %v1196 = vcombine.high %v1172, 0
        %v1197 = vcombine.high %v1179, 0
        %v1198 = vcombine.high %v1188, 0
        %v1199 = vcombine.high %v1195, 0
        %v1200 = vcombine.high %v1054, %v1047
        %v1202 = vunpack.c.l.s4 1983009808
        %v1203 = vunpack.c.0.s8 %v1202
        %v1204 = vlaneseq
        %v1205 = vshrl.u32 %v1204, 7
        %v1206 = vsub.s32 %v1203, %v1205
        %v1207 = vrot.slane %v1054, %v1206
        %v1209 = vunpack.c.l.s4 1983009808
        %v1210 = vunpack.c.0.s8 %v1209
        %v1211 = vlaneseq
        %v1212 = vshrl.u32 %v1211, 7
        %v1213 = vsub.s32 %v1210, %v1212
        %v1214 = vrot.slane %v1200, %v1213
        %v1215 = vcombine.high %v1062, %v1047
        %v1217 = vunpack.c.l.s4 1983009808
        %v1218 = vunpack.c.0.s8 %v1217
        %v1219 = vlaneseq
        %v1220 = vshrl.u32 %v1219, 7
        %v1221 = vsub.s32 %v1218, %v1220
        %v1222 = vrot.slane %v1062, %v1221
        %v1224 = vunpack.c.l.s4 1983009808
        %v1225 = vunpack.c.0.s8 %v1224
        %v1226 = vlaneseq
        %v1227 = vshrl.u32 %v1226, 7
        %v1228 = vsub.s32 %v1225, %v1227
        %v1229 = vrot.slane %v1215, %v1228
        %v1230 = vcombine.low %v1207, %v1222
        %v1231 = vcombine.high %v1207, %v1222
        %v1233 = vunpack.c.l.s4 1934713408
        %v1234 = vunpack.c.0.s8 %v1233
        %v1235 = vlaneseq
        %v1236 = vshrl.u32 %v1235, 7
        %v1237 = vsub.s32 %v1234, %v1236
        %v1238 = vrot.slane %v1230, %v1237
        %v1240 = vunpack.c.l.s4 1934713408
        %v1241 = vunpack.c.0.s8 %v1240
        %v1242 = vlaneseq
        %v1243 = vshrl.u32 %v1242, 7
        %v1244 = vsub.s32 %v1241, %v1243
        %v1245 = vrot.slane %v1231, %v1244
        %v1246 = vcombine.low %v1214, %v1229
        %v1247 = vcombine.high %v1214, %v1229
        %v1249 = vunpack.c.l.s4 1934713408
        %v1250 = vunpack.c.0.s8 %v1249
        %v1251 = vlaneseq
        %v1252 = vshrl.u32 %v1251, 7
        %v1253 = vsub.s32 %v1250, %v1252
        %v1254 = vrot.slane %v1246, %v1253
        %v1256 = vunpack.c.l.s4 1934713408
        %v1257 = vunpack.c.0.s8 %v1256
        %v1258 = vlaneseq
        %v1259 = vshrl.u32 %v1258, 7
        %v1260 = vsub.s32 %v1257, %v1259
        %v1261 = vrot.slane %v1247, %v1260
        %v1262 = vcombine.high %v1238, 0
        %v1263 = vcombine.high %v1245, 0
        %v1264 = vcombine.high %v1254, 0
        %v1265 = vcombine.high %v1261, 0
        %v1266 = vcombine.high %v1058, %v1050
        %v1268 = vunpack.c.l.s4 1983009808
        %v1269 = vunpack.c.0.s8 %v1268
        %v1270 = vlaneseq
        %v1271 = vshrl.u32 %v1270, 7
        %v1272 = vsub.s32 %v1269, %v1271
        %v1273 = vrot.slane %v1058, %v1272
        %v1275 = vunpack.c.l.s4 1983009808
        %v1276 = vunpack.c.0.s8 %v1275
        %v1277 = vlaneseq
        %v1278 = vshrl.u32 %v1277, 7
        %v1279 = vsub.s32 %v1276, %v1278
        %v1280 = vrot.slane %v1266, %v1279
        %v1281 = vcombine.high %v1066, %v1050
        %v1283 = vunpack.c.l.s4 1983009808
        %v1284 = vunpack.c.0.s8 %v1283
        %v1285 = vlaneseq
        %v1286 = vshrl.u32 %v1285, 7
        %v1287 = vsub.s32 %v1284, %v1286
        %v1288 = vrot.slane %v1066, %v1287
        %v1290 = vunpack.c.l.s4 1983009808
        %v1291 = vunpack.c.0.s8 %v1290
        %v1292 = vlaneseq
        %v1293 = vshrl.u32 %v1292, 7
        %v1294 = vsub.s32 %v1291, %v1293
        %v1295 = vrot.slane %v1281, %v1294
        %v1296 = vcombine.low %v1273, %v1288
        %v1297 = vcombine.high %v1273, %v1288
        %v1299 = vunpack.c.l.s4 1934713408
        %v1300 = vunpack.c.0.s8 %v1299
        %v1301 = vlaneseq
        %v1302 = vshrl.u32 %v1301, 7
        %v1303 = vsub.s32 %v1300, %v1302
        %v1304 = vrot.slane %v1296, %v1303
        %v1306 = vunpack.c.l.s4 1934713408
        %v1307 = vunpack.c.0.s8 %v1306
        %v1308 = vlaneseq
        %v1309 = vshrl.u32 %v1308, 7
        %v1310 = vsub.s32 %v1307, %v1309
        %v1311 = vrot.slane %v1297, %v1310
        %v1312 = vcombine.low %v1280, %v1295
        %v1313 = vcombine.high %v1280, %v1295
        %v1315 = vunpack.c.l.s4 1934713408
        %v1316 = vunpack.c.0.s8 %v1315
        %v1317 = vlaneseq
        %v1318 = vshrl.u32 %v1317, 7
        %v1319 = vsub.s32 %v1316, %v1318
        %v1320 = vrot.slane %v1312, %v1319
        %v1322 = vunpack.c.l.s4 1934713408
        %v1323 = vunpack.c.0.s8 %v1322
        %v1324 = vlaneseq
        %v1325 = vshrl.u32 %v1324, 7
        %v1326 = vsub.s32 %v1323, %v1325
        %v1327 = vrot.slane %v1313, %v1326
        %v1328 = vcombine.high %v1304, 0
        %v1329 = vcombine.high %v1311, 0
        %v1330 = vcombine.high %v1320, 0
        %v1331 = vcombine.high %v1327, 0
        %v1332 = vcombine.low %v1106, %v1113
        %v1334 = vunpack.c.l.s4 1983009808
        %v1335 = vunpack.c.0.s8 %v1334
        %v1336 = vlaneseq
        %v1337 = vshrl.u32 %v1336, 7
        %v1338 = vsub.s32 %v1335, %v1337
        %v1339 = vrot.slane %v1332, %v1338
        %v1340 = vcombine.low %v1130, %v1131
        %v1342 = vunpack.c.l.s4 1983009808
        %v1343 = vunpack.c.0.s8 %v1342
        %v1344 = vlaneseq
        %v1345 = vshrl.u32 %v1344, 7
        %v1346 = vsub.s32 %v1343, %v1345
        %v1347 = vrot.slane %v1340, %v1346
        %v1348 = vcombine.low %v1122, %v1129
        %v1350 = vunpack.c.l.s4 1983009808
        %v1351 = vunpack.c.0.s8 %v1350
        %v1352 = vlaneseq
        %v1353 = vshrl.u32 %v1352, 7
        %v1354 = vsub.s32 %v1351, %v1353
        %v1355 = vrot.slane %v1348, %v1354
        %v1356 = vcombine.low %v1132, %v1133
        %v1358 = vunpack.c.l.s4 1983009808
        %v1359 = vunpack.c.0.s8 %v1358
        %v1360 = vlaneseq
        %v1361 = vshrl.u32 %v1360, 7
        %v1362 = vsub.s32 %v1359, %v1361
        %v1363 = vrot.slane %v1356, %v1362
        %v1364 = vcombine.low %v1339, %v1347
        %v1366 = vunpack.c.l.s4 1934713408
        %v1367 = vunpack.c.0.s8 %v1366
        %v1368 = vlaneseq
        %v1369 = vshrl.u32 %v1368, 7
        %v1370 = vsub.s32 %v1367, %v1369
        %v1371 = vrot.slane %v1364, %v1370
        %v1372 = vcombine.low %v1355, %v1363
        %v1374 = vunpack.c.l.s4 1934713408
        %v1375 = vunpack.c.0.s8 %v1374
        %v1376 = vlaneseq
        %v1377 = vshrl.u32 %v1376, 7
        %v1378 = vsub.s32 %v1375, %v1377
        %v1379 = vrot.slane %v1372, %v1378
        %v1380 = vcombine.low %v1371, %v1379
        %v1381 = vcombine.high %v1371, %v1379
        %v1382 = vcombine.low %v1172, %v1179
        %v1384 = vunpack.c.l.s4 1983009808
        %v1385 = vunpack.c.0.s8 %v1384
        %v1386 = vlaneseq
        %v1387 = vshrl.u32 %v1386, 7
        %v1388 = vsub.s32 %v1385, %v1387
        %v1389 = vrot.slane %v1382, %v1388
        %v1390 = vcombine.low %v1196, %v1197
        %v1392 = vunpack.c.l.s4 1983009808
        %v1393 = vunpack.c.0.s8 %v1392
        %v1394 = vlaneseq
        %v1395 = vshrl.u32 %v1394, 7
        %v1396 = vsub.s32 %v1393, %v1395
        %v1397 = vrot.slane %v1390, %v1396
        %v1398 = vcombine.low %v1188, %v1195
        %v1400 = vunpack.c.l.s4 1983009808
        %v1401 = vunpack.c.0.s8 %v1400
        %v1402 = vlaneseq
        %v1403 = vshrl.u32 %v1402, 7
        %v1404 = vsub.s32 %v1401, %v1403
        %v1405 = vrot.slane %v1398, %v1404
        %v1406 = vcombine.low %v1198, %v1199
        %v1408 = vunpack.c.l.s4 1983009808
        %v1409 = vunpack.c.0.s8 %v1408
        %v1410 = vlaneseq
        %v1411 = vshrl.u32 %v1410, 7
        %v1412 = vsub.s32 %v1409, %v1411
        %v1413 = vrot.slane %v1406, %v1412
        %v1414 = vcombine.low %v1389, %v1397
        %v1416 = vunpack.c.l.s4 1934713408
        %v1417 = vunpack.c.0.s8 %v1416
        %v1418 = vlaneseq
        %v1419 = vshrl.u32 %v1418, 7
        %v1420 = vsub.s32 %v1417, %v1419
        %v1421 = vrot.slane %v1414, %v1420
        %v1422 = vcombine.low %v1405, %v1413
        %v1424 = vunpack.c.l.s4 1934713408
        %v1425 = vunpack.c.0.s8 %v1424
        %v1426 = vlaneseq
        %v1427 = vshrl.u32 %v1426, 7
        %v1428 = vsub.s32 %v1425, %v1427
        %v1429 = vrot.slane %v1422, %v1428
        %v1430 = vcombine.low %v1421, %v1429
        %v1431 = vcombine.high %v1421, %v1429
        %v1432 = vcombine.low %v1238, %v1245
        %v1434 = vunpack.c.l.s4 1983009808
        %v1435 = vunpack.c.0.s8 %v1434
        %v1436 = vlaneseq
        %v1437 = vshrl.u32 %v1436, 7
        %v1438 = vsub.s32 %v1435, %v1437
        %v1439 = vrot.slane %v1432, %v1438
        %v1440 = vcombine.low %v1262, %v1263
        %v1442 = vunpack.c.l.s4 1983009808
        %v1443 = vunpack.c.0.s8 %v1442
        %v1444 = vlaneseq
        %v1445 = vshrl.u32 %v1444, 7
        %v1446 = vsub.s32 %v1443, %v1445
        %v1447 = vrot.slane %v1440, %v1446
        %v1448 = vcombine.low %v1254, %v1261
        %v1450 = vunpack.c.l.s4 1983009808
        %v1451 = vunpack.c.0.s8 %v1450
        %v1452 = vlaneseq
        %v1453 = vshrl.u32 %v1452, 7
        %v1454 = vsub.s32 %v1451, %v1453
        %v1455 = vrot.slane %v1448, %v1454
        %v1456 = vcombine.low %v1264, %v1265
        %v1458 = vunpack.c.l.s4 1983009808
        %v1459 = vunpack.c.0.s8 %v1458
        %v1460 = vlaneseq
        %v1461 = vshrl.u32 %v1460, 7
        %v1462 = vsub.s32 %v1459, %v1461
        %v1463 = vrot.slane %v1456, %v1462
        %v1464 = vcombine.low %v1439, %v1447
        %v1466 = vunpack.c.l.s4 1934713408
        %v1467 = vunpack.c.0.s8 %v1466
        %v1468 = vlaneseq
        %v1469 = vshrl.u32 %v1468, 7
        %v1470 = vsub.s32 %v1467, %v1469
        %v1471 = vrot.slane %v1464, %v1470
        %v1472 = vcombine.low %v1455, %v1463
        %v1474 = vunpack.c.l.s4 1934713408
        %v1475 = vunpack.c.0.s8 %v1474
        %v1476 = vlaneseq
        %v1477 = vshrl.u32 %v1476, 7
        %v1478 = vsub.s32 %v1475, %v1477
        %v1479 = vrot.slane %v1472, %v1478
        %v1480 = vcombine.low %v1471, %v1479
        %v1481 = vcombine.high %v1471, %v1479
        %v1482 = vcombine.low %v1304, %v1311
        %v1484 = vunpack.c.l.s4 1983009808
        %v1485 = vunpack.c.0.s8 %v1484
        %v1486 = vlaneseq
        %v1487 = vshrl.u32 %v1486, 7
        %v1488 = vsub.s32 %v1485, %v1487
        %v1489 = vrot.slane %v1482, %v1488
        %v1490 = vcombine.low %v1328, %v1329
        %v1492 = vunpack.c.l.s4 1983009808
        %v1493 = vunpack.c.0.s8 %v1492
        %v1494 = vlaneseq
        %v1495 = vshrl.u32 %v1494, 7
        %v1496 = vsub.s32 %v1493, %v1495
        %v1497 = vrot.slane %v1490, %v1496
        %v1498 = vcombine.low %v1320, %v1327
        %v1500 = vunpack.c.l.s4 1983009808
        %v1501 = vunpack.c.0.s8 %v1500
        %v1502 = vlaneseq
        %v1503 = vshrl.u32 %v1502, 7
        %v1504 = vsub.s32 %v1501, %v1503
        %v1505 = vrot.slane %v1498, %v1504
        %v1506 = vcombine.low %v1330, %v1331
        %v1508 = vunpack.c.l.s4 1983009808
        %v1509 = vunpack.c.0.s8 %v1508
        %v1510 = vlaneseq
        %v1511 = vshrl.u32 %v1510, 7
        %v1512 = vsub.s32 %v1509, %v1511
        %v1513 = vrot.slane %v1506, %v1512
        %v1514 = vcombine.low %v1489, %v1497
        %v1516 = vunpack.c.l.s4 1934713408
        %v1517 = vunpack.c.0.s8 %v1516
        %v1518 = vlaneseq
        %v1519 = vshrl.u32 %v1518, 7
        %v1520 = vsub.s32 %v1517, %v1519
        %v1521 = vrot.slane %v1514, %v1520
        %v1522 = vcombine.low %v1505, %v1513
        %v1524 = vunpack.c.l.s4 1934713408
        %v1525 = vunpack.c.0.s8 %v1524
        %v1526 = vlaneseq
        %v1527 = vshrl.u32 %v1526, 7
        %v1528 = vsub.s32 %v1525, %v1527
        %v1529 = vrot.slane %v1522, %v1528
        %v1530 = vcombine.low %v1521, %v1529
        %v1531 = vcombine.high %v1521, %v1529
        %v1534 = vpack.i.b16 %v1430, %v1380
        %v1535 = vshrl.u32 %v1380, 16
        %v1536 = vshrl.u32 %v1430, 16
        %v1537 = vpack.i.b16 %v1536, %v1535
        %v1540 = vpack.i.b16 %v1431, %v1381
        %v1541 = vshrl.u32 %v1381, 16
        %v1542 = vshrl.u32 %v1431, 16
        %v1543 = vpack.i.b16 %v1542, %v1541
        %v1546 = vpack.i.b16 %v1530, %v1480
        %v1547 = vshrl.u32 %v1480, 16
        %v1548 = vshrl.u32 %v1530, 16
        %v1549 = vpack.i.b16 %v1548, %v1547
        %v1552 = vpack.i.b16 %v1531, %v1481
        %v1553 = vshrl.u32 %v1481, 16
        %v1554 = vshrl.u32 %v1531, 16
        %v1555 = vpack.i.b16 %v1554, %v1553
        %1560 = vrot.lane.b32.xlu0 %v879, 96
        %v1561 = vpop.permute.xlu0 %1560
        %1562 = vrot.lane.b32.xlu0 %v880, 96
        %v1563 = vpop.permute.xlu0 %1562
        %1564 = vrot.lane.b32.xlu0 %v881, 96
        %v1565 = vpop.permute.xlu0 %1564
        %1566 = vrot.lane.b32.xlu0 %v882, 96
        %v1567 = vpop.permute.xlu0 %1566
        %1568 = vrot.lane.b32.xlu0 %v879, 64
        %v1569 = vpop.permute.xlu0 %1568
        %1570 = vrot.lane.b32.xlu0 %v880, 64
        %v1571 = vpop.permute.xlu0 %1570
        %1572 = vrot.lane.b32.xlu0 %v881, 64
        %v1573 = vpop.permute.xlu0 %1572
        %1574 = vrot.lane.b32.xlu0 %v882, 64
        %v1575 = vpop.permute.xlu0 %1574
        %1576 = vrot.lane.b32.xlu0 %v879, 32
        %v1577 = vpop.permute.xlu0 %1576
        %1578 = vrot.lane.b32.xlu0 %v880, 32
        %v1579 = vpop.permute.xlu0 %1578
        %1580 = vrot.lane.b32.xlu0 %v881, 32
        %v1581 = vpop.permute.xlu0 %1580
        %1582 = vrot.lane.b32.xlu0 %v882, 32
        %v1583 = vpop.permute.xlu0 %1582
        %v1586 = vpack.i.b16 %v1561, %v879
        %v1588 = vshrl.u32 %v879, 16
        %v1589 = vshrl.u32 %v1561, 16
        %v1590 = vpack.i.b16 %v1589, %v1588
        %v1594 = vpack.i.b16 %v1577, %v1569
        %v1596 = vshrl.u32 %v1569, 16
        %v1597 = vshrl.u32 %v1577, 16
        %v1598 = vpack.i.b16 %v1597, %v1596
        %v1602 = vpack.i.b16 %v1563, %v880
        %v1604 = vshrl.u32 %v880, 16
        %v1605 = vshrl.u32 %v1563, 16
        %v1606 = vpack.i.b16 %v1605, %v1604
        %v1610 = vpack.i.b16 %v1579, %v1571
        %v1612 = vshrl.u32 %v1571, 16
        %v1613 = vshrl.u32 %v1579, 16
        %v1614 = vpack.i.b16 %v1613, %v1612
        %v1618 = vpack.i.b16 %v1565, %v881
        %v1620 = vshrl.u32 %v881, 16
        %v1621 = vshrl.u32 %v1565, 16
        %v1622 = vpack.i.b16 %v1621, %v1620
        %v1626 = vpack.i.b16 %v1581, %v1573
        %v1628 = vshrl.u32 %v1573, 16
        %v1629 = vshrl.u32 %v1581, 16
        %v1630 = vpack.i.b16 %v1629, %v1628
        %v1634 = vpack.i.b16 %v1567, %v882
        %v1636 = vshrl.u32 %v882, 16
        %v1637 = vshrl.u32 %v1567, 16
        %v1638 = vpack.i.b16 %v1637, %v1636
        %v1642 = vpack.i.b16 %v1583, %v1575
        %v1644 = vshrl.u32 %v1575, 16
        %v1645 = vshrl.u32 %v1583, 16
        %v1646 = vpack.i.b16 %v1645, %v1644
        %v1648 = vcombine.high %v1586, %v1047
        %v1650 = vunpack.c.l.s4 1983009808
        %v1651 = vunpack.c.0.s8 %v1650
        %v1652 = vlaneseq
        %v1653 = vshrl.u32 %v1652, 7
        %v1654 = vsub.s32 %v1651, %v1653
        %v1655 = vrot.slane %v1586, %v1654
        %v1657 = vunpack.c.l.s4 1983009808
        %v1658 = vunpack.c.0.s8 %v1657
        %v1659 = vlaneseq
        %v1660 = vshrl.u32 %v1659, 7
        %v1661 = vsub.s32 %v1658, %v1660
        %v1662 = vrot.slane %v1648, %v1661
        %v1663 = vcombine.high %v1594, %v1047
        %v1665 = vunpack.c.l.s4 1983009808
        %v1666 = vunpack.c.0.s8 %v1665
        %v1667 = vlaneseq
        %v1668 = vshrl.u32 %v1667, 7
        %v1669 = vsub.s32 %v1666, %v1668
        %v1670 = vrot.slane %v1594, %v1669
        %v1672 = vunpack.c.l.s4 1983009808
        %v1673 = vunpack.c.0.s8 %v1672
        %v1674 = vlaneseq
        %v1675 = vshrl.u32 %v1674, 7
        %v1676 = vsub.s32 %v1673, %v1675
        %v1677 = vrot.slane %v1663, %v1676
        %v1678 = vcombine.low %v1655, %v1670
        %v1679 = vcombine.high %v1655, %v1670
        %v1681 = vunpack.c.l.s4 1934713408
        %v1682 = vunpack.c.0.s8 %v1681
        %v1683 = vlaneseq
        %v1684 = vshrl.u32 %v1683, 7
        %v1685 = vsub.s32 %v1682, %v1684
        %v1686 = vrot.slane %v1678, %v1685
        %v1688 = vunpack.c.l.s4 1934713408
        %v1689 = vunpack.c.0.s8 %v1688
        %v1690 = vlaneseq
        %v1691 = vshrl.u32 %v1690, 7
        %v1692 = vsub.s32 %v1689, %v1691
        %v1693 = vrot.slane %v1679, %v1692
        %v1694 = vcombine.low %v1662, %v1677
        %v1695 = vcombine.high %v1662, %v1677
        %v1697 = vunpack.c.l.s4 1934713408
        %v1698 = vunpack.c.0.s8 %v1697
        %v1699 = vlaneseq
        %v1700 = vshrl.u32 %v1699, 7
        %v1701 = vsub.s32 %v1698, %v1700
        %v1702 = vrot.slane %v1694, %v1701
        %v1704 = vunpack.c.l.s4 1934713408
        %v1705 = vunpack.c.0.s8 %v1704
        %v1706 = vlaneseq
        %v1707 = vshrl.u32 %v1706, 7
        %v1708 = vsub.s32 %v1705, %v1707
        %v1709 = vrot.slane %v1695, %v1708
        %v1710 = vcombine.high %v1686, 0
        %v1711 = vcombine.high %v1693, 0
        %v1712 = vcombine.high %v1702, 0
        %v1713 = vcombine.high %v1709, 0
        %v1714 = vcombine.high %v1590, %v1050
        %v1716 = vunpack.c.l.s4 1983009808
        %v1717 = vunpack.c.0.s8 %v1716
        %v1718 = vlaneseq
        %v1719 = vshrl.u32 %v1718, 7
        %v1720 = vsub.s32 %v1717, %v1719
        %v1721 = vrot.slane %v1590, %v1720
        %v1723 = vunpack.c.l.s4 1983009808
        %v1724 = vunpack.c.0.s8 %v1723
        %v1725 = vlaneseq
        %v1726 = vshrl.u32 %v1725, 7
        %v1727 = vsub.s32 %v1724, %v1726
        %v1728 = vrot.slane %v1714, %v1727
        %v1729 = vcombine.high %v1598, %v1050
        %v1731 = vunpack.c.l.s4 1983009808
        %v1732 = vunpack.c.0.s8 %v1731
        %v1733 = vlaneseq
        %v1734 = vshrl.u32 %v1733, 7
        %v1735 = vsub.s32 %v1732, %v1734
        %v1736 = vrot.slane %v1598, %v1735
        %v1738 = vunpack.c.l.s4 1983009808
        %v1739 = vunpack.c.0.s8 %v1738
        %v1740 = vlaneseq
        %v1741 = vshrl.u32 %v1740, 7
        %v1742 = vsub.s32 %v1739, %v1741
        %v1743 = vrot.slane %v1729, %v1742
        %v1744 = vcombine.low %v1721, %v1736
        %v1745 = vcombine.high %v1721, %v1736
        %v1747 = vunpack.c.l.s4 1934713408
        %v1748 = vunpack.c.0.s8 %v1747
        %v1749 = vlaneseq
        %v1750 = vshrl.u32 %v1749, 7
        %v1751 = vsub.s32 %v1748, %v1750
        %v1752 = vrot.slane %v1744, %v1751
        %v1754 = vunpack.c.l.s4 1934713408
        %v1755 = vunpack.c.0.s8 %v1754
        %v1756 = vlaneseq
        %v1757 = vshrl.u32 %v1756, 7
        %v1758 = vsub.s32 %v1755, %v1757
        %v1759 = vrot.slane %v1745, %v1758
        %v1760 = vcombine.low %v1728, %v1743
        %v1761 = vcombine.high %v1728, %v1743
        %v1763 = vunpack.c.l.s4 1934713408
        %v1764 = vunpack.c.0.s8 %v1763
        %v1765 = vlaneseq
        %v1766 = vshrl.u32 %v1765, 7
        %v1767 = vsub.s32 %v1764, %v1766
        %v1768 = vrot.slane %v1760, %v1767
        %v1770 = vunpack.c.l.s4 1934713408
        %v1771 = vunpack.c.0.s8 %v1770
        %v1772 = vlaneseq
        %v1773 = vshrl.u32 %v1772, 7
        %v1774 = vsub.s32 %v1771, %v1773
        %v1775 = vrot.slane %v1761, %v1774
        %v1776 = vcombine.high %v1752, 0
        %v1777 = vcombine.high %v1759, 0
        %v1778 = vcombine.high %v1768, 0
        %v1779 = vcombine.high %v1775, 0
        %v1780 = vcombine.high %v1602, %v1047
        %v1782 = vunpack.c.l.s4 1983009808
        %v1783 = vunpack.c.0.s8 %v1782
        %v1784 = vlaneseq
        %v1785 = vshrl.u32 %v1784, 7
        %v1786 = vsub.s32 %v1783, %v1785
        %v1787 = vrot.slane %v1602, %v1786
        %v1789 = vunpack.c.l.s4 1983009808
        %v1790 = vunpack.c.0.s8 %v1789
        %v1791 = vlaneseq
        %v1792 = vshrl.u32 %v1791, 7
        %v1793 = vsub.s32 %v1790, %v1792
        %v1794 = vrot.slane %v1780, %v1793
        %v1795 = vcombine.high %v1610, %v1047
        %v1797 = vunpack.c.l.s4 1983009808
        %v1798 = vunpack.c.0.s8 %v1797
        %v1799 = vlaneseq
        %v1800 = vshrl.u32 %v1799, 7
        %v1801 = vsub.s32 %v1798, %v1800
        %v1802 = vrot.slane %v1610, %v1801
        %v1804 = vunpack.c.l.s4 1983009808
        %v1805 = vunpack.c.0.s8 %v1804
        %v1806 = vlaneseq
        %v1807 = vshrl.u32 %v1806, 7
        %v1808 = vsub.s32 %v1805, %v1807
        %v1809 = vrot.slane %v1795, %v1808
        %v1810 = vcombine.low %v1787, %v1802
        %v1811 = vcombine.high %v1787, %v1802
        %v1813 = vunpack.c.l.s4 1934713408
        %v1814 = vunpack.c.0.s8 %v1813
        %v1815 = vlaneseq
        %v1816 = vshrl.u32 %v1815, 7
        %v1817 = vsub.s32 %v1814, %v1816
        %v1818 = vrot.slane %v1810, %v1817
        %v1820 = vunpack.c.l.s4 1934713408
        %v1821 = vunpack.c.0.s8 %v1820
        %v1822 = vlaneseq
        %v1823 = vshrl.u32 %v1822, 7
        %v1824 = vsub.s32 %v1821, %v1823
        %v1825 = vrot.slane %v1811, %v1824
        %v1826 = vcombine.low %v1794, %v1809
        %v1827 = vcombine.high %v1794, %v1809
        %v1829 = vunpack.c.l.s4 1934713408
        %v1830 = vunpack.c.0.s8 %v1829
        %v1831 = vlaneseq
        %v1832 = vshrl.u32 %v1831, 7
        %v1833 = vsub.s32 %v1830, %v1832
        %v1834 = vrot.slane %v1826, %v1833
        %v1836 = vunpack.c.l.s4 1934713408
        %v1837 = vunpack.c.0.s8 %v1836
        %v1838 = vlaneseq
        %v1839 = vshrl.u32 %v1838, 7
        %v1840 = vsub.s32 %v1837, %v1839
        %v1841 = vrot.slane %v1827, %v1840
        %v1842 = vcombine.high %v1818, 0
        %v1843 = vcombine.high %v1825, 0
        %v1844 = vcombine.high %v1834, 0
        %v1845 = vcombine.high %v1841, 0
        %v1846 = vcombine.high %v1606, %v1050
        %v1848 = vunpack.c.l.s4 1983009808
        %v1849 = vunpack.c.0.s8 %v1848
        %v1850 = vlaneseq
        %v1851 = vshrl.u32 %v1850, 7
        %v1852 = vsub.s32 %v1849, %v1851
        %v1853 = vrot.slane %v1606, %v1852
        %v1855 = vunpack.c.l.s4 1983009808
        %v1856 = vunpack.c.0.s8 %v1855
        %v1857 = vlaneseq
        %v1858 = vshrl.u32 %v1857, 7
        %v1859 = vsub.s32 %v1856, %v1858
        %v1860 = vrot.slane %v1846, %v1859
        %v1861 = vcombine.high %v1614, %v1050
        %v1863 = vunpack.c.l.s4 1983009808
        %v1864 = vunpack.c.0.s8 %v1863
        %v1865 = vlaneseq
        %v1866 = vshrl.u32 %v1865, 7
        %v1867 = vsub.s32 %v1864, %v1866
        %v1868 = vrot.slane %v1614, %v1867
        %v1870 = vunpack.c.l.s4 1983009808
        %v1871 = vunpack.c.0.s8 %v1870
        %v1872 = vlaneseq
        %v1873 = vshrl.u32 %v1872, 7
        %v1874 = vsub.s32 %v1871, %v1873
        %v1875 = vrot.slane %v1861, %v1874
        %v1876 = vcombine.low %v1853, %v1868
        %v1877 = vcombine.high %v1853, %v1868
        %v1879 = vunpack.c.l.s4 1934713408
        %v1880 = vunpack.c.0.s8 %v1879
        %v1881 = vlaneseq
        %v1882 = vshrl.u32 %v1881, 7
        %v1883 = vsub.s32 %v1880, %v1882
        %v1884 = vrot.slane %v1876, %v1883
        %v1886 = vunpack.c.l.s4 1934713408
        %v1887 = vunpack.c.0.s8 %v1886
        %v1888 = vlaneseq
        %v1889 = vshrl.u32 %v1888, 7
        %v1890 = vsub.s32 %v1887, %v1889
        %v1891 = vrot.slane %v1877, %v1890
        %v1892 = vcombine.low %v1860, %v1875
        %v1893 = vcombine.high %v1860, %v1875
        %v1895 = vunpack.c.l.s4 1934713408
        %v1896 = vunpack.c.0.s8 %v1895
        %v1897 = vlaneseq
        %v1898 = vshrl.u32 %v1897, 7
        %v1899 = vsub.s32 %v1896, %v1898
        %v1900 = vrot.slane %v1892, %v1899
        %v1902 = vunpack.c.l.s4 1934713408
        %v1903 = vunpack.c.0.s8 %v1902
        %v1904 = vlaneseq
        %v1905 = vshrl.u32 %v1904, 7
        %v1906 = vsub.s32 %v1903, %v1905
        %v1907 = vrot.slane %v1893, %v1906
        %v1908 = vcombine.high %v1884, 0
        %v1909 = vcombine.high %v1891, 0
        %v1910 = vcombine.high %v1900, 0
        %v1911 = vcombine.high %v1907, 0
        %v1912 = vcombine.high %v1618, %v1047
        %v1914 = vunpack.c.l.s4 1983009808
        %v1915 = vunpack.c.0.s8 %v1914
        %v1916 = vlaneseq
        %v1917 = vshrl.u32 %v1916, 7
        %v1918 = vsub.s32 %v1915, %v1917
        %v1919 = vrot.slane %v1618, %v1918
        %v1921 = vunpack.c.l.s4 1983009808
        %v1922 = vunpack.c.0.s8 %v1921
        %v1923 = vlaneseq
        %v1924 = vshrl.u32 %v1923, 7
        %v1925 = vsub.s32 %v1922, %v1924
        %v1926 = vrot.slane %v1912, %v1925
        %v1927 = vcombine.high %v1626, %v1047
        %v1929 = vunpack.c.l.s4 1983009808
        %v1930 = vunpack.c.0.s8 %v1929
        %v1931 = vlaneseq
        %v1932 = vshrl.u32 %v1931, 7
        %v1933 = vsub.s32 %v1930, %v1932
        %v1934 = vrot.slane %v1626, %v1933
        %v1936 = vunpack.c.l.s4 1983009808
        %v1937 = vunpack.c.0.s8 %v1936
        %v1938 = vlaneseq
        %v1939 = vshrl.u32 %v1938, 7
        %v1940 = vsub.s32 %v1937, %v1939
        %v1941 = vrot.slane %v1927, %v1940
        %v1942 = vcombine.low %v1919, %v1934
        %v1943 = vcombine.high %v1919, %v1934
        %v1945 = vunpack.c.l.s4 1934713408
        %v1946 = vunpack.c.0.s8 %v1945
        %v1947 = vlaneseq
        %v1948 = vshrl.u32 %v1947, 7
        %v1949 = vsub.s32 %v1946, %v1948
        %v1950 = vrot.slane %v1942, %v1949
        %v1952 = vunpack.c.l.s4 1934713408
        %v1953 = vunpack.c.0.s8 %v1952
        %v1954 = vlaneseq
        %v1955 = vshrl.u32 %v1954, 7
        %v1956 = vsub.s32 %v1953, %v1955
        %v1957 = vrot.slane %v1943, %v1956
        %v1958 = vcombine.low %v1926, %v1941
        %v1959 = vcombine.high %v1926, %v1941
        %v1961 = vunpack.c.l.s4 1934713408
        %v1962 = vunpack.c.0.s8 %v1961
        %v1963 = vlaneseq
        %v1964 = vshrl.u32 %v1963, 7
        %v1965 = vsub.s32 %v1962, %v1964
        %v1966 = vrot.slane %v1958, %v1965
        %v1968 = vunpack.c.l.s4 1934713408
        %v1969 = vunpack.c.0.s8 %v1968
        %v1970 = vlaneseq
        %v1971 = vshrl.u32 %v1970, 7
        %v1972 = vsub.s32 %v1969, %v1971
        %v1973 = vrot.slane %v1959, %v1972
        %v1974 = vcombine.high %v1950, 0
        %v1975 = vcombine.high %v1957, 0
        %v1976 = vcombine.high %v1966, 0
        %v1977 = vcombine.high %v1973, 0
        %v1978 = vcombine.high %v1622, %v1050
        %v1980 = vunpack.c.l.s4 1983009808
        %v1981 = vunpack.c.0.s8 %v1980
        %v1982 = vlaneseq
        %v1983 = vshrl.u32 %v1982, 7
        %v1984 = vsub.s32 %v1981, %v1983
        %v1985 = vrot.slane %v1622, %v1984
        %v1987 = vunpack.c.l.s4 1983009808
        %v1988 = vunpack.c.0.s8 %v1987
        %v1989 = vlaneseq
        %v1990 = vshrl.u32 %v1989, 7
        %v1991 = vsub.s32 %v1988, %v1990
        %v1992 = vrot.slane %v1978, %v1991
        %v1993 = vcombine.high %v1630, %v1050
        %v1995 = vunpack.c.l.s4 1983009808
        %v1996 = vunpack.c.0.s8 %v1995
        %v1997 = vlaneseq
        %v1998 = vshrl.u32 %v1997, 7
        %v1999 = vsub.s32 %v1996, %v1998
        %v2000 = vrot.slane %v1630, %v1999
        %v2002 = vunpack.c.l.s4 1983009808
        %v2003 = vunpack.c.0.s8 %v2002
        %v2004 = vlaneseq
        %v2005 = vshrl.u32 %v2004, 7
        %v2006 = vsub.s32 %v2003, %v2005
        %v2007 = vrot.slane %v1993, %v2006
        %v2008 = vcombine.low %v1985, %v2000
        %v2009 = vcombine.high %v1985, %v2000
        %v2011 = vunpack.c.l.s4 1934713408
        %v2012 = vunpack.c.0.s8 %v2011
        %v2013 = vlaneseq
        %v2014 = vshrl.u32 %v2013, 7
        %v2015 = vsub.s32 %v2012, %v2014
        %v2016 = vrot.slane %v2008, %v2015
        %v2018 = vunpack.c.l.s4 1934713408
        %v2019 = vunpack.c.0.s8 %v2018
        %v2020 = vlaneseq
        %v2021 = vshrl.u32 %v2020, 7
        %v2022 = vsub.s32 %v2019, %v2021
        %v2023 = vrot.slane %v2009, %v2022
        %v2024 = vcombine.low %v1992, %v2007
        %v2025 = vcombine.high %v1992, %v2007
        %v2027 = vunpack.c.l.s4 1934713408
        %v2028 = vunpack.c.0.s8 %v2027
        %v2029 = vlaneseq
        %v2030 = vshrl.u32 %v2029, 7
        %v2031 = vsub.s32 %v2028, %v2030
        %v2032 = vrot.slane %v2024, %v2031
        %v2034 = vunpack.c.l.s4 1934713408
        %v2035 = vunpack.c.0.s8 %v2034
        %v2036 = vlaneseq
        %v2037 = vshrl.u32 %v2036, 7
        %v2038 = vsub.s32 %v2035, %v2037
        %v2039 = vrot.slane %v2025, %v2038
        %v2040 = vcombine.high %v2016, 0
        %v2041 = vcombine.high %v2023, 0
        %v2042 = vcombine.high %v2032, 0
        %v2043 = vcombine.high %v2039, 0
        %v2044 = vcombine.high %v1634, %v1047
        %v2046 = vunpack.c.l.s4 1983009808
        %v2047 = vunpack.c.0.s8 %v2046
        %v2048 = vlaneseq
        %v2049 = vshrl.u32 %v2048, 7
        %v2050 = vsub.s32 %v2047, %v2049
        %v2051 = vrot.slane %v1634, %v2050
        %v2053 = vunpack.c.l.s4 1983009808
        %v2054 = vunpack.c.0.s8 %v2053
        %v2055 = vlaneseq
        %v2056 = vshrl.u32 %v2055, 7
        %v2057 = vsub.s32 %v2054, %v2056
        %v2058 = vrot.slane %v2044, %v2057
        %v2059 = vcombine.high %v1642, %v1047
        %v2061 = vunpack.c.l.s4 1983009808
        %v2062 = vunpack.c.0.s8 %v2061
        %v2063 = vlaneseq
        %v2064 = vshrl.u32 %v2063, 7
        %v2065 = vsub.s32 %v2062, %v2064
        %v2066 = vrot.slane %v1642, %v2065
        %v2068 = vunpack.c.l.s4 1983009808
        %v2069 = vunpack.c.0.s8 %v2068
        %v2070 = vlaneseq
        %v2071 = vshrl.u32 %v2070, 7
        %v2072 = vsub.s32 %v2069, %v2071
        %v2073 = vrot.slane %v2059, %v2072
        %v2074 = vcombine.low %v2051, %v2066
        %v2075 = vcombine.high %v2051, %v2066
        %v2077 = vunpack.c.l.s4 1934713408
        %v2078 = vunpack.c.0.s8 %v2077
        %v2079 = vlaneseq
        %v2080 = vshrl.u32 %v2079, 7
        %v2081 = vsub.s32 %v2078, %v2080
        %v2082 = vrot.slane %v2074, %v2081
        %v2084 = vunpack.c.l.s4 1934713408
        %v2085 = vunpack.c.0.s8 %v2084
        %v2086 = vlaneseq
        %v2087 = vshrl.u32 %v2086, 7
        %v2088 = vsub.s32 %v2085, %v2087
        %v2089 = vrot.slane %v2075, %v2088
        %v2090 = vcombine.low %v2058, %v2073
        %v2091 = vcombine.high %v2058, %v2073
        %v2093 = vunpack.c.l.s4 1934713408
        %v2094 = vunpack.c.0.s8 %v2093
        %v2095 = vlaneseq
        %v2096 = vshrl.u32 %v2095, 7
        %v2097 = vsub.s32 %v2094, %v2096
        %v2098 = vrot.slane %v2090, %v2097
        %v2100 = vunpack.c.l.s4 1934713408
        %v2101 = vunpack.c.0.s8 %v2100
        %v2102 = vlaneseq
        %v2103 = vshrl.u32 %v2102, 7
        %v2104 = vsub.s32 %v2101, %v2103
        %v2105 = vrot.slane %v2091, %v2104
        %v2106 = vcombine.high %v2082, 0
        %v2107 = vcombine.high %v2089, 0
        %v2108 = vcombine.high %v2098, 0
        %v2109 = vcombine.high %v2105, 0
        %v2110 = vcombine.high %v1638, %v1050
        %v2112 = vunpack.c.l.s4 1983009808
        %v2113 = vunpack.c.0.s8 %v2112
        %v2114 = vlaneseq
        %v2115 = vshrl.u32 %v2114, 7
        %v2116 = vsub.s32 %v2113, %v2115
        %v2117 = vrot.slane %v1638, %v2116
        %v2119 = vunpack.c.l.s4 1983009808
        %v2120 = vunpack.c.0.s8 %v2119
        %v2121 = vlaneseq
        %v2122 = vshrl.u32 %v2121, 7
        %v2123 = vsub.s32 %v2120, %v2122
        %v2124 = vrot.slane %v2110, %v2123
        %v2125 = vcombine.high %v1646, %v1050
        %v2127 = vunpack.c.l.s4 1983009808
        %v2128 = vunpack.c.0.s8 %v2127
        %v2129 = vlaneseq
        %v2130 = vshrl.u32 %v2129, 7
        %v2131 = vsub.s32 %v2128, %v2130
        %v2132 = vrot.slane %v1646, %v2131
        %v2134 = vunpack.c.l.s4 1983009808
        %v2135 = vunpack.c.0.s8 %v2134
        %v2136 = vlaneseq
        %v2137 = vshrl.u32 %v2136, 7
        %v2138 = vsub.s32 %v2135, %v2137
        %v2139 = vrot.slane %v2125, %v2138
        %v2140 = vcombine.low %v2117, %v2132
        %v2141 = vcombine.high %v2117, %v2132
        %v2143 = vunpack.c.l.s4 1934713408
        %v2144 = vunpack.c.0.s8 %v2143
        %v2145 = vlaneseq
        %v2146 = vshrl.u32 %v2145, 7
        %v2147 = vsub.s32 %v2144, %v2146
        %v2148 = vrot.slane %v2140, %v2147
        %v2150 = vunpack.c.l.s4 1934713408
        %v2151 = vunpack.c.0.s8 %v2150
        %v2152 = vlaneseq
        %v2153 = vshrl.u32 %v2152, 7
        %v2154 = vsub.s32 %v2151, %v2153
        %v2155 = vrot.slane %v2141, %v2154
        %v2156 = vcombine.low %v2124, %v2139
        %v2157 = vcombine.high %v2124, %v2139
        %v2159 = vunpack.c.l.s4 1934713408
        %v2160 = vunpack.c.0.s8 %v2159
        %v2161 = vlaneseq
        %v2162 = vshrl.u32 %v2161, 7
        %v2163 = vsub.s32 %v2160, %v2162
        %v2164 = vrot.slane %v2156, %v2163
        %v2166 = vunpack.c.l.s4 1934713408
        %v2167 = vunpack.c.0.s8 %v2166
        %v2168 = vlaneseq
        %v2169 = vshrl.u32 %v2168, 7
        %v2170 = vsub.s32 %v2167, %v2169
        %v2171 = vrot.slane %v2157, %v2170
        %v2172 = vcombine.high %v2148, 0
        %v2173 = vcombine.high %v2155, 0
        %v2174 = vcombine.high %v2164, 0
        %v2175 = vcombine.high %v2171, 0
        %v2176 = vcombine.low %v1686, %v1693
        %v2178 = vunpack.c.l.s4 1983009808
        %v2179 = vunpack.c.0.s8 %v2178
        %v2180 = vlaneseq
        %v2181 = vshrl.u32 %v2180, 7
        %v2182 = vsub.s32 %v2179, %v2181
        %v2183 = vrot.slane %v2176, %v2182
        %v2184 = vcombine.low %v1710, %v1711
        %v2186 = vunpack.c.l.s4 1983009808
        %v2187 = vunpack.c.0.s8 %v2186
        %v2188 = vlaneseq
        %v2189 = vshrl.u32 %v2188, 7
        %v2190 = vsub.s32 %v2187, %v2189
        %v2191 = vrot.slane %v2184, %v2190
        %v2192 = vcombine.low %v1702, %v1709
        %v2194 = vunpack.c.l.s4 1983009808
        %v2195 = vunpack.c.0.s8 %v2194
        %v2196 = vlaneseq
        %v2197 = vshrl.u32 %v2196, 7
        %v2198 = vsub.s32 %v2195, %v2197
        %v2199 = vrot.slane %v2192, %v2198
        %v2200 = vcombine.low %v1712, %v1713
        %v2202 = vunpack.c.l.s4 1983009808
        %v2203 = vunpack.c.0.s8 %v2202
        %v2204 = vlaneseq
        %v2205 = vshrl.u32 %v2204, 7
        %v2206 = vsub.s32 %v2203, %v2205
        %v2207 = vrot.slane %v2200, %v2206
        %v2208 = vcombine.low %v2183, %v2191
        %v2210 = vunpack.c.l.s4 1934713408
        %v2211 = vunpack.c.0.s8 %v2210
        %v2212 = vlaneseq
        %v2213 = vshrl.u32 %v2212, 7
        %v2214 = vsub.s32 %v2211, %v2213
        %v2215 = vrot.slane %v2208, %v2214
        %v2216 = vcombine.low %v2199, %v2207
        %v2218 = vunpack.c.l.s4 1934713408
        %v2219 = vunpack.c.0.s8 %v2218
        %v2220 = vlaneseq
        %v2221 = vshrl.u32 %v2220, 7
        %v2222 = vsub.s32 %v2219, %v2221
        %v2223 = vrot.slane %v2216, %v2222
        %v2224 = vcombine.low %v2215, %v2223
        %v2225 = vcombine.high %v2215, %v2223
        %v2226 = vcombine.low %v1752, %v1759
        %v2228 = vunpack.c.l.s4 1983009808
        %v2229 = vunpack.c.0.s8 %v2228
        %v2230 = vlaneseq
        %v2231 = vshrl.u32 %v2230, 7
        %v2232 = vsub.s32 %v2229, %v2231
        %v2233 = vrot.slane %v2226, %v2232
        %v2234 = vcombine.low %v1776, %v1777
        %v2236 = vunpack.c.l.s4 1983009808
        %v2237 = vunpack.c.0.s8 %v2236
        %v2238 = vlaneseq
        %v2239 = vshrl.u32 %v2238, 7
        %v2240 = vsub.s32 %v2237, %v2239
        %v2241 = vrot.slane %v2234, %v2240
        %v2242 = vcombine.low %v1768, %v1775
        %v2244 = vunpack.c.l.s4 1983009808
        %v2245 = vunpack.c.0.s8 %v2244
        %v2246 = vlaneseq
        %v2247 = vshrl.u32 %v2246, 7
        %v2248 = vsub.s32 %v2245, %v2247
        %v2249 = vrot.slane %v2242, %v2248
        %v2250 = vcombine.low %v1778, %v1779
        %v2252 = vunpack.c.l.s4 1983009808
        %v2253 = vunpack.c.0.s8 %v2252
        %v2254 = vlaneseq
        %v2255 = vshrl.u32 %v2254, 7
        %v2256 = vsub.s32 %v2253, %v2255
        %v2257 = vrot.slane %v2250, %v2256
        %v2258 = vcombine.low %v2233, %v2241
        %v2260 = vunpack.c.l.s4 1934713408
        %v2261 = vunpack.c.0.s8 %v2260
        %v2262 = vlaneseq
        %v2263 = vshrl.u32 %v2262, 7
        %v2264 = vsub.s32 %v2261, %v2263
        %v2265 = vrot.slane %v2258, %v2264
        %v2266 = vcombine.low %v2249, %v2257
        %v2268 = vunpack.c.l.s4 1934713408
        %v2269 = vunpack.c.0.s8 %v2268
        %v2270 = vlaneseq
        %v2271 = vshrl.u32 %v2270, 7
        %v2272 = vsub.s32 %v2269, %v2271
        %v2273 = vrot.slane %v2266, %v2272
        %v2274 = vcombine.low %v2265, %v2273
        %v2275 = vcombine.high %v2265, %v2273
        %v2276 = vcombine.low %v1818, %v1825
        %v2278 = vunpack.c.l.s4 1983009808
        %v2279 = vunpack.c.0.s8 %v2278
        %v2280 = vlaneseq
        %v2281 = vshrl.u32 %v2280, 7
        %v2282 = vsub.s32 %v2279, %v2281
        %v2283 = vrot.slane %v2276, %v2282
        %v2284 = vcombine.low %v1842, %v1843
        %v2286 = vunpack.c.l.s4 1983009808
        %v2287 = vunpack.c.0.s8 %v2286
        %v2288 = vlaneseq
        %v2289 = vshrl.u32 %v2288, 7
        %v2290 = vsub.s32 %v2287, %v2289
        %v2291 = vrot.slane %v2284, %v2290
        %v2292 = vcombine.low %v1834, %v1841
        %v2294 = vunpack.c.l.s4 1983009808
        %v2295 = vunpack.c.0.s8 %v2294
        %v2296 = vlaneseq
        %v2297 = vshrl.u32 %v2296, 7
        %v2298 = vsub.s32 %v2295, %v2297
        %v2299 = vrot.slane %v2292, %v2298
        %v2300 = vcombine.low %v1844, %v1845
        %v2302 = vunpack.c.l.s4 1983009808
        %v2303 = vunpack.c.0.s8 %v2302
        %v2304 = vlaneseq
        %v2305 = vshrl.u32 %v2304, 7
        %v2306 = vsub.s32 %v2303, %v2305
        %v2307 = vrot.slane %v2300, %v2306
        %v2308 = vcombine.low %v2283, %v2291
        %v2310 = vunpack.c.l.s4 1934713408
        %v2311 = vunpack.c.0.s8 %v2310
        %v2312 = vlaneseq
        %v2313 = vshrl.u32 %v2312, 7
        %v2314 = vsub.s32 %v2311, %v2313
        %v2315 = vrot.slane %v2308, %v2314
        %v2316 = vcombine.low %v2299, %v2307
        %v2318 = vunpack.c.l.s4 1934713408
        %v2319 = vunpack.c.0.s8 %v2318
        %v2320 = vlaneseq
        %v2321 = vshrl.u32 %v2320, 7
        %v2322 = vsub.s32 %v2319, %v2321
        %v2323 = vrot.slane %v2316, %v2322
        %v2324 = vcombine.low %v2315, %v2323
        %v2325 = vcombine.high %v2315, %v2323
        %v2326 = vcombine.low %v1884, %v1891
        %v2328 = vunpack.c.l.s4 1983009808
        %v2329 = vunpack.c.0.s8 %v2328
        %v2330 = vlaneseq
        %v2331 = vshrl.u32 %v2330, 7
        %v2332 = vsub.s32 %v2329, %v2331
        %v2333 = vrot.slane %v2326, %v2332
        %v2334 = vcombine.low %v1908, %v1909
        %v2336 = vunpack.c.l.s4 1983009808
        %v2337 = vunpack.c.0.s8 %v2336
        %v2338 = vlaneseq
        %v2339 = vshrl.u32 %v2338, 7
        %v2340 = vsub.s32 %v2337, %v2339
        %v2341 = vrot.slane %v2334, %v2340
        %v2342 = vcombine.low %v1900, %v1907
        %v2344 = vunpack.c.l.s4 1983009808
        %v2345 = vunpack.c.0.s8 %v2344
        %v2346 = vlaneseq
        %v2347 = vshrl.u32 %v2346, 7
        %v2348 = vsub.s32 %v2345, %v2347
        %v2349 = vrot.slane %v2342, %v2348
        %v2350 = vcombine.low %v1910, %v1911
        %v2352 = vunpack.c.l.s4 1983009808
        %v2353 = vunpack.c.0.s8 %v2352
        %v2354 = vlaneseq
        %v2355 = vshrl.u32 %v2354, 7
        %v2356 = vsub.s32 %v2353, %v2355
        %v2357 = vrot.slane %v2350, %v2356
        %v2358 = vcombine.low %v2333, %v2341
        %v2360 = vunpack.c.l.s4 1934713408
        %v2361 = vunpack.c.0.s8 %v2360
        %v2362 = vlaneseq
        %v2363 = vshrl.u32 %v2362, 7
        %v2364 = vsub.s32 %v2361, %v2363
        %v2365 = vrot.slane %v2358, %v2364
        %v2366 = vcombine.low %v2349, %v2357
        %v2368 = vunpack.c.l.s4 1934713408
        %v2369 = vunpack.c.0.s8 %v2368
        %v2370 = vlaneseq
        %v2371 = vshrl.u32 %v2370, 7
        %v2372 = vsub.s32 %v2369, %v2371
        %v2373 = vrot.slane %v2366, %v2372
        %v2374 = vcombine.low %v2365, %v2373
        %v2375 = vcombine.high %v2365, %v2373
        %v2376 = vcombine.low %v1950, %v1957
        %v2378 = vunpack.c.l.s4 1983009808
        %v2379 = vunpack.c.0.s8 %v2378
        %v2380 = vlaneseq
        %v2381 = vshrl.u32 %v2380, 7
        %v2382 = vsub.s32 %v2379, %v2381
        %v2383 = vrot.slane %v2376, %v2382
        %v2384 = vcombine.low %v1974, %v1975
        %v2386 = vunpack.c.l.s4 1983009808
        %v2387 = vunpack.c.0.s8 %v2386
        %v2388 = vlaneseq
        %v2389 = vshrl.u32 %v2388, 7
        %v2390 = vsub.s32 %v2387, %v2389
        %v2391 = vrot.slane %v2384, %v2390
        %v2392 = vcombine.low %v1966, %v1973
        %v2394 = vunpack.c.l.s4 1983009808
        %v2395 = vunpack.c.0.s8 %v2394
        %v2396 = vlaneseq
        %v2397 = vshrl.u32 %v2396, 7
        %v2398 = vsub.s32 %v2395, %v2397
        %v2399 = vrot.slane %v2392, %v2398
        %v2400 = vcombine.low %v1976, %v1977
        %v2402 = vunpack.c.l.s4 1983009808
        %v2403 = vunpack.c.0.s8 %v2402
        %v2404 = vlaneseq
        %v2405 = vshrl.u32 %v2404, 7
        %v2406 = vsub.s32 %v2403, %v2405
        %v2407 = vrot.slane %v2400, %v2406
        %v2408 = vcombine.low %v2383, %v2391
        %v2410 = vunpack.c.l.s4 1934713408
        %v2411 = vunpack.c.0.s8 %v2410
        %v2412 = vlaneseq
        %v2413 = vshrl.u32 %v2412, 7
        %v2414 = vsub.s32 %v2411, %v2413
        %v2415 = vrot.slane %v2408, %v2414
        %v2416 = vcombine.low %v2399, %v2407
        %v2418 = vunpack.c.l.s4 1934713408
        %v2419 = vunpack.c.0.s8 %v2418
        %v2420 = vlaneseq
        %v2421 = vshrl.u32 %v2420, 7
        %v2422 = vsub.s32 %v2419, %v2421
        %v2423 = vrot.slane %v2416, %v2422
        %v2424 = vcombine.low %v2415, %v2423
        %v2425 = vcombine.high %v2415, %v2423
        %v2426 = vcombine.low %v2016, %v2023
        %v2428 = vunpack.c.l.s4 1983009808
        %v2429 = vunpack.c.0.s8 %v2428
        %v2430 = vlaneseq
        %v2431 = vshrl.u32 %v2430, 7
        %v2432 = vsub.s32 %v2429, %v2431
        %v2433 = vrot.slane %v2426, %v2432
        %v2434 = vcombine.low %v2040, %v2041
        %v2436 = vunpack.c.l.s4 1983009808
        %v2437 = vunpack.c.0.s8 %v2436
        %v2438 = vlaneseq
        %v2439 = vshrl.u32 %v2438, 7
        %v2440 = vsub.s32 %v2437, %v2439
        %v2441 = vrot.slane %v2434, %v2440
        %v2442 = vcombine.low %v2032, %v2039
        %v2444 = vunpack.c.l.s4 1983009808
        %v2445 = vunpack.c.0.s8 %v2444
        %v2446 = vlaneseq
        %v2447 = vshrl.u32 %v2446, 7
        %v2448 = vsub.s32 %v2445, %v2447
        %v2449 = vrot.slane %v2442, %v2448
        %v2450 = vcombine.low %v2042, %v2043
        %v2452 = vunpack.c.l.s4 1983009808
        %v2453 = vunpack.c.0.s8 %v2452
        %v2454 = vlaneseq
        %v2455 = vshrl.u32 %v2454, 7
        %v2456 = vsub.s32 %v2453, %v2455
        %v2457 = vrot.slane %v2450, %v2456
        %v2458 = vcombine.low %v2433, %v2441
        %v2460 = vunpack.c.l.s4 1934713408
        %v2461 = vunpack.c.0.s8 %v2460
        %v2462 = vlaneseq
        %v2463 = vshrl.u32 %v2462, 7
        %v2464 = vsub.s32 %v2461, %v2463
        %v2465 = vrot.slane %v2458, %v2464
        %v2466 = vcombine.low %v2449, %v2457
        %v2468 = vunpack.c.l.s4 1934713408
        %v2469 = vunpack.c.0.s8 %v2468
        %v2470 = vlaneseq
        %v2471 = vshrl.u32 %v2470, 7
        %v2472 = vsub.s32 %v2469, %v2471
        %v2473 = vrot.slane %v2466, %v2472
        %v2474 = vcombine.low %v2465, %v2473
        %v2475 = vcombine.high %v2465, %v2473
        %v2476 = vcombine.low %v2082, %v2089
        %v2478 = vunpack.c.l.s4 1983009808
        %v2479 = vunpack.c.0.s8 %v2478
        %v2480 = vlaneseq
        %v2481 = vshrl.u32 %v2480, 7
        %v2482 = vsub.s32 %v2479, %v2481
        %v2483 = vrot.slane %v2476, %v2482
        %v2484 = vcombine.low %v2106, %v2107
        %v2486 = vunpack.c.l.s4 1983009808
        %v2487 = vunpack.c.0.s8 %v2486
        %v2488 = vlaneseq
        %v2489 = vshrl.u32 %v2488, 7
        %v2490 = vsub.s32 %v2487, %v2489
        %v2491 = vrot.slane %v2484, %v2490
        %v2492 = vcombine.low %v2098, %v2105
        %v2494 = vunpack.c.l.s4 1983009808
        %v2495 = vunpack.c.0.s8 %v2494
        %v2496 = vlaneseq
        %v2497 = vshrl.u32 %v2496, 7
        %v2498 = vsub.s32 %v2495, %v2497
        %v2499 = vrot.slane %v2492, %v2498
        %v2500 = vcombine.low %v2108, %v2109
        %v2502 = vunpack.c.l.s4 1983009808
        %v2503 = vunpack.c.0.s8 %v2502
        %v2504 = vlaneseq
        %v2505 = vshrl.u32 %v2504, 7
        %v2506 = vsub.s32 %v2503, %v2505
        %v2507 = vrot.slane %v2500, %v2506
        %v2508 = vcombine.low %v2483, %v2491
        %v2510 = vunpack.c.l.s4 1934713408
        %v2511 = vunpack.c.0.s8 %v2510
        %v2512 = vlaneseq
        %v2513 = vshrl.u32 %v2512, 7
        %v2514 = vsub.s32 %v2511, %v2513
        %v2515 = vrot.slane %v2508, %v2514
        %v2516 = vcombine.low %v2499, %v2507
        %v2518 = vunpack.c.l.s4 1934713408
        %v2519 = vunpack.c.0.s8 %v2518
        %v2520 = vlaneseq
        %v2521 = vshrl.u32 %v2520, 7
        %v2522 = vsub.s32 %v2519, %v2521
        %v2523 = vrot.slane %v2516, %v2522
        %v2524 = vcombine.low %v2515, %v2523
        %v2525 = vcombine.high %v2515, %v2523
        %v2526 = vcombine.low %v2148, %v2155
        %v2528 = vunpack.c.l.s4 1983009808
        %v2529 = vunpack.c.0.s8 %v2528
        %v2530 = vlaneseq
        %v2531 = vshrl.u32 %v2530, 7
        %v2532 = vsub.s32 %v2529, %v2531
        %v2533 = vrot.slane %v2526, %v2532
        %v2534 = vcombine.low %v2172, %v2173
        %v2536 = vunpack.c.l.s4 1983009808
        %v2537 = vunpack.c.0.s8 %v2536
        %v2538 = vlaneseq
        %v2539 = vshrl.u32 %v2538, 7
        %v2540 = vsub.s32 %v2537, %v2539
        %v2541 = vrot.slane %v2534, %v2540
        %v2542 = vcombine.low %v2164, %v2171
        %v2544 = vunpack.c.l.s4 1983009808
        %v2545 = vunpack.c.0.s8 %v2544
        %v2546 = vlaneseq
        %v2547 = vshrl.u32 %v2546, 7
        %v2548 = vsub.s32 %v2545, %v2547
        %v2549 = vrot.slane %v2542, %v2548
        %v2550 = vcombine.low %v2174, %v2175
        %v2552 = vunpack.c.l.s4 1983009808
        %v2553 = vunpack.c.0.s8 %v2552
        %v2554 = vlaneseq
        %v2555 = vshrl.u32 %v2554, 7
        %v2556 = vsub.s32 %v2553, %v2555
        %v2557 = vrot.slane %v2550, %v2556
        %v2558 = vcombine.low %v2533, %v2541
        %v2560 = vunpack.c.l.s4 1934713408
        %v2561 = vunpack.c.0.s8 %v2560
        %v2562 = vlaneseq
        %v2563 = vshrl.u32 %v2562, 7
        %v2564 = vsub.s32 %v2561, %v2563
        %v2565 = vrot.slane %v2558, %v2564
        %v2566 = vcombine.low %v2549, %v2557
        %v2568 = vunpack.c.l.s4 1934713408
        %v2569 = vunpack.c.0.s8 %v2568
        %v2570 = vlaneseq
        %v2571 = vshrl.u32 %v2570, 7
        %v2572 = vsub.s32 %v2569, %v2571
        %v2573 = vrot.slane %v2566, %v2572
        %v2574 = vcombine.low %v2565, %v2573
        %v2575 = vcombine.high %v2565, %v2573
        %v2578 = vpack.i.b16 %v2274, %v2224
        %v2579 = vshrl.u32 %v2224, 16
        %v2580 = vshrl.u32 %v2274, 16
        %v2581 = vpack.i.b16 %v2580, %v2579
        %v2584 = vpack.i.b16 %v2275, %v2225
        %v2585 = vshrl.u32 %v2225, 16
        %v2586 = vshrl.u32 %v2275, 16
        %v2587 = vpack.i.b16 %v2586, %v2585
        %v2590 = vpack.i.b16 %v2374, %v2324
        %v2591 = vshrl.u32 %v2324, 16
        %v2592 = vshrl.u32 %v2374, 16
        %v2593 = vpack.i.b16 %v2592, %v2591
        %v2596 = vpack.i.b16 %v2375, %v2325
        %v2597 = vshrl.u32 %v2325, 16
        %v2598 = vshrl.u32 %v2375, 16
        %v2599 = vpack.i.b16 %v2598, %v2597
        %v2602 = vpack.i.b16 %v2474, %v2424
        %v2603 = vshrl.u32 %v2424, 16
        %v2604 = vshrl.u32 %v2474, 16
        %v2605 = vpack.i.b16 %v2604, %v2603
        %v2608 = vpack.i.b16 %v2475, %v2425
        %v2609 = vshrl.u32 %v2425, 16
        %v2610 = vshrl.u32 %v2475, 16
        %v2611 = vpack.i.b16 %v2610, %v2609
        %v2614 = vpack.i.b16 %v2574, %v2524
        %v2615 = vshrl.u32 %v2524, 16
        %v2616 = vshrl.u32 %v2574, 16
        %v2617 = vpack.i.b16 %v2616, %v2615
        %v2620 = vpack.i.b16 %v2575, %v2525
        %v2621 = vshrl.u32 %v2525, 16
        %v2622 = vshrl.u32 %v2575, 16
        %v2623 = vpack.i.b16 %v2622, %v2621
        %2628 = vrot.lane.b32.xlu0 %v1012, 96
        %v2629 = vpop.permute.xlu0 %2628
        %2630 = vrot.lane.b32.xlu0 %v1013, 96
        %v2631 = vpop.permute.xlu0 %2630
        %2632 = vrot.lane.b32.xlu0 %v1014, 96
        %v2633 = vpop.permute.xlu0 %2632
        %2634 = vrot.lane.b32.xlu0 %v1015, 96
        %v2635 = vpop.permute.xlu0 %2634
        %2636 = vrot.lane.b32.xlu0 %v1012, 64
        %v2637 = vpop.permute.xlu0 %2636
        %2638 = vrot.lane.b32.xlu0 %v1013, 64
        %v2639 = vpop.permute.xlu0 %2638
        %2640 = vrot.lane.b32.xlu0 %v1014, 64
        %v2641 = vpop.permute.xlu0 %2640
        %2642 = vrot.lane.b32.xlu0 %v1015, 64
        %v2643 = vpop.permute.xlu0 %2642
        %2644 = vrot.lane.b32.xlu0 %v1012, 32
        %v2645 = vpop.permute.xlu0 %2644
        %2646 = vrot.lane.b32.xlu0 %v1013, 32
        %v2647 = vpop.permute.xlu0 %2646
        %2648 = vrot.lane.b32.xlu0 %v1014, 32
        %v2649 = vpop.permute.xlu0 %2648
        %2650 = vrot.lane.b32.xlu0 %v1015, 32
        %v2651 = vpop.permute.xlu0 %2650
        %v2654 = vpack.i.b16 %v2629, %v1012
        %v2656 = vshrl.u32 %v1012, 16
        %v2657 = vshrl.u32 %v2629, 16
        %v2658 = vpack.i.b16 %v2657, %v2656
        %v2662 = vpack.i.b16 %v2645, %v2637
        %v2664 = vshrl.u32 %v2637, 16
        %v2665 = vshrl.u32 %v2645, 16
        %v2666 = vpack.i.b16 %v2665, %v2664
        %v2670 = vpack.i.b16 %v2631, %v1013
        %v2672 = vshrl.u32 %v1013, 16
        %v2673 = vshrl.u32 %v2631, 16
        %v2674 = vpack.i.b16 %v2673, %v2672
        %v2678 = vpack.i.b16 %v2647, %v2639
        %v2680 = vshrl.u32 %v2639, 16
        %v2681 = vshrl.u32 %v2647, 16
        %v2682 = vpack.i.b16 %v2681, %v2680
        %v2686 = vpack.i.b16 %v2633, %v1014
        %v2688 = vshrl.u32 %v1014, 16
        %v2689 = vshrl.u32 %v2633, 16
        %v2690 = vpack.i.b16 %v2689, %v2688
        %v2694 = vpack.i.b16 %v2649, %v2641
        %v2696 = vshrl.u32 %v2641, 16
        %v2697 = vshrl.u32 %v2649, 16
        %v2698 = vpack.i.b16 %v2697, %v2696
        %v2702 = vpack.i.b16 %v2635, %v1015
        %v2704 = vshrl.u32 %v1015, 16
        %v2705 = vshrl.u32 %v2635, 16
        %v2706 = vpack.i.b16 %v2705, %v2704
        %v2710 = vpack.i.b16 %v2651, %v2643
        %v2712 = vshrl.u32 %v2643, 16
        %v2713 = vshrl.u32 %v2651, 16
        %v2714 = vpack.i.b16 %v2713, %v2712
        %v2716 = vcombine.high %v2654, %v1047
        %v2718 = vunpack.c.l.s4 1983009808
        %v2719 = vunpack.c.0.s8 %v2718
        %v2720 = vlaneseq
        %v2721 = vshrl.u32 %v2720, 7
        %v2722 = vsub.s32 %v2719, %v2721
        %v2723 = vrot.slane %v2654, %v2722
        %v2725 = vunpack.c.l.s4 1983009808
        %v2726 = vunpack.c.0.s8 %v2725
        %v2727 = vlaneseq
        %v2728 = vshrl.u32 %v2727, 7
        %v2729 = vsub.s32 %v2726, %v2728
        %v2730 = vrot.slane %v2716, %v2729
        %v2731 = vcombine.high %v2662, %v1047
        %v2733 = vunpack.c.l.s4 1983009808
        %v2734 = vunpack.c.0.s8 %v2733
        %v2735 = vlaneseq
        %v2736 = vshrl.u32 %v2735, 7
        %v2737 = vsub.s32 %v2734, %v2736
        %v2738 = vrot.slane %v2662, %v2737
        %v2740 = vunpack.c.l.s4 1983009808
        %v2741 = vunpack.c.0.s8 %v2740
        %v2742 = vlaneseq
        %v2743 = vshrl.u32 %v2742, 7
        %v2744 = vsub.s32 %v2741, %v2743
        %v2745 = vrot.slane %v2731, %v2744
        %v2746 = vcombine.low %v2723, %v2738
        %v2747 = vcombine.high %v2723, %v2738
        %v2749 = vunpack.c.l.s4 1934713408
        %v2750 = vunpack.c.0.s8 %v2749
        %v2751 = vlaneseq
        %v2752 = vshrl.u32 %v2751, 7
        %v2753 = vsub.s32 %v2750, %v2752
        %v2754 = vrot.slane %v2746, %v2753
        %v2756 = vunpack.c.l.s4 1934713408
        %v2757 = vunpack.c.0.s8 %v2756
        %v2758 = vlaneseq
        %v2759 = vshrl.u32 %v2758, 7
        %v2760 = vsub.s32 %v2757, %v2759
        %v2761 = vrot.slane %v2747, %v2760
        %v2762 = vcombine.low %v2730, %v2745
        %v2763 = vcombine.high %v2730, %v2745
        %v2765 = vunpack.c.l.s4 1934713408
        %v2766 = vunpack.c.0.s8 %v2765
        %v2767 = vlaneseq
        %v2768 = vshrl.u32 %v2767, 7
        %v2769 = vsub.s32 %v2766, %v2768
        %v2770 = vrot.slane %v2762, %v2769
        %v2772 = vunpack.c.l.s4 1934713408
        %v2773 = vunpack.c.0.s8 %v2772
        %v2774 = vlaneseq
        %v2775 = vshrl.u32 %v2774, 7
        %v2776 = vsub.s32 %v2773, %v2775
        %v2777 = vrot.slane %v2763, %v2776
        %v2778 = vcombine.high %v2754, 0
        %v2779 = vcombine.high %v2761, 0
        %v2780 = vcombine.high %v2770, 0
        %v2781 = vcombine.high %v2777, 0
        %v2782 = vcombine.high %v2658, %v1050
        %v2784 = vunpack.c.l.s4 1983009808
        %v2785 = vunpack.c.0.s8 %v2784
        %v2786 = vlaneseq
        %v2787 = vshrl.u32 %v2786, 7
        %v2788 = vsub.s32 %v2785, %v2787
        %v2789 = vrot.slane %v2658, %v2788
        %v2791 = vunpack.c.l.s4 1983009808
        %v2792 = vunpack.c.0.s8 %v2791
        %v2793 = vlaneseq
        %v2794 = vshrl.u32 %v2793, 7
        %v2795 = vsub.s32 %v2792, %v2794
        %v2796 = vrot.slane %v2782, %v2795
        %v2797 = vcombine.high %v2666, %v1050
        %v2799 = vunpack.c.l.s4 1983009808
        %v2800 = vunpack.c.0.s8 %v2799
        %v2801 = vlaneseq
        %v2802 = vshrl.u32 %v2801, 7
        %v2803 = vsub.s32 %v2800, %v2802
        %v2804 = vrot.slane %v2666, %v2803
        %v2806 = vunpack.c.l.s4 1983009808
        %v2807 = vunpack.c.0.s8 %v2806
        %v2808 = vlaneseq
        %v2809 = vshrl.u32 %v2808, 7
        %v2810 = vsub.s32 %v2807, %v2809
        %v2811 = vrot.slane %v2797, %v2810
        %v2812 = vcombine.low %v2789, %v2804
        %v2813 = vcombine.high %v2789, %v2804
        %v2815 = vunpack.c.l.s4 1934713408
        %v2816 = vunpack.c.0.s8 %v2815
        %v2817 = vlaneseq
        %v2818 = vshrl.u32 %v2817, 7
        %v2819 = vsub.s32 %v2816, %v2818
        %v2820 = vrot.slane %v2812, %v2819
        %v2822 = vunpack.c.l.s4 1934713408
        %v2823 = vunpack.c.0.s8 %v2822
        %v2824 = vlaneseq
        %v2825 = vshrl.u32 %v2824, 7
        %v2826 = vsub.s32 %v2823, %v2825
        %v2827 = vrot.slane %v2813, %v2826
        %v2828 = vcombine.low %v2796, %v2811
        %v2829 = vcombine.high %v2796, %v2811
        %v2831 = vunpack.c.l.s4 1934713408
        %v2832 = vunpack.c.0.s8 %v2831
        %v2833 = vlaneseq
        %v2834 = vshrl.u32 %v2833, 7
        %v2835 = vsub.s32 %v2832, %v2834
        %v2836 = vrot.slane %v2828, %v2835
        %v2838 = vunpack.c.l.s4 1934713408
        %v2839 = vunpack.c.0.s8 %v2838
        %v2840 = vlaneseq
        %v2841 = vshrl.u32 %v2840, 7
        %v2842 = vsub.s32 %v2839, %v2841
        %v2843 = vrot.slane %v2829, %v2842
        %v2844 = vcombine.high %v2820, 0
        %v2845 = vcombine.high %v2827, 0
        %v2846 = vcombine.high %v2836, 0
        %v2847 = vcombine.high %v2843, 0
        %v2848 = vcombine.high %v2670, %v1047
        %v2850 = vunpack.c.l.s4 1983009808
        %v2851 = vunpack.c.0.s8 %v2850
        %v2852 = vlaneseq
        %v2853 = vshrl.u32 %v2852, 7
        %v2854 = vsub.s32 %v2851, %v2853
        %v2855 = vrot.slane %v2670, %v2854
        %v2857 = vunpack.c.l.s4 1983009808
        %v2858 = vunpack.c.0.s8 %v2857
        %v2859 = vlaneseq
        %v2860 = vshrl.u32 %v2859, 7
        %v2861 = vsub.s32 %v2858, %v2860
        %v2862 = vrot.slane %v2848, %v2861
        %v2863 = vcombine.high %v2678, %v1047
        %v2865 = vunpack.c.l.s4 1983009808
        %v2866 = vunpack.c.0.s8 %v2865
        %v2867 = vlaneseq
        %v2868 = vshrl.u32 %v2867, 7
        %v2869 = vsub.s32 %v2866, %v2868
        %v2870 = vrot.slane %v2678, %v2869
        %v2872 = vunpack.c.l.s4 1983009808
        %v2873 = vunpack.c.0.s8 %v2872
        %v2874 = vlaneseq
        %v2875 = vshrl.u32 %v2874, 7
        %v2876 = vsub.s32 %v2873, %v2875
        %v2877 = vrot.slane %v2863, %v2876
        %v2878 = vcombine.low %v2855, %v2870
        %v2879 = vcombine.high %v2855, %v2870
        %v2881 = vunpack.c.l.s4 1934713408
        %v2882 = vunpack.c.0.s8 %v2881
        %v2883 = vlaneseq
        %v2884 = vshrl.u32 %v2883, 7
        %v2885 = vsub.s32 %v2882, %v2884
        %v2886 = vrot.slane %v2878, %v2885
        %v2888 = vunpack.c.l.s4 1934713408
        %v2889 = vunpack.c.0.s8 %v2888
        %v2890 = vlaneseq
        %v2891 = vshrl.u32 %v2890, 7
        %v2892 = vsub.s32 %v2889, %v2891
        %v2893 = vrot.slane %v2879, %v2892
        %v2894 = vcombine.low %v2862, %v2877
        %v2895 = vcombine.high %v2862, %v2877
        %v2897 = vunpack.c.l.s4 1934713408
        %v2898 = vunpack.c.0.s8 %v2897
        %v2899 = vlaneseq
        %v2900 = vshrl.u32 %v2899, 7
        %v2901 = vsub.s32 %v2898, %v2900
        %v2902 = vrot.slane %v2894, %v2901
        %v2904 = vunpack.c.l.s4 1934713408
        %v2905 = vunpack.c.0.s8 %v2904
        %v2906 = vlaneseq
        %v2907 = vshrl.u32 %v2906, 7
        %v2908 = vsub.s32 %v2905, %v2907
        %v2909 = vrot.slane %v2895, %v2908
        %v2910 = vcombine.high %v2886, 0
        %v2911 = vcombine.high %v2893, 0
        %v2912 = vcombine.high %v2902, 0
        %v2913 = vcombine.high %v2909, 0
        %v2914 = vcombine.high %v2674, %v1050
        %v2916 = vunpack.c.l.s4 1983009808
        %v2917 = vunpack.c.0.s8 %v2916
        %v2918 = vlaneseq
        %v2919 = vshrl.u32 %v2918, 7
        %v2920 = vsub.s32 %v2917, %v2919
        %v2921 = vrot.slane %v2674, %v2920
        %v2923 = vunpack.c.l.s4 1983009808
        %v2924 = vunpack.c.0.s8 %v2923
        %v2925 = vlaneseq
        %v2926 = vshrl.u32 %v2925, 7
        %v2927 = vsub.s32 %v2924, %v2926
        %v2928 = vrot.slane %v2914, %v2927
        %v2929 = vcombine.high %v2682, %v1050
        %v2931 = vunpack.c.l.s4 1983009808
        %v2932 = vunpack.c.0.s8 %v2931
        %v2933 = vlaneseq
        %v2934 = vshrl.u32 %v2933, 7
        %v2935 = vsub.s32 %v2932, %v2934
        %v2936 = vrot.slane %v2682, %v2935
        %v2938 = vunpack.c.l.s4 1983009808
        %v2939 = vunpack.c.0.s8 %v2938
        %v2940 = vlaneseq
        %v2941 = vshrl.u32 %v2940, 7
        %v2942 = vsub.s32 %v2939, %v2941
        %v2943 = vrot.slane %v2929, %v2942
        %v2944 = vcombine.low %v2921, %v2936
        %v2945 = vcombine.high %v2921, %v2936
        %v2947 = vunpack.c.l.s4 1934713408
        %v2948 = vunpack.c.0.s8 %v2947
        %v2949 = vlaneseq
        %v2950 = vshrl.u32 %v2949, 7
        %v2951 = vsub.s32 %v2948, %v2950
        %v2952 = vrot.slane %v2944, %v2951
        %v2954 = vunpack.c.l.s4 1934713408
        %v2955 = vunpack.c.0.s8 %v2954
        %v2956 = vlaneseq
        %v2957 = vshrl.u32 %v2956, 7
        %v2958 = vsub.s32 %v2955, %v2957
        %v2959 = vrot.slane %v2945, %v2958
        %v2960 = vcombine.low %v2928, %v2943
        %v2961 = vcombine.high %v2928, %v2943
        %v2963 = vunpack.c.l.s4 1934713408
        %v2964 = vunpack.c.0.s8 %v2963
        %v2965 = vlaneseq
        %v2966 = vshrl.u32 %v2965, 7
        %v2967 = vsub.s32 %v2964, %v2966
        %v2968 = vrot.slane %v2960, %v2967
        %v2970 = vunpack.c.l.s4 1934713408
        %v2971 = vunpack.c.0.s8 %v2970
        %v2972 = vlaneseq
        %v2973 = vshrl.u32 %v2972, 7
        %v2974 = vsub.s32 %v2971, %v2973
        %v2975 = vrot.slane %v2961, %v2974
        %v2976 = vcombine.high %v2952, 0
        %v2977 = vcombine.high %v2959, 0
        %v2978 = vcombine.high %v2968, 0
        %v2979 = vcombine.high %v2975, 0
        %v2980 = vcombine.high %v2686, %v1047
        %v2982 = vunpack.c.l.s4 1983009808
        %v2983 = vunpack.c.0.s8 %v2982
        %v2984 = vlaneseq
        %v2985 = vshrl.u32 %v2984, 7
        %v2986 = vsub.s32 %v2983, %v2985
        %v2987 = vrot.slane %v2686, %v2986
        %v2989 = vunpack.c.l.s4 1983009808
        %v2990 = vunpack.c.0.s8 %v2989
        %v2991 = vlaneseq
        %v2992 = vshrl.u32 %v2991, 7
        %v2993 = vsub.s32 %v2990, %v2992
        %v2994 = vrot.slane %v2980, %v2993
        %v2995 = vcombine.high %v2694, %v1047
        %v2997 = vunpack.c.l.s4 1983009808
        %v2998 = vunpack.c.0.s8 %v2997
        %v2999 = vlaneseq
        %v3000 = vshrl.u32 %v2999, 7
        %v3001 = vsub.s32 %v2998, %v3000
        %v3002 = vrot.slane %v2694, %v3001
        %v3004 = vunpack.c.l.s4 1983009808
        %v3005 = vunpack.c.0.s8 %v3004
        %v3006 = vlaneseq
        %v3007 = vshrl.u32 %v3006, 7
        %v3008 = vsub.s32 %v3005, %v3007
        %v3009 = vrot.slane %v2995, %v3008
        %v3010 = vcombine.low %v2987, %v3002
        %v3011 = vcombine.high %v2987, %v3002
        %v3013 = vunpack.c.l.s4 1934713408
        %v3014 = vunpack.c.0.s8 %v3013
        %v3015 = vlaneseq
        %v3016 = vshrl.u32 %v3015, 7
        %v3017 = vsub.s32 %v3014, %v3016
        %v3018 = vrot.slane %v3010, %v3017
        %v3020 = vunpack.c.l.s4 1934713408
        %v3021 = vunpack.c.0.s8 %v3020
        %v3022 = vlaneseq
        %v3023 = vshrl.u32 %v3022, 7
        %v3024 = vsub.s32 %v3021, %v3023
        %v3025 = vrot.slane %v3011, %v3024
        %v3026 = vcombine.low %v2994, %v3009
        %v3027 = vcombine.high %v2994, %v3009
        %v3029 = vunpack.c.l.s4 1934713408
        %v3030 = vunpack.c.0.s8 %v3029
        %v3031 = vlaneseq
        %v3032 = vshrl.u32 %v3031, 7
        %v3033 = vsub.s32 %v3030, %v3032
        %v3034 = vrot.slane %v3026, %v3033
        %v3036 = vunpack.c.l.s4 1934713408
        %v3037 = vunpack.c.0.s8 %v3036
        %v3038 = vlaneseq
        %v3039 = vshrl.u32 %v3038, 7
        %v3040 = vsub.s32 %v3037, %v3039
        %v3041 = vrot.slane %v3027, %v3040
        %v3042 = vcombine.high %v3018, 0
        %v3043 = vcombine.high %v3025, 0
        %v3044 = vcombine.high %v3034, 0
        %v3045 = vcombine.high %v3041, 0
        %v3046 = vcombine.high %v2690, %v1050
        %v3048 = vunpack.c.l.s4 1983009808
        %v3049 = vunpack.c.0.s8 %v3048
        %v3050 = vlaneseq
        %v3051 = vshrl.u32 %v3050, 7
        %v3052 = vsub.s32 %v3049, %v3051
        %v3053 = vrot.slane %v2690, %v3052
        %v3055 = vunpack.c.l.s4 1983009808
        %v3056 = vunpack.c.0.s8 %v3055
        %v3057 = vlaneseq
        %v3058 = vshrl.u32 %v3057, 7
        %v3059 = vsub.s32 %v3056, %v3058
        %v3060 = vrot.slane %v3046, %v3059
        %v3061 = vcombine.high %v2698, %v1050
        %v3063 = vunpack.c.l.s4 1983009808
        %v3064 = vunpack.c.0.s8 %v3063
        %v3065 = vlaneseq
        %v3066 = vshrl.u32 %v3065, 7
        %v3067 = vsub.s32 %v3064, %v3066
        %v3068 = vrot.slane %v2698, %v3067
        %v3070 = vunpack.c.l.s4 1983009808
        %v3071 = vunpack.c.0.s8 %v3070
        %v3072 = vlaneseq
        %v3073 = vshrl.u32 %v3072, 7
        %v3074 = vsub.s32 %v3071, %v3073
        %v3075 = vrot.slane %v3061, %v3074
        %v3076 = vcombine.low %v3053, %v3068
        %v3077 = vcombine.high %v3053, %v3068
        %v3079 = vunpack.c.l.s4 1934713408
        %v3080 = vunpack.c.0.s8 %v3079
        %v3081 = vlaneseq
        %v3082 = vshrl.u32 %v3081, 7
        %v3083 = vsub.s32 %v3080, %v3082
        %v3084 = vrot.slane %v3076, %v3083
        %v3086 = vunpack.c.l.s4 1934713408
        %v3087 = vunpack.c.0.s8 %v3086
        %v3088 = vlaneseq
        %v3089 = vshrl.u32 %v3088, 7
        %v3090 = vsub.s32 %v3087, %v3089
        %v3091 = vrot.slane %v3077, %v3090
        %v3092 = vcombine.low %v3060, %v3075
        %v3093 = vcombine.high %v3060, %v3075
        %v3095 = vunpack.c.l.s4 1934713408
        %v3096 = vunpack.c.0.s8 %v3095
        %v3097 = vlaneseq
        %v3098 = vshrl.u32 %v3097, 7
        %v3099 = vsub.s32 %v3096, %v3098
        %v3100 = vrot.slane %v3092, %v3099
        %v3102 = vunpack.c.l.s4 1934713408
        %v3103 = vunpack.c.0.s8 %v3102
        %v3104 = vlaneseq
        %v3105 = vshrl.u32 %v3104, 7
        %v3106 = vsub.s32 %v3103, %v3105
        %v3107 = vrot.slane %v3093, %v3106
        %v3108 = vcombine.high %v3084, 0
        %v3109 = vcombine.high %v3091, 0
        %v3110 = vcombine.high %v3100, 0
        %v3111 = vcombine.high %v3107, 0
        %v3112 = vcombine.high %v2702, %v1047
        %v3114 = vunpack.c.l.s4 1983009808
        %v3115 = vunpack.c.0.s8 %v3114
        %v3116 = vlaneseq
        %v3117 = vshrl.u32 %v3116, 7
        %v3118 = vsub.s32 %v3115, %v3117
        %v3119 = vrot.slane %v2702, %v3118
        %v3121 = vunpack.c.l.s4 1983009808
        %v3122 = vunpack.c.0.s8 %v3121
        %v3123 = vlaneseq
        %v3124 = vshrl.u32 %v3123, 7
        %v3125 = vsub.s32 %v3122, %v3124
        %v3126 = vrot.slane %v3112, %v3125
        %v3127 = vcombine.high %v2710, %v1047
        %v3129 = vunpack.c.l.s4 1983009808
        %v3130 = vunpack.c.0.s8 %v3129
        %v3131 = vlaneseq
        %v3132 = vshrl.u32 %v3131, 7
        %v3133 = vsub.s32 %v3130, %v3132
        %v3134 = vrot.slane %v2710, %v3133
        %v3136 = vunpack.c.l.s4 1983009808
        %v3137 = vunpack.c.0.s8 %v3136
        %v3138 = vlaneseq
        %v3139 = vshrl.u32 %v3138, 7
        %v3140 = vsub.s32 %v3137, %v3139
        %v3141 = vrot.slane %v3127, %v3140
        %v3142 = vcombine.low %v3119, %v3134
        %v3143 = vcombine.high %v3119, %v3134
        %v3145 = vunpack.c.l.s4 1934713408
        %v3146 = vunpack.c.0.s8 %v3145
        %v3147 = vlaneseq
        %v3148 = vshrl.u32 %v3147, 7
        %v3149 = vsub.s32 %v3146, %v3148
        %v3150 = vrot.slane %v3142, %v3149
        %v3152 = vunpack.c.l.s4 1934713408
        %v3153 = vunpack.c.0.s8 %v3152
        %v3154 = vlaneseq
        %v3155 = vshrl.u32 %v3154, 7
        %v3156 = vsub.s32 %v3153, %v3155
        %v3157 = vrot.slane %v3143, %v3156
        %v3158 = vcombine.low %v3126, %v3141
        %v3159 = vcombine.high %v3126, %v3141
        %v3161 = vunpack.c.l.s4 1934713408
        %v3162 = vunpack.c.0.s8 %v3161
        %v3163 = vlaneseq
        %v3164 = vshrl.u32 %v3163, 7
        %v3165 = vsub.s32 %v3162, %v3164
        %v3166 = vrot.slane %v3158, %v3165
        %v3168 = vunpack.c.l.s4 1934713408
        %v3169 = vunpack.c.0.s8 %v3168
        %v3170 = vlaneseq
        %v3171 = vshrl.u32 %v3170, 7
        %v3172 = vsub.s32 %v3169, %v3171
        %v3173 = vrot.slane %v3159, %v3172
        %v3174 = vcombine.high %v3150, 0
        %v3175 = vcombine.high %v3157, 0
        %v3176 = vcombine.high %v3166, 0
        %v3177 = vcombine.high %v3173, 0
        %v3178 = vcombine.high %v2706, %v1050
        %v3180 = vunpack.c.l.s4 1983009808
        %v3181 = vunpack.c.0.s8 %v3180
        %v3182 = vlaneseq
        %v3183 = vshrl.u32 %v3182, 7
        %v3184 = vsub.s32 %v3181, %v3183
        %v3185 = vrot.slane %v2706, %v3184
        %v3187 = vunpack.c.l.s4 1983009808
        %v3188 = vunpack.c.0.s8 %v3187
        %v3189 = vlaneseq
        %v3190 = vshrl.u32 %v3189, 7
        %v3191 = vsub.s32 %v3188, %v3190
        %v3192 = vrot.slane %v3178, %v3191
        %v3193 = vcombine.high %v2714, %v1050
        %v3195 = vunpack.c.l.s4 1983009808
        %v3196 = vunpack.c.0.s8 %v3195
        %v3197 = vlaneseq
        %v3198 = vshrl.u32 %v3197, 7
        %v3199 = vsub.s32 %v3196, %v3198
        %v3200 = vrot.slane %v2714, %v3199
        %v3202 = vunpack.c.l.s4 1983009808
        %v3203 = vunpack.c.0.s8 %v3202
        %v3204 = vlaneseq
        %v3205 = vshrl.u32 %v3204, 7
        %v3206 = vsub.s32 %v3203, %v3205
        %v3207 = vrot.slane %v3193, %v3206
        %v3208 = vcombine.low %v3185, %v3200
        %v3209 = vcombine.high %v3185, %v3200
        %v3211 = vunpack.c.l.s4 1934713408
        %v3212 = vunpack.c.0.s8 %v3211
        %v3213 = vlaneseq
        %v3214 = vshrl.u32 %v3213, 7
        %v3215 = vsub.s32 %v3212, %v3214
        %v3216 = vrot.slane %v3208, %v3215
        %v3218 = vunpack.c.l.s4 1934713408
        %v3219 = vunpack.c.0.s8 %v3218
        %v3220 = vlaneseq
        %v3221 = vshrl.u32 %v3220, 7
        %v3222 = vsub.s32 %v3219, %v3221
        %v3223 = vrot.slane %v3209, %v3222
        %v3224 = vcombine.low %v3192, %v3207
        %v3225 = vcombine.high %v3192, %v3207
        %v3227 = vunpack.c.l.s4 1934713408
        %v3228 = vunpack.c.0.s8 %v3227
        %v3229 = vlaneseq
        %v3230 = vshrl.u32 %v3229, 7
        %v3231 = vsub.s32 %v3228, %v3230
        %v3232 = vrot.slane %v3224, %v3231
        %v3234 = vunpack.c.l.s4 1934713408
        %v3235 = vunpack.c.0.s8 %v3234
        %v3236 = vlaneseq
        %v3237 = vshrl.u32 %v3236, 7
        %v3238 = vsub.s32 %v3235, %v3237
        %v3239 = vrot.slane %v3225, %v3238
        %v3240 = vcombine.high %v3216, 0
        %v3241 = vcombine.high %v3223, 0
        %v3242 = vcombine.high %v3232, 0
        %v3243 = vcombine.high %v3239, 0
        %v3244 = vcombine.low %v2754, %v2761
        %v3246 = vunpack.c.l.s4 1983009808
        %v3247 = vunpack.c.0.s8 %v3246
        %v3248 = vlaneseq
        %v3249 = vshrl.u32 %v3248, 7
        %v3250 = vsub.s32 %v3247, %v3249
        %v3251 = vrot.slane %v3244, %v3250
        %v3252 = vcombine.low %v2778, %v2779
        %v3254 = vunpack.c.l.s4 1983009808
        %v3255 = vunpack.c.0.s8 %v3254
        %v3256 = vlaneseq
        %v3257 = vshrl.u32 %v3256, 7
        %v3258 = vsub.s32 %v3255, %v3257
        %v3259 = vrot.slane %v3252, %v3258
        %v3260 = vcombine.low %v2770, %v2777
        %v3262 = vunpack.c.l.s4 1983009808
        %v3263 = vunpack.c.0.s8 %v3262
        %v3264 = vlaneseq
        %v3265 = vshrl.u32 %v3264, 7
        %v3266 = vsub.s32 %v3263, %v3265
        %v3267 = vrot.slane %v3260, %v3266
        %v3268 = vcombine.low %v2780, %v2781
        %v3270 = vunpack.c.l.s4 1983009808
        %v3271 = vunpack.c.0.s8 %v3270
        %v3272 = vlaneseq
        %v3273 = vshrl.u32 %v3272, 7
        %v3274 = vsub.s32 %v3271, %v3273
        %v3275 = vrot.slane %v3268, %v3274
        %v3276 = vcombine.low %v3251, %v3259
        %v3278 = vunpack.c.l.s4 1934713408
        %v3279 = vunpack.c.0.s8 %v3278
        %v3280 = vlaneseq
        %v3281 = vshrl.u32 %v3280, 7
        %v3282 = vsub.s32 %v3279, %v3281
        %v3283 = vrot.slane %v3276, %v3282
        %v3284 = vcombine.low %v3267, %v3275
        %v3286 = vunpack.c.l.s4 1934713408
        %v3287 = vunpack.c.0.s8 %v3286
        %v3288 = vlaneseq
        %v3289 = vshrl.u32 %v3288, 7
        %v3290 = vsub.s32 %v3287, %v3289
        %v3291 = vrot.slane %v3284, %v3290
        %v3292 = vcombine.low %v3283, %v3291
        %v3293 = vcombine.high %v3283, %v3291
        %v3294 = vcombine.low %v2820, %v2827
        %v3296 = vunpack.c.l.s4 1983009808
        %v3297 = vunpack.c.0.s8 %v3296
        %v3298 = vlaneseq
        %v3299 = vshrl.u32 %v3298, 7
        %v3300 = vsub.s32 %v3297, %v3299
        %v3301 = vrot.slane %v3294, %v3300
        %v3302 = vcombine.low %v2844, %v2845
        %v3304 = vunpack.c.l.s4 1983009808
        %v3305 = vunpack.c.0.s8 %v3304
        %v3306 = vlaneseq
        %v3307 = vshrl.u32 %v3306, 7
        %v3308 = vsub.s32 %v3305, %v3307
        %v3309 = vrot.slane %v3302, %v3308
        %v3310 = vcombine.low %v2836, %v2843
        %v3312 = vunpack.c.l.s4 1983009808
        %v3313 = vunpack.c.0.s8 %v3312
        %v3314 = vlaneseq
        %v3315 = vshrl.u32 %v3314, 7
        %v3316 = vsub.s32 %v3313, %v3315
        %v3317 = vrot.slane %v3310, %v3316
        %v3318 = vcombine.low %v2846, %v2847
        %v3320 = vunpack.c.l.s4 1983009808
        %v3321 = vunpack.c.0.s8 %v3320
        %v3322 = vlaneseq
        %v3323 = vshrl.u32 %v3322, 7
        %v3324 = vsub.s32 %v3321, %v3323
        %v3325 = vrot.slane %v3318, %v3324
        %v3326 = vcombine.low %v3301, %v3309
        %v3328 = vunpack.c.l.s4 1934713408
        %v3329 = vunpack.c.0.s8 %v3328
        %v3330 = vlaneseq
        %v3331 = vshrl.u32 %v3330, 7
        %v3332 = vsub.s32 %v3329, %v3331
        %v3333 = vrot.slane %v3326, %v3332
        %v3334 = vcombine.low %v3317, %v3325
        %v3336 = vunpack.c.l.s4 1934713408
        %v3337 = vunpack.c.0.s8 %v3336
        %v3338 = vlaneseq
        %v3339 = vshrl.u32 %v3338, 7
        %v3340 = vsub.s32 %v3337, %v3339
        %v3341 = vrot.slane %v3334, %v3340
        %v3342 = vcombine.low %v3333, %v3341
        %v3343 = vcombine.high %v3333, %v3341
        %v3344 = vcombine.low %v2886, %v2893
        %v3346 = vunpack.c.l.s4 1983009808
        %v3347 = vunpack.c.0.s8 %v3346
        %v3348 = vlaneseq
        %v3349 = vshrl.u32 %v3348, 7
        %v3350 = vsub.s32 %v3347, %v3349
        %v3351 = vrot.slane %v3344, %v3350
        %v3352 = vcombine.low %v2910, %v2911
        %v3354 = vunpack.c.l.s4 1983009808
        %v3355 = vunpack.c.0.s8 %v3354
        %v3356 = vlaneseq
        %v3357 = vshrl.u32 %v3356, 7
        %v3358 = vsub.s32 %v3355, %v3357
        %v3359 = vrot.slane %v3352, %v3358
        %v3360 = vcombine.low %v2902, %v2909
        %v3362 = vunpack.c.l.s4 1983009808
        %v3363 = vunpack.c.0.s8 %v3362
        %v3364 = vlaneseq
        %v3365 = vshrl.u32 %v3364, 7
        %v3366 = vsub.s32 %v3363, %v3365
        %v3367 = vrot.slane %v3360, %v3366
        %v3368 = vcombine.low %v2912, %v2913
        %v3370 = vunpack.c.l.s4 1983009808
        %v3371 = vunpack.c.0.s8 %v3370
        %v3372 = vlaneseq
        %v3373 = vshrl.u32 %v3372, 7
        %v3374 = vsub.s32 %v3371, %v3373
        %v3375 = vrot.slane %v3368, %v3374
        %v3376 = vcombine.low %v3351, %v3359
        %v3378 = vunpack.c.l.s4 1934713408
        %v3379 = vunpack.c.0.s8 %v3378
        %v3380 = vlaneseq
        %v3381 = vshrl.u32 %v3380, 7
        %v3382 = vsub.s32 %v3379, %v3381
        %v3383 = vrot.slane %v3376, %v3382
        %v3384 = vcombine.low %v3367, %v3375
        %v3386 = vunpack.c.l.s4 1934713408
        %v3387 = vunpack.c.0.s8 %v3386
        %v3388 = vlaneseq
        %v3389 = vshrl.u32 %v3388, 7
        %v3390 = vsub.s32 %v3387, %v3389
        %v3391 = vrot.slane %v3384, %v3390
        %v3392 = vcombine.low %v3383, %v3391
        %v3393 = vcombine.high %v3383, %v3391
        %v3394 = vcombine.low %v2952, %v2959
        %v3396 = vunpack.c.l.s4 1983009808
        %v3397 = vunpack.c.0.s8 %v3396
        %v3398 = vlaneseq
        %v3399 = vshrl.u32 %v3398, 7
        %v3400 = vsub.s32 %v3397, %v3399
        %v3401 = vrot.slane %v3394, %v3400
        %v3402 = vcombine.low %v2976, %v2977
        %v3404 = vunpack.c.l.s4 1983009808
        %v3405 = vunpack.c.0.s8 %v3404
        %v3406 = vlaneseq
        %v3407 = vshrl.u32 %v3406, 7
        %v3408 = vsub.s32 %v3405, %v3407
        %v3409 = vrot.slane %v3402, %v3408
        %v3410 = vcombine.low %v2968, %v2975
        %v3412 = vunpack.c.l.s4 1983009808
        %v3413 = vunpack.c.0.s8 %v3412
        %v3414 = vlaneseq
        %v3415 = vshrl.u32 %v3414, 7
        %v3416 = vsub.s32 %v3413, %v3415
        %v3417 = vrot.slane %v3410, %v3416
        %v3418 = vcombine.low %v2978, %v2979
        %v3420 = vunpack.c.l.s4 1983009808
        %v3421 = vunpack.c.0.s8 %v3420
        %v3422 = vlaneseq
        %v3423 = vshrl.u32 %v3422, 7
        %v3424 = vsub.s32 %v3421, %v3423
        %v3425 = vrot.slane %v3418, %v3424
        %v3426 = vcombine.low %v3401, %v3409
        %v3428 = vunpack.c.l.s4 1934713408
        %v3429 = vunpack.c.0.s8 %v3428
        %v3430 = vlaneseq
        %v3431 = vshrl.u32 %v3430, 7
        %v3432 = vsub.s32 %v3429, %v3431
        %v3433 = vrot.slane %v3426, %v3432
        %v3434 = vcombine.low %v3417, %v3425
        %v3436 = vunpack.c.l.s4 1934713408
        %v3437 = vunpack.c.0.s8 %v3436
        %v3438 = vlaneseq
        %v3439 = vshrl.u32 %v3438, 7
        %v3440 = vsub.s32 %v3437, %v3439
        %v3441 = vrot.slane %v3434, %v3440
        %v3442 = vcombine.low %v3433, %v3441
        %v3443 = vcombine.high %v3433, %v3441
        %v3444 = vcombine.low %v3018, %v3025
        %v3446 = vunpack.c.l.s4 1983009808
        %v3447 = vunpack.c.0.s8 %v3446
        %v3448 = vlaneseq
        %v3449 = vshrl.u32 %v3448, 7
        %v3450 = vsub.s32 %v3447, %v3449
        %v3451 = vrot.slane %v3444, %v3450
        %v3452 = vcombine.low %v3042, %v3043
        %v3454 = vunpack.c.l.s4 1983009808
        %v3455 = vunpack.c.0.s8 %v3454
        %v3456 = vlaneseq
        %v3457 = vshrl.u32 %v3456, 7
        %v3458 = vsub.s32 %v3455, %v3457
        %v3459 = vrot.slane %v3452, %v3458
        %v3460 = vcombine.low %v3034, %v3041
        %v3462 = vunpack.c.l.s4 1983009808
        %v3463 = vunpack.c.0.s8 %v3462
        %v3464 = vlaneseq
        %v3465 = vshrl.u32 %v3464, 7
        %v3466 = vsub.s32 %v3463, %v3465
        %v3467 = vrot.slane %v3460, %v3466
        %v3468 = vcombine.low %v3044, %v3045
        %v3470 = vunpack.c.l.s4 1983009808
        %v3471 = vunpack.c.0.s8 %v3470
        %v3472 = vlaneseq
        %v3473 = vshrl.u32 %v3472, 7
        %v3474 = vsub.s32 %v3471, %v3473
        %v3475 = vrot.slane %v3468, %v3474
        %v3476 = vcombine.low %v3451, %v3459
        %v3478 = vunpack.c.l.s4 1934713408
        %v3479 = vunpack.c.0.s8 %v3478
        %v3480 = vlaneseq
        %v3481 = vshrl.u32 %v3480, 7
        %v3482 = vsub.s32 %v3479, %v3481
        %v3483 = vrot.slane %v3476, %v3482
        %v3484 = vcombine.low %v3467, %v3475
        %v3486 = vunpack.c.l.s4 1934713408
        %v3487 = vunpack.c.0.s8 %v3486
        %v3488 = vlaneseq
        %v3489 = vshrl.u32 %v3488, 7
        %v3490 = vsub.s32 %v3487, %v3489
        %v3491 = vrot.slane %v3484, %v3490
        %v3492 = vcombine.low %v3483, %v3491
        %v3493 = vcombine.high %v3483, %v3491
        %v3494 = vcombine.low %v3084, %v3091
        %v3496 = vunpack.c.l.s4 1983009808
        %v3497 = vunpack.c.0.s8 %v3496
        %v3498 = vlaneseq
        %v3499 = vshrl.u32 %v3498, 7
        %v3500 = vsub.s32 %v3497, %v3499
        %v3501 = vrot.slane %v3494, %v3500
        %v3502 = vcombine.low %v3108, %v3109
        %v3504 = vunpack.c.l.s4 1983009808
        %v3505 = vunpack.c.0.s8 %v3504
        %v3506 = vlaneseq
        %v3507 = vshrl.u32 %v3506, 7
        %v3508 = vsub.s32 %v3505, %v3507
        %v3509 = vrot.slane %v3502, %v3508
        %v3510 = vcombine.low %v3100, %v3107
        %v3512 = vunpack.c.l.s4 1983009808
        %v3513 = vunpack.c.0.s8 %v3512
        %v3514 = vlaneseq
        %v3515 = vshrl.u32 %v3514, 7
        %v3516 = vsub.s32 %v3513, %v3515
        %v3517 = vrot.slane %v3510, %v3516
        %v3518 = vcombine.low %v3110, %v3111
        %v3520 = vunpack.c.l.s4 1983009808
        %v3521 = vunpack.c.0.s8 %v3520
        %v3522 = vlaneseq
        %v3523 = vshrl.u32 %v3522, 7
        %v3524 = vsub.s32 %v3521, %v3523
        %v3525 = vrot.slane %v3518, %v3524
        %v3526 = vcombine.low %v3501, %v3509
        %v3528 = vunpack.c.l.s4 1934713408
        %v3529 = vunpack.c.0.s8 %v3528
        %v3530 = vlaneseq
        %v3531 = vshrl.u32 %v3530, 7
        %v3532 = vsub.s32 %v3529, %v3531
        %v3533 = vrot.slane %v3526, %v3532
        %v3534 = vcombine.low %v3517, %v3525
        %v3536 = vunpack.c.l.s4 1934713408
        %v3537 = vunpack.c.0.s8 %v3536
        %v3538 = vlaneseq
        %v3539 = vshrl.u32 %v3538, 7
        %v3540 = vsub.s32 %v3537, %v3539
        %v3541 = vrot.slane %v3534, %v3540
        %v3542 = vcombine.low %v3533, %v3541
        %v3543 = vcombine.high %v3533, %v3541
        %v3544 = vcombine.low %v3150, %v3157
        %v3546 = vunpack.c.l.s4 1983009808
        %v3547 = vunpack.c.0.s8 %v3546
        %v3548 = vlaneseq
        %v3549 = vshrl.u32 %v3548, 7
        %v3550 = vsub.s32 %v3547, %v3549
        %v3551 = vrot.slane %v3544, %v3550
        %v3552 = vcombine.low %v3174, %v3175
        %v3554 = vunpack.c.l.s4 1983009808
        %v3555 = vunpack.c.0.s8 %v3554
        %v3556 = vlaneseq
        %v3557 = vshrl.u32 %v3556, 7
        %v3558 = vsub.s32 %v3555, %v3557
        %v3559 = vrot.slane %v3552, %v3558
        %v3560 = vcombine.low %v3166, %v3173
        %v3562 = vunpack.c.l.s4 1983009808
        %v3563 = vunpack.c.0.s8 %v3562
        %v3564 = vlaneseq
        %v3565 = vshrl.u32 %v3564, 7
        %v3566 = vsub.s32 %v3563, %v3565
        %v3567 = vrot.slane %v3560, %v3566
        %v3568 = vcombine.low %v3176, %v3177
        %v3570 = vunpack.c.l.s4 1983009808
        %v3571 = vunpack.c.0.s8 %v3570
        %v3572 = vlaneseq
        %v3573 = vshrl.u32 %v3572, 7
        %v3574 = vsub.s32 %v3571, %v3573
        %v3575 = vrot.slane %v3568, %v3574
        %v3576 = vcombine.low %v3551, %v3559
        %v3578 = vunpack.c.l.s4 1934713408
        %v3579 = vunpack.c.0.s8 %v3578
        %v3580 = vlaneseq
        %v3581 = vshrl.u32 %v3580, 7
        %v3582 = vsub.s32 %v3579, %v3581
        %v3583 = vrot.slane %v3576, %v3582
        %v3584 = vcombine.low %v3567, %v3575
        %v3586 = vunpack.c.l.s4 1934713408
        %v3587 = vunpack.c.0.s8 %v3586
        %v3588 = vlaneseq
        %v3589 = vshrl.u32 %v3588, 7
        %v3590 = vsub.s32 %v3587, %v3589
        %v3591 = vrot.slane %v3584, %v3590
        %v3592 = vcombine.low %v3583, %v3591
        %v3593 = vcombine.high %v3583, %v3591
        %v3594 = vcombine.low %v3216, %v3223
        %v3596 = vunpack.c.l.s4 1983009808
        %v3597 = vunpack.c.0.s8 %v3596
        %v3598 = vlaneseq
        %v3599 = vshrl.u32 %v3598, 7
        %v3600 = vsub.s32 %v3597, %v3599
        %v3601 = vrot.slane %v3594, %v3600
        %v3602 = vcombine.low %v3240, %v3241
        %v3604 = vunpack.c.l.s4 1983009808
        %v3605 = vunpack.c.0.s8 %v3604
        %v3606 = vlaneseq
        %v3607 = vshrl.u32 %v3606, 7
        %v3608 = vsub.s32 %v3605, %v3607
        %v3609 = vrot.slane %v3602, %v3608
        %v3610 = vcombine.low %v3232, %v3239
        %v3612 = vunpack.c.l.s4 1983009808
        %v3613 = vunpack.c.0.s8 %v3612
        %v3614 = vlaneseq
        %v3615 = vshrl.u32 %v3614, 7
        %v3616 = vsub.s32 %v3613, %v3615
        %v3617 = vrot.slane %v3610, %v3616
        %v3618 = vcombine.low %v3242, %v3243
        %v3620 = vunpack.c.l.s4 1983009808
        %v3621 = vunpack.c.0.s8 %v3620
        %v3622 = vlaneseq
        %v3623 = vshrl.u32 %v3622, 7
        %v3624 = vsub.s32 %v3621, %v3623
        %v3625 = vrot.slane %v3618, %v3624
        %v3626 = vcombine.low %v3601, %v3609
        %v3628 = vunpack.c.l.s4 1934713408
        %v3629 = vunpack.c.0.s8 %v3628
        %v3630 = vlaneseq
        %v3631 = vshrl.u32 %v3630, 7
        %v3632 = vsub.s32 %v3629, %v3631
        %v3633 = vrot.slane %v3626, %v3632
        %v3634 = vcombine.low %v3617, %v3625
        %v3636 = vunpack.c.l.s4 1934713408
        %v3637 = vunpack.c.0.s8 %v3636
        %v3638 = vlaneseq
        %v3639 = vshrl.u32 %v3638, 7
        %v3640 = vsub.s32 %v3637, %v3639
        %v3641 = vrot.slane %v3634, %v3640
        %v3642 = vcombine.low %v3633, %v3641
        %v3643 = vcombine.high %v3633, %v3641
        %v3646 = vpack.i.b16 %v3342, %v3292
        %v3648 = vshrl.u32 %v3292, 16
        %v3649 = vshrl.u32 %v3342, 16
        %v3650 = vpack.i.b16 %v3649, %v3648
        %v3654 = vpack.i.b16 %v3343, %v3293
        %v3656 = vshrl.u32 %v3293, 16
        %v3657 = vshrl.u32 %v3343, 16
        %v3658 = vpack.i.b16 %v3657, %v3656
        %v3662 = vpack.i.b16 %v3442, %v3392
        %v3664 = vshrl.u32 %v3392, 16
        %v3665 = vshrl.u32 %v3442, 16
        %v3666 = vpack.i.b16 %v3665, %v3664
        %v3670 = vpack.i.b16 %v3443, %v3393
        %v3672 = vshrl.u32 %v3393, 16
        %v3673 = vshrl.u32 %v3443, 16
        %v3674 = vpack.i.b16 %v3673, %v3672
        %v3678 = vpack.i.b16 %v3542, %v3492
        %v3680 = vshrl.u32 %v3492, 16
        %v3681 = vshrl.u32 %v3542, 16
        %v3682 = vpack.i.b16 %v3681, %v3680
        %v3686 = vpack.i.b16 %v3543, %v3493
        %v3688 = vshrl.u32 %v3493, 16
        %v3689 = vshrl.u32 %v3543, 16
        %v3690 = vpack.i.b16 %v3689, %v3688
        %v3694 = vpack.i.b16 %v3642, %v3592
        %v3696 = vshrl.u32 %v3592, 16
        %v3697 = vshrl.u32 %v3642, 16
        %v3698 = vpack.i.b16 %v3697, %v3696
        %v3702 = vpack.i.b16 %v3643, %v3593
        %v3704 = vshrl.u32 %v3593, 16
        %v3705 = vshrl.u32 %v3643, 16
        %v3706 = vpack.i.b16 %v3705, %v3704
        %vm3708 = vcmask 261120
        %v3710 = vsel %vm3708, %v1534, 0
        %v3713 = vsel %vm3708, %v2578, 0
        %v3716 = vsel %vm3708, %v2590, 0
        %3718 = vmatprep.subr.bf16.mxu0 0
        %3719 = vmatpush1.bf16.xpose.msra.mxu0 %v3713
        %3720 = vmatprep.subr.bf16.mxu0 0
        %3721 = vmatpush1.bf16.xpose.msra.mxu0 %v3716
        %3722 = vmatprep.subr.bf16.mxu0 0
        %3723 = vmatpush1.bf16.xpose.msra.mxu0 0
        %3724 = vmatprep.subr.bf16.mxu0 0
        %3725 = vmatpush1.bf16.xpose.msra.mxu0 0
        %3726 = vmatprep.subr.bf16.mxu0 0
        %3727 = vmatpush1.bf16.xpose.msra.mxu0 0
        %3728 = vmatprep.subr.bf16.mxu0 0
        %3729 = vmatpush1.bf16.xpose.msra.mxu0 0
        %3730 = vmatprep.subr.bf16.mxu0 0
        %3731 = vmatpush1.bf16.xpose.msra.mxu0 0
        %3732 = vmatprep.subr.bf16.mxu0 0
        %3733 = vmatpush1.bf16.xpose.msra.mxu0 0
        %3734 = vmatprep.subr.bf16.mxu0 0
        %3735 = vmatpush1.bf16.xpose.msra.mxu0 0
        %3736 = vmatprep.subr.bf16.mxu0 0
        %3737 = vmatpush1.bf16.xpose.msra.mxu0 0
        %3738 = vmatprep.subr.bf16.mxu0 0
        %3739 = vmatpush1.bf16.xpose.msra.mxu0 0
        %3740 = vmatprep.subr.bf16.mxu0 0
        %3741 = vmatpush1.bf16.xpose.msra.mxu0 0
        %3742 = vmatprep.subr.bf16.mxu0 0
        %3743 = vmatpush1.bf16.xpose.msra.mxu0 0
        %3744 = vmatprep.subr.bf16.mxu0 0
        %3745 = vmatpush1.bf16.xpose.msra.mxu0 0
        %3746 = vmatprep.subr.bf16.mxu0 0
        %3747 = vmatpush1.bf16.xpose.msra.mxu0 0
        %3748 = vmatprep.subr.bf16.mxu0 0
        %3749 = vmatpush1.bf16.xpose.msra.mxu0 0
        %3750 = vmatprep.mubr.bf16.mxu0 0
        %3751 = vmatmul.mubr.bf16.gmra.mrb[0].mxu0 %v3710
        %v3752 = vpop.f32.mrb[0].mxu0
        %v3753 = vadd.f32 0.0, %v3752
        %v3754 = vpop.f32.mrb[0].mxu0
        %v3755 = vpop.f32.mrb[0].mxu0
        %v3756 = vadd.f32 0.0, %v3755
        %v3757 = vpop.f32.mrb[0].mxu0
        %3758 = vdwg.mxu0
        %v3760 = vsel %vm3708, %v1537, 0
        %v3763 = vsel %vm3708, %v2581, 0
        %v3766 = vsel %vm3708, %v2593, 0
        %3768 = vmatprep.subr.bf16.mxu0 0
        %3769 = vmatpush1.bf16.xpose.msra.mxu0 %v3763
        %3770 = vmatprep.subr.bf16.mxu0 0
        %3771 = vmatpush1.bf16.xpose.msra.mxu0 %v3766
        %3772 = vmatprep.subr.bf16.mxu0 0
        %3773 = vmatpush1.bf16.xpose.msra.mxu0 0
        %3774 = vmatprep.subr.bf16.mxu0 0
        %3775 = vmatpush1.bf16.xpose.msra.mxu0 0
        %3776 = vmatprep.subr.bf16.mxu0 0
        %3777 = vmatpush1.bf16.xpose.msra.mxu0 0
        %3778 = vmatprep.subr.bf16.mxu0 0
        %3779 = vmatpush1.bf16.xpose.msra.mxu0 0
        %3780 = vmatprep.subr.bf16.mxu0 0
        %3781 = vmatpush1.bf16.xpose.msra.mxu0 0
        %3782 = vmatprep.subr.bf16.mxu0 0
        %3783 = vmatpush1.bf16.xpose.msra.mxu0 0
        %3784 = vmatprep.subr.bf16.mxu0 0
        %3785 = vmatpush1.bf16.xpose.msra.mxu0 0
        %3786 = vmatprep.subr.bf16.mxu0 0
        %3787 = vmatpush1.bf16.xpose.msra.mxu0 0
        %3788 = vmatprep.subr.bf16.mxu0 0
        %3789 = vmatpush1.bf16.xpose.msra.mxu0 0
        %3790 = vmatprep.subr.bf16.mxu0 0
        %3791 = vmatpush1.bf16.xpose.msra.mxu0 0
        %3792 = vmatprep.subr.bf16.mxu0 0
        %3793 = vmatpush1.bf16.xpose.msra.mxu0 0
        %3794 = vmatprep.subr.bf16.mxu0 0
        %3795 = vmatpush1.bf16.xpose.msra.mxu0 0
        %3796 = vmatprep.subr.bf16.mxu0 0
        %3797 = vmatpush1.bf16.xpose.msra.mxu0 0
        %3798 = vmatprep.subr.bf16.mxu0 0
        %3799 = vmatpush1.bf16.xpose.msra.mxu0 0
        %3800 = vmatprep.mubr.bf16.mxu0 0
        %3801 = vmatmul.mubr.bf16.gmra.mrb[0].mxu0 %v3760
        %v3802 = vpop.f32.mrb[0].mxu0
        %v3803 = vadd.f32 0.0, %v3802
        %v3804 = vpop.f32.mrb[0].mxu0
        %v3805 = vpop.f32.mrb[0].mxu0
        %v3806 = vadd.f32 0.0, %v3805
        %v3807 = vpop.f32.mrb[0].mxu0
        %3808 = vdwg.mxu0
        %v3810 = vsel %vm3708, %v1540, 0
        %v3813 = vsel %vm3708, %v2584, 0
        %v3816 = vsel %vm3708, %v2596, 0
        %3818 = vmatprep.subr.bf16.mxu0 0
        %3819 = vmatpush1.bf16.xpose.msra.mxu0 %v3813
        %3820 = vmatprep.subr.bf16.mxu0 0
        %3821 = vmatpush1.bf16.xpose.msra.mxu0 %v3816
        %3822 = vmatprep.subr.bf16.mxu0 0
        %3823 = vmatpush1.bf16.xpose.msra.mxu0 0
        %3824 = vmatprep.subr.bf16.mxu0 0
        %3825 = vmatpush1.bf16.xpose.msra.mxu0 0
        %3826 = vmatprep.subr.bf16.mxu0 0
        %3827 = vmatpush1.bf16.xpose.msra.mxu0 0
        %3828 = vmatprep.subr.bf16.mxu0 0
        %3829 = vmatpush1.bf16.xpose.msra.mxu0 0
        %3830 = vmatprep.subr.bf16.mxu0 0
        %3831 = vmatpush1.bf16.xpose.msra.mxu0 0
        %3832 = vmatprep.subr.bf16.mxu0 0
        %3833 = vmatpush1.bf16.xpose.msra.mxu0 0
        %3834 = vmatprep.subr.bf16.mxu0 0
        %3835 = vmatpush1.bf16.xpose.msra.mxu0 0
        %3836 = vmatprep.subr.bf16.mxu0 0
        %3837 = vmatpush1.bf16.xpose.msra.mxu0 0
        %3838 = vmatprep.subr.bf16.mxu0 0
        %3839 = vmatpush1.bf16.xpose.msra.mxu0 0
        %3840 = vmatprep.subr.bf16.mxu0 0
        %3841 = vmatpush1.bf16.xpose.msra.mxu0 0
        %3842 = vmatprep.subr.bf16.mxu0 0
        %3843 = vmatpush1.bf16.xpose.msra.mxu0 0
        %3844 = vmatprep.subr.bf16.mxu0 0
        %3845 = vmatpush1.bf16.xpose.msra.mxu0 0
        %3846 = vmatprep.subr.bf16.mxu0 0
        %3847 = vmatpush1.bf16.xpose.msra.mxu0 0
        %3848 = vmatprep.subr.bf16.mxu0 0
        %3849 = vmatpush1.bf16.xpose.msra.mxu0 0
        %3850 = vmatprep.mubr.bf16.mxu0 0
        %3851 = vmatmul.mubr.bf16.gmra.mrb[0].mxu0 %v3810
        %v3852 = vpop.f32.mrb[0].mxu0
        %v3853 = vadd.f32 0.0, %v3852
        %v3854 = vpop.f32.mrb[0].mxu0
        %v3855 = vpop.f32.mrb[0].mxu0
        %v3856 = vadd.f32 0.0, %v3855
        %v3857 = vpop.f32.mrb[0].mxu0
        %3858 = vdwg.mxu0
        %v3860 = vsel %vm3708, %v1543, 0
        %v3863 = vsel %vm3708, %v2587, 0
        %v3866 = vsel %vm3708, %v2599, 0
        %3868 = vmatprep.subr.bf16.mxu0 0
        %3869 = vmatpush1.bf16.xpose.msra.mxu0 %v3863
        %3870 = vmatprep.subr.bf16.mxu0 0
        %3871 = vmatpush1.bf16.xpose.msra.mxu0 %v3866
        %3872 = vmatprep.subr.bf16.mxu0 0
        %3873 = vmatpush1.bf16.xpose.msra.mxu0 0
        %3874 = vmatprep.subr.bf16.mxu0 0
        %3875 = vmatpush1.bf16.xpose.msra.mxu0 0
        %3876 = vmatprep.subr.bf16.mxu0 0
        %3877 = vmatpush1.bf16.xpose.msra.mxu0 0
        %3878 = vmatprep.subr.bf16.mxu0 0
        %3879 = vmatpush1.bf16.xpose.msra.mxu0 0
        %3880 = vmatprep.subr.bf16.mxu0 0
        %3881 = vmatpush1.bf16.xpose.msra.mxu0 0
        %3882 = vmatprep.subr.bf16.mxu0 0
        %3883 = vmatpush1.bf16.xpose.msra.mxu0 0
        %3884 = vmatprep.subr.bf16.mxu0 0
        %3885 = vmatpush1.bf16.xpose.msra.mxu0 0
        %3886 = vmatprep.subr.bf16.mxu0 0
        %3887 = vmatpush1.bf16.xpose.msra.mxu0 0
        %3888 = vmatprep.subr.bf16.mxu0 0
        %3889 = vmatpush1.bf16.xpose.msra.mxu0 0
        %3890 = vmatprep.subr.bf16.mxu0 0
        %3891 = vmatpush1.bf16.xpose.msra.mxu0 0
        %3892 = vmatprep.subr.bf16.mxu0 0
        %3893 = vmatpush1.bf16.xpose.msra.mxu0 0
        %3894 = vmatprep.subr.bf16.mxu0 0
        %3895 = vmatpush1.bf16.xpose.msra.mxu0 0
        %3896 = vmatprep.subr.bf16.mxu0 0
        %3897 = vmatpush1.bf16.xpose.msra.mxu0 0
        %3898 = vmatprep.subr.bf16.mxu0 0
        %3899 = vmatpush1.bf16.xpose.msra.mxu0 0
        %3900 = vmatprep.mubr.bf16.mxu0 0
        %3901 = vmatmul.mubr.bf16.gmra.mrb[0].mxu0 %v3860
        %v3902 = vpop.f32.mrb[0].mxu0
        %v3903 = vadd.f32 0.0, %v3902
        %v3904 = vpop.f32.mrb[0].mxu0
        %v3905 = vpop.f32.mrb[0].mxu0
        %v3906 = vadd.f32 0.0, %v3905
        %v3907 = vpop.f32.mrb[0].mxu0
        %3908 = vdwg.mxu0
        %v3910 = vsel %vm3708, %v1546, 0
        %v3913 = vsel %vm3708, %v2602, 0
        %v3916 = vsel %vm3708, %v2614, 0
        %3918 = vmatprep.subr.bf16.mxu0 0
        %3919 = vmatpush1.bf16.xpose.msra.mxu0 %v3913
        %3920 = vmatprep.subr.bf16.mxu0 0
        %3921 = vmatpush1.bf16.xpose.msra.mxu0 %v3916
        %3922 = vmatprep.subr.bf16.mxu0 0
        %3923 = vmatpush1.bf16.xpose.msra.mxu0 0
        %3924 = vmatprep.subr.bf16.mxu0 0
        %3925 = vmatpush1.bf16.xpose.msra.mxu0 0
        %3926 = vmatprep.subr.bf16.mxu0 0
        %3927 = vmatpush1.bf16.xpose.msra.mxu0 0
        %3928 = vmatprep.subr.bf16.mxu0 0
        %3929 = vmatpush1.bf16.xpose.msra.mxu0 0
        %3930 = vmatprep.subr.bf16.mxu0 0
        %3931 = vmatpush1.bf16.xpose.msra.mxu0 0
        %3932 = vmatprep.subr.bf16.mxu0 0
        %3933 = vmatpush1.bf16.xpose.msra.mxu0 0
        %3934 = vmatprep.subr.bf16.mxu0 0
        %3935 = vmatpush1.bf16.xpose.msra.mxu0 0
        %3936 = vmatprep.subr.bf16.mxu0 0
        %3937 = vmatpush1.bf16.xpose.msra.mxu0 0
        %3938 = vmatprep.subr.bf16.mxu0 0
        %3939 = vmatpush1.bf16.xpose.msra.mxu0 0
        %3940 = vmatprep.subr.bf16.mxu0 0
        %3941 = vmatpush1.bf16.xpose.msra.mxu0 0
        %3942 = vmatprep.subr.bf16.mxu0 0
        %3943 = vmatpush1.bf16.xpose.msra.mxu0 0
        %3944 = vmatprep.subr.bf16.mxu0 0
        %3945 = vmatpush1.bf16.xpose.msra.mxu0 0
        %3946 = vmatprep.subr.bf16.mxu0 0
        %3947 = vmatpush1.bf16.xpose.msra.mxu0 0
        %3948 = vmatprep.subr.bf16.mxu0 0
        %3949 = vmatpush1.bf16.xpose.msra.mxu0 0
        %3950 = vmatprep.mubr.bf16.mxu0 0
        %3951 = vmatmul.mubr.bf16.gmra.mrb[0].mxu0 %v3910
        %v3952 = vpop.f32.mrb[0].mxu0
        %v3953 = vadd.f32 0.0, %v3952
        %v3954 = vpop.f32.mrb[0].mxu0
        %v3955 = vpop.f32.mrb[0].mxu0
        %v3956 = vadd.f32 0.0, %v3955
        %v3957 = vpop.f32.mrb[0].mxu0
        %3958 = vdwg.mxu0
        %v3960 = vsel %vm3708, %v1549, 0
        %v3963 = vsel %vm3708, %v2605, 0
        %v3966 = vsel %vm3708, %v2617, 0
        %3968 = vmatprep.subr.bf16.mxu0 0
        %3969 = vmatpush1.bf16.xpose.msra.mxu0 %v3963
        %3970 = vmatprep.subr.bf16.mxu0 0
        %3971 = vmatpush1.bf16.xpose.msra.mxu0 %v3966
        %3972 = vmatprep.subr.bf16.mxu0 0
        %3973 = vmatpush1.bf16.xpose.msra.mxu0 0
        %3974 = vmatprep.subr.bf16.mxu0 0
        %3975 = vmatpush1.bf16.xpose.msra.mxu0 0
        %3976 = vmatprep.subr.bf16.mxu0 0
        %3977 = vmatpush1.bf16.xpose.msra.mxu0 0
        %3978 = vmatprep.subr.bf16.mxu0 0
        %3979 = vmatpush1.bf16.xpose.msra.mxu0 0
        %3980 = vmatprep.subr.bf16.mxu0 0
        %3981 = vmatpush1.bf16.xpose.msra.mxu0 0
        %3982 = vmatprep.subr.bf16.mxu0 0
        %3983 = vmatpush1.bf16.xpose.msra.mxu0 0
        %3984 = vmatprep.subr.bf16.mxu0 0
        %3985 = vmatpush1.bf16.xpose.msra.mxu0 0
        %3986 = vmatprep.subr.bf16.mxu0 0
        %3987 = vmatpush1.bf16.xpose.msra.mxu0 0
        %3988 = vmatprep.subr.bf16.mxu0 0
        %3989 = vmatpush1.bf16.xpose.msra.mxu0 0
        %3990 = vmatprep.subr.bf16.mxu0 0
        %3991 = vmatpush1.bf16.xpose.msra.mxu0 0
        %3992 = vmatprep.subr.bf16.mxu0 0
        %3993 = vmatpush1.bf16.xpose.msra.mxu0 0
        %3994 = vmatprep.subr.bf16.mxu0 0
        %3995 = vmatpush1.bf16.xpose.msra.mxu0 0
        %3996 = vmatprep.subr.bf16.mxu0 0
        %3997 = vmatpush1.bf16.xpose.msra.mxu0 0
        %3998 = vmatprep.subr.bf16.mxu0 0
        %3999 = vmatpush1.bf16.xpose.msra.mxu0 0
        %4000 = vmatprep.mubr.bf16.mxu0 0
        %4001 = vmatmul.mubr.bf16.gmra.mrb[0].mxu0 %v3960
        %v4002 = vpop.f32.mrb[0].mxu0
        %v4003 = vadd.f32 0.0, %v4002
        %v4004 = vpop.f32.mrb[0].mxu0
        %v4005 = vpop.f32.mrb[0].mxu0
        %v4006 = vadd.f32 0.0, %v4005
        %v4007 = vpop.f32.mrb[0].mxu0
        %4008 = vdwg.mxu0
        %v4010 = vsel %vm3708, %v1552, 0
        %v4013 = vsel %vm3708, %v2608, 0
        %v4016 = vsel %vm3708, %v2620, 0
        %4018 = vmatprep.subr.bf16.mxu0 0
        %4019 = vmatpush1.bf16.xpose.msra.mxu0 %v4013
        %4020 = vmatprep.subr.bf16.mxu0 0
        %4021 = vmatpush1.bf16.xpose.msra.mxu0 %v4016
        %4022 = vmatprep.subr.bf16.mxu0 0
        %4023 = vmatpush1.bf16.xpose.msra.mxu0 0
        %4024 = vmatprep.subr.bf16.mxu0 0
        %4025 = vmatpush1.bf16.xpose.msra.mxu0 0
        %4026 = vmatprep.subr.bf16.mxu0 0
        %4027 = vmatpush1.bf16.xpose.msra.mxu0 0
        %4028 = vmatprep.subr.bf16.mxu0 0
        %4029 = vmatpush1.bf16.xpose.msra.mxu0 0
        %4030 = vmatprep.subr.bf16.mxu0 0
        %4031 = vmatpush1.bf16.xpose.msra.mxu0 0
        %4032 = vmatprep.subr.bf16.mxu0 0
        %4033 = vmatpush1.bf16.xpose.msra.mxu0 0
        %4034 = vmatprep.subr.bf16.mxu0 0
        %4035 = vmatpush1.bf16.xpose.msra.mxu0 0
        %4036 = vmatprep.subr.bf16.mxu0 0
        %4037 = vmatpush1.bf16.xpose.msra.mxu0 0
        %4038 = vmatprep.subr.bf16.mxu0 0
        %4039 = vmatpush1.bf16.xpose.msra.mxu0 0
        %4040 = vmatprep.subr.bf16.mxu0 0
        %4041 = vmatpush1.bf16.xpose.msra.mxu0 0
        %4042 = vmatprep.subr.bf16.mxu0 0
        %4043 = vmatpush1.bf16.xpose.msra.mxu0 0
        %4044 = vmatprep.subr.bf16.mxu0 0
        %4045 = vmatpush1.bf16.xpose.msra.mxu0 0
        %4046 = vmatprep.subr.bf16.mxu0 0
        %4047 = vmatpush1.bf16.xpose.msra.mxu0 0
        %4048 = vmatprep.subr.bf16.mxu0 0
        %4049 = vmatpush1.bf16.xpose.msra.mxu0 0
        %4050 = vmatprep.mubr.bf16.mxu0 0
        %4051 = vmatmul.mubr.bf16.gmra.mrb[0].mxu0 %v4010
        %v4052 = vpop.f32.mrb[0].mxu0
        %v4053 = vadd.f32 0.0, %v4052
        %v4054 = vpop.f32.mrb[0].mxu0
        %v4055 = vpop.f32.mrb[0].mxu0
        %v4056 = vadd.f32 0.0, %v4055
        %v4057 = vpop.f32.mrb[0].mxu0
        %4058 = vdwg.mxu0
        %v4060 = vsel %vm3708, %v1555, 0
        %v4063 = vsel %vm3708, %v2611, 0
        %v4066 = vsel %vm3708, %v2623, 0
        %4068 = vmatprep.subr.bf16.mxu0 0
        %4069 = vmatpush1.bf16.xpose.msra.mxu0 %v4063
        %4070 = vmatprep.subr.bf16.mxu0 0
        %4071 = vmatpush1.bf16.xpose.msra.mxu0 %v4066
        %4072 = vmatprep.subr.bf16.mxu0 0
        %4073 = vmatpush1.bf16.xpose.msra.mxu0 0
        %4074 = vmatprep.subr.bf16.mxu0 0
        %4075 = vmatpush1.bf16.xpose.msra.mxu0 0
        %4076 = vmatprep.subr.bf16.mxu0 0
        %4077 = vmatpush1.bf16.xpose.msra.mxu0 0
        %4078 = vmatprep.subr.bf16.mxu0 0
        %4079 = vmatpush1.bf16.xpose.msra.mxu0 0
        %4080 = vmatprep.subr.bf16.mxu0 0
        %4081 = vmatpush1.bf16.xpose.msra.mxu0 0
        %4082 = vmatprep.subr.bf16.mxu0 0
        %4083 = vmatpush1.bf16.xpose.msra.mxu0 0
        %4084 = vmatprep.subr.bf16.mxu0 0
        %4085 = vmatpush1.bf16.xpose.msra.mxu0 0
        %4086 = vmatprep.subr.bf16.mxu0 0
        %4087 = vmatpush1.bf16.xpose.msra.mxu0 0
        %4088 = vmatprep.subr.bf16.mxu0 0
        %4089 = vmatpush1.bf16.xpose.msra.mxu0 0
        %4090 = vmatprep.subr.bf16.mxu0 0
        %4091 = vmatpush1.bf16.xpose.msra.mxu0 0
        %4092 = vmatprep.subr.bf16.mxu0 0
        %4093 = vmatpush1.bf16.xpose.msra.mxu0 0
        %4094 = vmatprep.subr.bf16.mxu0 0
        %4095 = vmatpush1.bf16.xpose.msra.mxu0 0
        %4096 = vmatprep.subr.bf16.mxu0 0
        %4097 = vmatpush1.bf16.xpose.msra.mxu0 0
        %4098 = vmatprep.subr.bf16.mxu0 0
        %4099 = vmatpush1.bf16.xpose.msra.mxu0 0
        %4100 = vmatprep.mubr.bf16.mxu0 0
        %4101 = vmatmul.mubr.bf16.gmra.mrb[0].mxu0 %v4060
        %v4102 = vpop.f32.mrb[0].mxu0
        %v4103 = vadd.f32 0.0, %v4102
        %v4104 = vpop.f32.mrb[0].mxu0
        %v4105 = vpop.f32.mrb[0].mxu0
        %v4106 = vadd.f32 0.0, %v4105
        %v4107 = vpop.f32.mrb[0].mxu0
        %4108 = vdwg.mxu0
        %v4109 = vsel %vm3708, %v3753, -inf
        %4110 = vmax.xlane.f32.xlu0 %v4109
        %v4111 = vpop.xlane.xlu0 %4110
        %v4112 = vsel %vm3708, %v3756, -inf
        %4113 = vmax.xlane.f32.xlu0 %v4112
        %v4114 = vpop.xlane.xlu0 %4113
        %v4115 = vsel %vm3708, %v3803, -inf
        %4116 = vmax.xlane.f32.xlu0 %v4115
        %v4117 = vpop.xlane.xlu0 %4116
        %v4118 = vsel %vm3708, %v3806, -inf
        %4119 = vmax.xlane.f32.xlu0 %v4118
        %v4120 = vpop.xlane.xlu0 %4119
        %v4121 = vsel %vm3708, %v3853, -inf
        %4122 = vmax.xlane.f32.xlu0 %v4121
        %v4123 = vpop.xlane.xlu0 %4122
        %v4124 = vsel %vm3708, %v3856, -inf
        %4125 = vmax.xlane.f32.xlu0 %v4124
        %v4126 = vpop.xlane.xlu0 %4125
        %v4127 = vsel %vm3708, %v3903, -inf
        %4128 = vmax.xlane.f32.xlu0 %v4127
        %v4129 = vpop.xlane.xlu0 %4128
        %v4130 = vsel %vm3708, %v3906, -inf
        %4131 = vmax.xlane.f32.xlu0 %v4130
        %v4132 = vpop.xlane.xlu0 %4131
        %v4133 = vsel %vm3708, %v3953, -inf
        %4134 = vmax.xlane.f32.xlu0 %v4133
        %v4135 = vpop.xlane.xlu0 %4134
        %v4136 = vsel %vm3708, %v3956, -inf
        %4137 = vmax.xlane.f32.xlu0 %v4136
        %v4138 = vpop.xlane.xlu0 %4137
        %v4139 = vsel %vm3708, %v4003, -inf
        %4140 = vmax.xlane.f32.xlu0 %v4139
        %v4141 = vpop.xlane.xlu0 %4140
        %v4142 = vsel %vm3708, %v4006, -inf
        %4143 = vmax.xlane.f32.xlu0 %v4142
        %v4144 = vpop.xlane.xlu0 %4143
        %v4145 = vsel %vm3708, %v4053, -inf
        %4146 = vmax.xlane.f32.xlu0 %v4145
        %v4147 = vpop.xlane.xlu0 %4146
        %v4148 = vsel %vm3708, %v4056, -inf
        %4149 = vmax.xlane.f32.xlu0 %v4148
        %v4150 = vpop.xlane.xlu0 %4149
        %v4151 = vsel %vm3708, %v4103, -inf
        %4152 = vmax.xlane.f32.xlu0 %v4151
        %v4153 = vpop.xlane.xlu0 %4152
        %v4154 = vsel %vm3708, %v4106, -inf
        %4155 = vmax.xlane.f32.xlu0 %v4154
        %v4156 = vpop.xlane.xlu0 %4155
        %v4157 = vsub.f32 %v3753, %v4111
        %v4158 = vsub.f32 %v3756, %v4114
        %v4159 = vsub.f32 %v3803, %v4117
        %v4160 = vsub.f32 %v3806, %v4120
        %v4161 = vsub.f32 %v3853, %v4123
        %v4162 = vsub.f32 %v3856, %v4126
        %v4163 = vsub.f32 %v3903, %v4129
        %v4164 = vsub.f32 %v3906, %v4132
        %v4165 = vsub.f32 %v3953, %v4135
        %v4166 = vsub.f32 %v3956, %v4138
        %v4167 = vsub.f32 %v4003, %v4141
        %v4168 = vsub.f32 %v4006, %v4144
        %v4169 = vsub.f32 %v4053, %v4147
        %v4170 = vsub.f32 %v4056, %v4150
        %v4171 = vsub.f32 %v4103, %v4153
        %v4172 = vsub.f32 %v4106, %v4156
        %v4173 = vmul.f32 %v4157, 1.442695
        %v4174 = vpow.pop %v4173
        %v4175 = vmul.f32 %v4158, 1.442695
        %v4176 = vpow.pop %v4175
        %v4177 = vmul.f32 %v4159, 1.442695
        %v4178 = vpow.pop %v4177
        %v4179 = vmul.f32 %v4160, 1.442695
        %v4180 = vpow.pop %v4179
        %v4181 = vmul.f32 %v4161, 1.442695
        %v4182 = vpow.pop %v4181
        %v4183 = vmul.f32 %v4162, 1.442695
        %v4184 = vpow.pop %v4183
        %v4185 = vmul.f32 %v4163, 1.442695
        %v4186 = vpow.pop %v4185
        %v4187 = vmul.f32 %v4164, 1.442695
        %v4188 = vpow.pop %v4187
        %v4189 = vmul.f32 %v4165, 1.442695
        %v4190 = vpow.pop %v4189
        %v4191 = vmul.f32 %v4166, 1.442695
        %v4192 = vpow.pop %v4191
        %v4193 = vmul.f32 %v4167, 1.442695
        %v4194 = vpow.pop %v4193
        %v4195 = vmul.f32 %v4168, 1.442695
        %v4196 = vpow.pop %v4195
        %v4197 = vmul.f32 %v4169, 1.442695
        %v4198 = vpow.pop %v4197
        %v4199 = vmul.f32 %v4170, 1.442695
        %v4200 = vpow.pop %v4199
        %v4201 = vmul.f32 %v4171, 1.442695
        %v4202 = vpow.pop %v4201
        %v4203 = vmul.f32 %v4172, 1.442695
        %v4204 = vpow.pop %v4203
        %v4205 = vsel %vm3708, %v4174, 0.0
        %4206 = vadd.xlane.f32.xlu0 %v4205
        %v4207 = vpop.xlane.xlu0 %4206
        %v4208 = vsel %vm3708, %v4176, 0.0
        %4209 = vadd.xlane.f32.xlu0 %v4208
        %v4210 = vpop.xlane.xlu0 %4209
        %v4211 = vsel %vm3708, %v4178, 0.0
        %4212 = vadd.xlane.f32.xlu0 %v4211
        %v4213 = vpop.xlane.xlu0 %4212
        %v4214 = vsel %vm3708, %v4180, 0.0
        %4215 = vadd.xlane.f32.xlu0 %v4214
        %v4216 = vpop.xlane.xlu0 %4215
        %v4217 = vsel %vm3708, %v4182, 0.0
        %4218 = vadd.xlane.f32.xlu0 %v4217
        %v4219 = vpop.xlane.xlu0 %4218
        %v4220 = vsel %vm3708, %v4184, 0.0
        %4221 = vadd.xlane.f32.xlu0 %v4220
        %v4222 = vpop.xlane.xlu0 %4221
        %v4223 = vsel %vm3708, %v4186, 0.0
        %4224 = vadd.xlane.f32.xlu0 %v4223
        %v4225 = vpop.xlane.xlu0 %4224
        %v4226 = vsel %vm3708, %v4188, 0.0
        %4227 = vadd.xlane.f32.xlu0 %v4226
        %v4228 = vpop.xlane.xlu0 %4227
        %v4229 = vsel %vm3708, %v4190, 0.0
        %4230 = vadd.xlane.f32.xlu0 %v4229
        %v4231 = vpop.xlane.xlu0 %4230
        %v4232 = vsel %vm3708, %v4192, 0.0
        %4233 = vadd.xlane.f32.xlu0 %v4232
        %v4234 = vpop.xlane.xlu0 %4233
        %v4235 = vsel %vm3708, %v4194, 0.0
        %4236 = vadd.xlane.f32.xlu0 %v4235
        %v4237 = vpop.xlane.xlu0 %4236
        %v4238 = vsel %vm3708, %v4196, 0.0
        %4239 = vadd.xlane.f32.xlu0 %v4238
        %v4240 = vpop.xlane.xlu0 %4239
        %v4241 = vsel %vm3708, %v4198, 0.0
        %4242 = vadd.xlane.f32.xlu0 %v4241
        %v4243 = vpop.xlane.xlu0 %4242
        %v4244 = vsel %vm3708, %v4200, 0.0
        %4245 = vadd.xlane.f32.xlu0 %v4244
        %v4246 = vpop.xlane.xlu0 %4245
        %v4247 = vsel %vm3708, %v4202, 0.0
        %4248 = vadd.xlane.f32.xlu0 %v4247
        %v4249 = vpop.xlane.xlu0 %4248
        %v4250 = vsel %vm3708, %v4204, 0.0
        %4251 = vadd.xlane.f32.xlu0 %v4250
        %v4252 = vpop.xlane.xlu0 %4251
        %v4253 = vrcp.pop %v4207
        %v4254 = vrcp.pop %v4210
        %v4255 = vrcp.pop %v4213
        %v4256 = vrcp.pop %v4216
        %v4257 = vrcp.pop %v4219
        %v4258 = vrcp.pop %v4222
        %v4259 = vrcp.pop %v4225
        %v4260 = vrcp.pop %v4228
        %v4261 = vrcp.pop %v4231
        %v4262 = vrcp.pop %v4234
        %v4263 = vrcp.pop %v4237
        %v4264 = vrcp.pop %v4240
        %v4265 = vrcp.pop %v4243
        %v4266 = vrcp.pop %v4246
        %v4267 = vrcp.pop %v4249
        %v4268 = vrcp.pop %v4252
        %v4269 = vmul.f32 %v4174, %v4253
        %v4270 = vmul.f32 %v4176, %v4254
        %v4271 = vmul.f32 %v4178, %v4255
        %v4272 = vmul.f32 %v4180, %v4256
        %v4273 = vmul.f32 %v4182, %v4257
        %v4274 = vmul.f32 %v4184, %v4258
        %v4275 = vmul.f32 %v4186, %v4259
        %v4276 = vmul.f32 %v4188, %v4260
        %v4277 = vmul.f32 %v4190, %v4261
        %v4278 = vmul.f32 %v4192, %v4262
        %v4279 = vmul.f32 %v4194, %v4263
        %v4280 = vmul.f32 %v4196, %v4264
        %v4281 = vmul.f32 %v4198, %v4265
        %v4282 = vmul.f32 %v4200, %v4266
        %v4283 = vmul.f32 %v4202, %v4267
        %v4284 = vmul.f32 %v4204, %v4268
        %v4285 = vpack.c.bf16 %v4270, %v4269
        %v4286 = vpack.c.bf16 %v4272, %v4271
        %v4287 = vpack.c.bf16 %v4274, %v4273
        %v4288 = vpack.c.bf16 %v4276, %v4275
        %v4289 = vpack.c.bf16 %v4278, %v4277
        %v4290 = vpack.c.bf16 %v4280, %v4279
        %v4291 = vpack.c.bf16 %v4282, %v4281
        %v4292 = vpack.c.bf16 %v4284, %v4283
        %v4294 = vsel %vm3708, %v4285, 0
        %4296 = vmatprep.subr.bf16.mxu0 0
        %4297 = vmatpush1.bf16.msra.mxu0 %v3646
        %4298 = vmatprep.subr.bf16.mxu0 0
        %4299 = vmatpush1.bf16.msra.mxu0 %v3662
        %4300 = vmatprep.subr.bf16.mxu0 0
        %4301 = vmatpush1.bf16.msra.mxu0 0
        %4302 = vmatprep.subr.bf16.mxu0 0
        %4303 = vmatpush1.bf16.msra.mxu0 0
        %4304 = vmatprep.subr.bf16.mxu0 0
        %4305 = vmatpush1.bf16.msra.mxu0 0
        %4306 = vmatprep.subr.bf16.mxu0 0
        %4307 = vmatpush1.bf16.msra.mxu0 0
        %4308 = vmatprep.subr.bf16.mxu0 0
        %4309 = vmatpush1.bf16.msra.mxu0 0
        %4310 = vmatprep.subr.bf16.mxu0 0
        %4311 = vmatpush1.bf16.msra.mxu0 0
        %4312 = vmatprep.subr.bf16.mxu0 0
        %4313 = vmatpush1.bf16.msra.mxu0 0
        %4314 = vmatprep.subr.bf16.mxu0 0
        %4315 = vmatpush1.bf16.msra.mxu0 0
        %4316 = vmatprep.subr.bf16.mxu0 0
        %4317 = vmatpush1.bf16.msra.mxu0 0
        %4318 = vmatprep.subr.bf16.mxu0 0
        %4319 = vmatpush1.bf16.msra.mxu0 0
        %4320 = vmatprep.subr.bf16.mxu0 0
        %4321 = vmatpush1.bf16.msra.mxu0 0
        %4322 = vmatprep.subr.bf16.mxu0 0
        %4323 = vmatpush1.bf16.msra.mxu0 0
        %4324 = vmatprep.subr.bf16.mxu0 0
        %4325 = vmatpush1.bf16.msra.mxu0 0
        %4326 = vmatprep.subr.bf16.mxu0 0
        %4327 = vmatpush1.bf16.msra.mxu0 0
        %4328 = vmatprep.mubr.bf16.mxu0 0
        %4329 = vmatmul.mubr.bf16.gmra.mrb[0].mxu0 %v4294
        %v4330 = vpop.f32.mrb[0].mxu0
        %v4331 = vadd.f32 0.0, %v4330
        %v4332 = vpop.f32.mrb[0].mxu0
        %v4333 = vpop.f32.mrb[0].mxu0
        %v4334 = vadd.f32 0.0, %v4333
        %v4335 = vpop.f32.mrb[0].mxu0
        %4336 = vdwg.mxu0
        %v4338 = vsel %vm3708, %v4286, 0
        %4340 = vmatprep.subr.bf16.mxu0 0
        %4341 = vmatpush1.bf16.msra.mxu0 %v3650
        %4342 = vmatprep.subr.bf16.mxu0 0
        %4343 = vmatpush1.bf16.msra.mxu0 %v3666
        %4344 = vmatprep.subr.bf16.mxu0 0
        %4345 = vmatpush1.bf16.msra.mxu0 0
        %4346 = vmatprep.subr.bf16.mxu0 0
        %4347 = vmatpush1.bf16.msra.mxu0 0
        %4348 = vmatprep.subr.bf16.mxu0 0
        %4349 = vmatpush1.bf16.msra.mxu0 0
        %4350 = vmatprep.subr.bf16.mxu0 0
        %4351 = vmatpush1.bf16.msra.mxu0 0
        %4352 = vmatprep.subr.bf16.mxu0 0
        %4353 = vmatpush1.bf16.msra.mxu0 0
        %4354 = vmatprep.subr.bf16.mxu0 0
        %4355 = vmatpush1.bf16.msra.mxu0 0
        %4356 = vmatprep.subr.bf16.mxu0 0
        %4357 = vmatpush1.bf16.msra.mxu0 0
        %4358 = vmatprep.subr.bf16.mxu0 0
        %4359 = vmatpush1.bf16.msra.mxu0 0
        %4360 = vmatprep.subr.bf16.mxu0 0
        %4361 = vmatpush1.bf16.msra.mxu0 0
        %4362 = vmatprep.subr.bf16.mxu0 0
        %4363 = vmatpush1.bf16.msra.mxu0 0
        %4364 = vmatprep.subr.bf16.mxu0 0
        %4365 = vmatpush1.bf16.msra.mxu0 0
        %4366 = vmatprep.subr.bf16.mxu0 0
        %4367 = vmatpush1.bf16.msra.mxu0 0
        %4368 = vmatprep.subr.bf16.mxu0 0
        %4369 = vmatpush1.bf16.msra.mxu0 0
        %4370 = vmatprep.subr.bf16.mxu0 0
        %4371 = vmatpush1.bf16.msra.mxu0 0
        %4372 = vmatprep.mubr.bf16.mxu0 0
        %4373 = vmatmul.mubr.bf16.gmra.mrb[0].mxu0 %v4338
        %v4374 = vpop.f32.mrb[0].mxu0
        %v4375 = vadd.f32 0.0, %v4374
        %v4376 = vpop.f32.mrb[0].mxu0
        %v4377 = vpop.f32.mrb[0].mxu0
        %v4378 = vadd.f32 0.0, %v4377
        %v4379 = vpop.f32.mrb[0].mxu0
        %4380 = vdwg.mxu0
        %v4382 = vsel %vm3708, %v4287, 0
        %4384 = vmatprep.subr.bf16.mxu0 0
        %4385 = vmatpush1.bf16.msra.mxu0 %v3654
        %4386 = vmatprep.subr.bf16.mxu0 0
        %4387 = vmatpush1.bf16.msra.mxu0 %v3670
        %4388 = vmatprep.subr.bf16.mxu0 0
        %4389 = vmatpush1.bf16.msra.mxu0 0
        %4390 = vmatprep.subr.bf16.mxu0 0
        %4391 = vmatpush1.bf16.msra.mxu0 0
        %4392 = vmatprep.subr.bf16.mxu0 0
        %4393 = vmatpush1.bf16.msra.mxu0 0
        %4394 = vmatprep.subr.bf16.mxu0 0
        %4395 = vmatpush1.bf16.msra.mxu0 0
        %4396 = vmatprep.subr.bf16.mxu0 0
        %4397 = vmatpush1.bf16.msra.mxu0 0
        %4398 = vmatprep.subr.bf16.mxu0 0
        %4399 = vmatpush1.bf16.msra.mxu0 0
        %4400 = vmatprep.subr.bf16.mxu0 0
        %4401 = vmatpush1.bf16.msra.mxu0 0
        %4402 = vmatprep.subr.bf16.mxu0 0
        %4403 = vmatpush1.bf16.msra.mxu0 0
        %4404 = vmatprep.subr.bf16.mxu0 0
        %4405 = vmatpush1.bf16.msra.mxu0 0
        %4406 = vmatprep.subr.bf16.mxu0 0
        %4407 = vmatpush1.bf16.msra.mxu0 0
        %4408 = vmatprep.subr.bf16.mxu0 0
        %4409 = vmatpush1.bf16.msra.mxu0 0
        %4410 = vmatprep.subr.bf16.mxu0 0
        %4411 = vmatpush1.bf16.msra.mxu0 0
        %4412 = vmatprep.subr.bf16.mxu0 0
        %4413 = vmatpush1.bf16.msra.mxu0 0
        %4414 = vmatprep.subr.bf16.mxu0 0
        %4415 = vmatpush1.bf16.msra.mxu0 0
        %4416 = vmatprep.mubr.bf16.mxu0 0
        %4417 = vmatmul.mubr.bf16.gmra.mrb[0].mxu0 %v4382
        %v4418 = vpop.f32.mrb[0].mxu0
        %v4419 = vadd.f32 0.0, %v4418
        %v4420 = vpop.f32.mrb[0].mxu0
        %v4421 = vpop.f32.mrb[0].mxu0
        %v4422 = vadd.f32 0.0, %v4421
        %v4423 = vpop.f32.mrb[0].mxu0
        %4424 = vdwg.mxu0
        %v4426 = vsel %vm3708, %v4288, 0
        %4428 = vmatprep.subr.bf16.mxu0 0
        %4429 = vmatpush1.bf16.msra.mxu0 %v3658
        %4430 = vmatprep.subr.bf16.mxu0 0
        %4431 = vmatpush1.bf16.msra.mxu0 %v3674
        %4432 = vmatprep.subr.bf16.mxu0 0
        %4433 = vmatpush1.bf16.msra.mxu0 0
        %4434 = vmatprep.subr.bf16.mxu0 0
        %4435 = vmatpush1.bf16.msra.mxu0 0
        %4436 = vmatprep.subr.bf16.mxu0 0
        %4437 = vmatpush1.bf16.msra.mxu0 0
        %4438 = vmatprep.subr.bf16.mxu0 0
        %4439 = vmatpush1.bf16.msra.mxu0 0
        %4440 = vmatprep.subr.bf16.mxu0 0
        %4441 = vmatpush1.bf16.msra.mxu0 0
        %4442 = vmatprep.subr.bf16.mxu0 0
        %4443 = vmatpush1.bf16.msra.mxu0 0
        %4444 = vmatprep.subr.bf16.mxu0 0
        %4445 = vmatpush1.bf16.msra.mxu0 0
        %4446 = vmatprep.subr.bf16.mxu0 0
        %4447 = vmatpush1.bf16.msra.mxu0 0
        %4448 = vmatprep.subr.bf16.mxu0 0
        %4449 = vmatpush1.bf16.msra.mxu0 0
        %4450 = vmatprep.subr.bf16.mxu0 0
        %4451 = vmatpush1.bf16.msra.mxu0 0
        %4452 = vmatprep.subr.bf16.mxu0 0
        %4453 = vmatpush1.bf16.msra.mxu0 0
        %4454 = vmatprep.subr.bf16.mxu0 0
        %4455 = vmatpush1.bf16.msra.mxu0 0
        %4456 = vmatprep.subr.bf16.mxu0 0
        %4457 = vmatpush1.bf16.msra.mxu0 0
        %4458 = vmatprep.subr.bf16.mxu0 0
        %4459 = vmatpush1.bf16.msra.mxu0 0
        %4460 = vmatprep.mubr.bf16.mxu0 0
        %4461 = vmatmul.mubr.bf16.gmra.mrb[0].mxu0 %v4426
        %v4462 = vpop.f32.mrb[0].mxu0
        %v4463 = vadd.f32 0.0, %v4462
        %v4464 = vpop.f32.mrb[0].mxu0
        %v4465 = vpop.f32.mrb[0].mxu0
        %v4466 = vadd.f32 0.0, %v4465
        %v4467 = vpop.f32.mrb[0].mxu0
        %4468 = vdwg.mxu0
        %v4470 = vsel %vm3708, %v4289, 0
        %4472 = vmatprep.subr.bf16.mxu0 0
        %4473 = vmatpush1.bf16.msra.mxu0 %v3678
        %4474 = vmatprep.subr.bf16.mxu0 0
        %4475 = vmatpush1.bf16.msra.mxu0 %v3694
        %4476 = vmatprep.subr.bf16.mxu0 0
        %4477 = vmatpush1.bf16.msra.mxu0 0
        %4478 = vmatprep.subr.bf16.mxu0 0
        %4479 = vmatpush1.bf16.msra.mxu0 0
        %4480 = vmatprep.subr.bf16.mxu0 0
        %4481 = vmatpush1.bf16.msra.mxu0 0
        %4482 = vmatprep.subr.bf16.mxu0 0
        %4483 = vmatpush1.bf16.msra.mxu0 0
        %4484 = vmatprep.subr.bf16.mxu0 0
        %4485 = vmatpush1.bf16.msra.mxu0 0
        %4486 = vmatprep.subr.bf16.mxu0 0
        %4487 = vmatpush1.bf16.msra.mxu0 0
        %4488 = vmatprep.subr.bf16.mxu0 0
        %4489 = vmatpush1.bf16.msra.mxu0 0
        %4490 = vmatprep.subr.bf16.mxu0 0
        %4491 = vmatpush1.bf16.msra.mxu0 0
        %4492 = vmatprep.subr.bf16.mxu0 0
        %4493 = vmatpush1.bf16.msra.mxu0 0
        %4494 = vmatprep.subr.bf16.mxu0 0
        %4495 = vmatpush1.bf16.msra.mxu0 0
        %4496 = vmatprep.subr.bf16.mxu0 0
        %4497 = vmatpush1.bf16.msra.mxu0 0
        %4498 = vmatprep.subr.bf16.mxu0 0
        %4499 = vmatpush1.bf16.msra.mxu0 0
        %4500 = vmatprep.subr.bf16.mxu0 0
        %4501 = vmatpush1.bf16.msra.mxu0 0
        %4502 = vmatprep.subr.bf16.mxu0 0
        %4503 = vmatpush1.bf16.msra.mxu0 0
        %4504 = vmatprep.mubr.bf16.mxu0 0
        %4505 = vmatmul.mubr.bf16.gmra.mrb[0].mxu0 %v4470
        %v4506 = vpop.f32.mrb[0].mxu0
        %v4507 = vadd.f32 0.0, %v4506
        %v4508 = vpop.f32.mrb[0].mxu0
        %v4509 = vpop.f32.mrb[0].mxu0
        %v4510 = vadd.f32 0.0, %v4509
        %v4511 = vpop.f32.mrb[0].mxu0
        %4512 = vdwg.mxu0
        %v4514 = vsel %vm3708, %v4290, 0
        %4516 = vmatprep.subr.bf16.mxu0 0
        %4517 = vmatpush1.bf16.msra.mxu0 %v3682
        %4518 = vmatprep.subr.bf16.mxu0 0
        %4519 = vmatpush1.bf16.msra.mxu0 %v3698
        %4520 = vmatprep.subr.bf16.mxu0 0
        %4521 = vmatpush1.bf16.msra.mxu0 0
        %4522 = vmatprep.subr.bf16.mxu0 0
        %4523 = vmatpush1.bf16.msra.mxu0 0
        %4524 = vmatprep.subr.bf16.mxu0 0
        %4525 = vmatpush1.bf16.msra.mxu0 0
        %4526 = vmatprep.subr.bf16.mxu0 0
        %4527 = vmatpush1.bf16.msra.mxu0 0
        %4528 = vmatprep.subr.bf16.mxu0 0
        %4529 = vmatpush1.bf16.msra.mxu0 0
        %4530 = vmatprep.subr.bf16.mxu0 0
        %4531 = vmatpush1.bf16.msra.mxu0 0
        %4532 = vmatprep.subr.bf16.mxu0 0
        %4533 = vmatpush1.bf16.msra.mxu0 0
        %4534 = vmatprep.subr.bf16.mxu0 0
        %4535 = vmatpush1.bf16.msra.mxu0 0
        %4536 = vmatprep.subr.bf16.mxu0 0
        %4537 = vmatpush1.bf16.msra.mxu0 0
        %4538 = vmatprep.subr.bf16.mxu0 0
        %4539 = vmatpush1.bf16.msra.mxu0 0
        %4540 = vmatprep.subr.bf16.mxu0 0
        %4541 = vmatpush1.bf16.msra.mxu0 0
        %4542 = vmatprep.subr.bf16.mxu0 0
        %4543 = vmatpush1.bf16.msra.mxu0 0
        %4544 = vmatprep.subr.bf16.mxu0 0
        %4545 = vmatpush1.bf16.msra.mxu0 0
        %4546 = vmatprep.subr.bf16.mxu0 0
        %4547 = vmatpush1.bf16.msra.mxu0 0
        %4548 = vmatprep.mubr.bf16.mxu0 0
        %4549 = vmatmul.mubr.bf16.gmra.mrb[0].mxu0 %v4514
        %v4550 = vpop.f32.mrb[0].mxu0
        %v4551 = vadd.f32 0.0, %v4550
        %v4552 = vpop.f32.mrb[0].mxu0
        %v4553 = vpop.f32.mrb[0].mxu0
        %v4554 = vadd.f32 0.0, %v4553
        %v4555 = vpop.f32.mrb[0].mxu0
        %4556 = vdwg.mxu0
        %v4558 = vsel %vm3708, %v4291, 0
        %4560 = vmatprep.subr.bf16.mxu0 0
        %4561 = vmatpush1.bf16.msra.mxu0 %v3686
        %4562 = vmatprep.subr.bf16.mxu0 0
        %4563 = vmatpush1.bf16.msra.mxu0 %v3702
        %4564 = vmatprep.subr.bf16.mxu0 0
        %4565 = vmatpush1.bf16.msra.mxu0 0
        %4566 = vmatprep.subr.bf16.mxu0 0
        %4567 = vmatpush1.bf16.msra.mxu0 0
        %4568 = vmatprep.subr.bf16.mxu0 0
        %4569 = vmatpush1.bf16.msra.mxu0 0
        %4570 = vmatprep.subr.bf16.mxu0 0
        %4571 = vmatpush1.bf16.msra.mxu0 0
        %4572 = vmatprep.subr.bf16.mxu0 0
        %4573 = vmatpush1.bf16.msra.mxu0 0
        %4574 = vmatprep.subr.bf16.mxu0 0
        %4575 = vmatpush1.bf16.msra.mxu0 0
        %4576 = vmatprep.subr.bf16.mxu0 0
        %4577 = vmatpush1.bf16.msra.mxu0 0
        %4578 = vmatprep.subr.bf16.mxu0 0
        %4579 = vmatpush1.bf16.msra.mxu0 0
        %4580 = vmatprep.subr.bf16.mxu0 0
        %4581 = vmatpush1.bf16.msra.mxu0 0
        %4582 = vmatprep.subr.bf16.mxu0 0
        %4583 = vmatpush1.bf16.msra.mxu0 0
        %4584 = vmatprep.subr.bf16.mxu0 0
        %4585 = vmatpush1.bf16.msra.mxu0 0
        %4586 = vmatprep.subr.bf16.mxu0 0
        %4587 = vmatpush1.bf16.msra.mxu0 0
        %4588 = vmatprep.subr.bf16.mxu0 0
        %4589 = vmatpush1.bf16.msra.mxu0 0
        %4590 = vmatprep.subr.bf16.mxu0 0
        %4591 = vmatpush1.bf16.msra.mxu0 0
        %4592 = vmatprep.mubr.bf16.mxu0 0
        %4593 = vmatmul.mubr.bf16.gmra.mrb[0].mxu0 %v4558
        %v4594 = vpop.f32.mrb[0].mxu0
        %v4595 = vadd.f32 0.0, %v4594
        %v4596 = vpop.f32.mrb[0].mxu0
        %v4597 = vpop.f32.mrb[0].mxu0
        %v4598 = vadd.f32 0.0, %v4597
        %v4599 = vpop.f32.mrb[0].mxu0
        %4600 = vdwg.mxu0
        %v4602 = vsel %vm3708, %v4292, 0
        %4604 = vmatprep.subr.bf16.mxu0 0
        %4605 = vmatpush1.bf16.msra.mxu0 %v3690
        %4606 = vmatprep.subr.bf16.mxu0 0
        %4607 = vmatpush1.bf16.msra.mxu0 %v3706
        %4608 = vmatprep.subr.bf16.mxu0 0
        %4609 = vmatpush1.bf16.msra.mxu0 0
        %4610 = vmatprep.subr.bf16.mxu0 0
        %4611 = vmatpush1.bf16.msra.mxu0 0
        %4612 = vmatprep.subr.bf16.mxu0 0
        %4613 = vmatpush1.bf16.msra.mxu0 0
        %4614 = vmatprep.subr.bf16.mxu0 0
        %4615 = vmatpush1.bf16.msra.mxu0 0
        %4616 = vmatprep.subr.bf16.mxu0 0
        %4617 = vmatpush1.bf16.msra.mxu0 0
        %4618 = vmatprep.subr.bf16.mxu0 0
        %4619 = vmatpush1.bf16.msra.mxu0 0
        %4620 = vmatprep.subr.bf16.mxu0 0
        %4621 = vmatpush1.bf16.msra.mxu0 0
        %4622 = vmatprep.subr.bf16.mxu0 0
        %4623 = vmatpush1.bf16.msra.mxu0 0
        %4624 = vmatprep.subr.bf16.mxu0 0
        %4625 = vmatpush1.bf16.msra.mxu0 0
        %4626 = vmatprep.subr.bf16.mxu0 0
        %4627 = vmatpush1.bf16.msra.mxu0 0
        %4628 = vmatprep.subr.bf16.mxu0 0
        %4629 = vmatpush1.bf16.msra.mxu0 0
        %4630 = vmatprep.subr.bf16.mxu0 0
        %4631 = vmatpush1.bf16.msra.mxu0 0
        %4632 = vmatprep.subr.bf16.mxu0 0
        %4633 = vmatpush1.bf16.msra.mxu0 0
        %4634 = vmatprep.subr.bf16.mxu0 0
        %4635 = vmatpush1.bf16.msra.mxu0 0
        %4636 = vmatprep.mubr.bf16.mxu0 0
        %4637 = vmatmul.mubr.bf16.gmra.mrb[0].mxu0 %v4602
        %v4638 = vpop.f32.mrb[0].mxu0
        %v4639 = vadd.f32 0.0, %v4638
        %v4640 = vpop.f32.mrb[0].mxu0
        %v4641 = vpop.f32.mrb[0].mxu0
        %v4642 = vadd.f32 0.0, %v4641
        %v4643 = vpop.f32.mrb[0].mxu0
        %4644 = vdwg.mxu0
        %v4645 = vcombine.low %v4331, %v4419
        %v4646 = vcombine.high %v4331, %v4419
        %v4648 = vunpack.c.l.s4 1983009808
        %v4649 = vunpack.c.0.s8 %v4648
        %v4650 = vlaneseq
        %v4651 = vshrl.u32 %v4650, 7
        %v4652 = vsub.s32 %v4649, %v4651
        %v4653 = vrot.slane %v4645, %v4652
        %v4655 = vunpack.c.l.s4 1983009808
        %v4656 = vunpack.c.0.s8 %v4655
        %v4657 = vlaneseq
        %v4658 = vshrl.u32 %v4657, 7
        %v4659 = vsub.s32 %v4656, %v4658
        %v4660 = vrot.slane %v4646, %v4659
        %v4661 = vcombine.low %v4375, %v4463
        %v4662 = vcombine.high %v4375, %v4463
        %v4664 = vunpack.c.l.s4 1983009808
        %v4665 = vunpack.c.0.s8 %v4664
        %v4666 = vlaneseq
        %v4667 = vshrl.u32 %v4666, 7
        %v4668 = vsub.s32 %v4665, %v4667
        %v4669 = vrot.slane %v4661, %v4668
        %v4671 = vunpack.c.l.s4 1983009808
        %v4672 = vunpack.c.0.s8 %v4671
        %v4673 = vlaneseq
        %v4674 = vshrl.u32 %v4673, 7
        %v4675 = vsub.s32 %v4672, %v4674
        %v4676 = vrot.slane %v4662, %v4675
        %v4677 = vcombine.low %v4653, %v4669
        %v4678 = vcombine.high %v4653, %v4669
        %v4680 = vunpack.c.l.s4 1934713408
        %v4681 = vunpack.c.0.s8 %v4680
        %v4682 = vlaneseq
        %v4683 = vshrl.u32 %v4682, 7
        %v4684 = vsub.s32 %v4681, %v4683
        %v4685 = vrot.slane %v4677, %v4684
        %v4687 = vunpack.c.l.s4 1934713408
        %v4688 = vunpack.c.0.s8 %v4687
        %v4689 = vlaneseq
        %v4690 = vshrl.u32 %v4689, 7
        %v4691 = vsub.s32 %v4688, %v4690
        %v4692 = vrot.slane %v4678, %v4691
        %v4693 = vcombine.low %v4660, %v4676
        %v4694 = vcombine.high %v4660, %v4676
        %v4696 = vunpack.c.l.s4 1934713408
        %v4697 = vunpack.c.0.s8 %v4696
        %v4698 = vlaneseq
        %v4699 = vshrl.u32 %v4698, 7
        %v4700 = vsub.s32 %v4697, %v4699
        %v4701 = vrot.slane %v4693, %v4700
        %v4703 = vunpack.c.l.s4 1934713408
        %v4704 = vunpack.c.0.s8 %v4703
        %v4705 = vlaneseq
        %v4706 = vshrl.u32 %v4705, 7
        %v4707 = vsub.s32 %v4704, %v4706
        %v4708 = vrot.slane %v4694, %v4707
        %v4709 = vcombine.high %v4685, 0.0
        %v4710 = vcombine.high %v4692, 0.0
        %v4711 = vcombine.high %v4701, 0.0
        %v4712 = vcombine.high %v4708, 0.0
        %v4713 = vcombine.low %v4334, %v4422
        %v4714 = vcombine.high %v4334, %v4422
        %v4716 = vunpack.c.l.s4 1983009808
        %v4717 = vunpack.c.0.s8 %v4716
        %v4718 = vlaneseq
        %v4719 = vshrl.u32 %v4718, 7
        %v4720 = vsub.s32 %v4717, %v4719
        %v4721 = vrot.slane %v4713, %v4720
        %v4723 = vunpack.c.l.s4 1983009808
        %v4724 = vunpack.c.0.s8 %v4723
        %v4725 = vlaneseq
        %v4726 = vshrl.u32 %v4725, 7
        %v4727 = vsub.s32 %v4724, %v4726
        %v4728 = vrot.slane %v4714, %v4727
        %v4729 = vcombine.low %v4378, %v4466
        %v4730 = vcombine.high %v4378, %v4466
        %v4732 = vunpack.c.l.s4 1983009808
        %v4733 = vunpack.c.0.s8 %v4732
        %v4734 = vlaneseq
        %v4735 = vshrl.u32 %v4734, 7
        %v4736 = vsub.s32 %v4733, %v4735
        %v4737 = vrot.slane %v4729, %v4736
        %v4739 = vunpack.c.l.s4 1983009808
        %v4740 = vunpack.c.0.s8 %v4739
        %v4741 = vlaneseq
        %v4742 = vshrl.u32 %v4741, 7
        %v4743 = vsub.s32 %v4740, %v4742
        %v4744 = vrot.slane %v4730, %v4743
        %v4745 = vcombine.low %v4721, %v4737
        %v4746 = vcombine.high %v4721, %v4737
        %v4748 = vunpack.c.l.s4 1934713408
        %v4749 = vunpack.c.0.s8 %v4748
        %v4750 = vlaneseq
        %v4751 = vshrl.u32 %v4750, 7
        %v4752 = vsub.s32 %v4749, %v4751
        %v4753 = vrot.slane %v4745, %v4752
        %v4755 = vunpack.c.l.s4 1934713408
        %v4756 = vunpack.c.0.s8 %v4755
        %v4757 = vlaneseq
        %v4758 = vshrl.u32 %v4757, 7
        %v4759 = vsub.s32 %v4756, %v4758
        %v4760 = vrot.slane %v4746, %v4759
        %v4761 = vcombine.low %v4728, %v4744
        %v4762 = vcombine.high %v4728, %v4744
        %v4764 = vunpack.c.l.s4 1934713408
        %v4765 = vunpack.c.0.s8 %v4764
        %v4766 = vlaneseq
        %v4767 = vshrl.u32 %v4766, 7
        %v4768 = vsub.s32 %v4765, %v4767
        %v4769 = vrot.slane %v4761, %v4768
        %v4771 = vunpack.c.l.s4 1934713408
        %v4772 = vunpack.c.0.s8 %v4771
        %v4773 = vlaneseq
        %v4774 = vshrl.u32 %v4773, 7
        %v4775 = vsub.s32 %v4772, %v4774
        %v4776 = vrot.slane %v4762, %v4775
        %v4777 = vcombine.high %v4753, 0.0
        %v4778 = vcombine.high %v4760, 0.0
        %v4779 = vcombine.high %v4769, 0.0
        %v4780 = vcombine.high %v4776, 0.0
        %v4781 = vcombine.low %v4507, %v4595
        %v4782 = vcombine.high %v4507, %v4595
        %v4784 = vunpack.c.l.s4 1983009808
        %v4785 = vunpack.c.0.s8 %v4784
        %v4786 = vlaneseq
        %v4787 = vshrl.u32 %v4786, 7
        %v4788 = vsub.s32 %v4785, %v4787
        %v4789 = vrot.slane %v4781, %v4788
        %v4791 = vunpack.c.l.s4 1983009808
        %v4792 = vunpack.c.0.s8 %v4791
        %v4793 = vlaneseq
        %v4794 = vshrl.u32 %v4793, 7
        %v4795 = vsub.s32 %v4792, %v4794
        %v4796 = vrot.slane %v4782, %v4795
        %v4797 = vcombine.low %v4551, %v4639
        %v4798 = vcombine.high %v4551, %v4639
        %v4800 = vunpack.c.l.s4 1983009808
        %v4801 = vunpack.c.0.s8 %v4800
        %v4802 = vlaneseq
        %v4803 = vshrl.u32 %v4802, 7
        %v4804 = vsub.s32 %v4801, %v4803
        %v4805 = vrot.slane %v4797, %v4804
        %v4807 = vunpack.c.l.s4 1983009808
        %v4808 = vunpack.c.0.s8 %v4807
        %v4809 = vlaneseq
        %v4810 = vshrl.u32 %v4809, 7
        %v4811 = vsub.s32 %v4808, %v4810
        %v4812 = vrot.slane %v4798, %v4811
        %v4813 = vcombine.low %v4789, %v4805
        %v4814 = vcombine.high %v4789, %v4805
        %v4816 = vunpack.c.l.s4 1934713408
        %v4817 = vunpack.c.0.s8 %v4816
        %v4818 = vlaneseq
        %v4819 = vshrl.u32 %v4818, 7
        %v4820 = vsub.s32 %v4817, %v4819
        %v4821 = vrot.slane %v4813, %v4820
        %v4823 = vunpack.c.l.s4 1934713408
        %v4824 = vunpack.c.0.s8 %v4823
        %v4825 = vlaneseq
        %v4826 = vshrl.u32 %v4825, 7
        %v4827 = vsub.s32 %v4824, %v4826
        %v4828 = vrot.slane %v4814, %v4827
        %v4829 = vcombine.low %v4796, %v4812
        %v4830 = vcombine.high %v4796, %v4812
        %v4832 = vunpack.c.l.s4 1934713408
        %v4833 = vunpack.c.0.s8 %v4832
        %v4834 = vlaneseq
        %v4835 = vshrl.u32 %v4834, 7
        %v4836 = vsub.s32 %v4833, %v4835
        %v4837 = vrot.slane %v4829, %v4836
        %v4839 = vunpack.c.l.s4 1934713408
        %v4840 = vunpack.c.0.s8 %v4839
        %v4841 = vlaneseq
        %v4842 = vshrl.u32 %v4841, 7
        %v4843 = vsub.s32 %v4840, %v4842
        %v4844 = vrot.slane %v4830, %v4843
        %v4845 = vcombine.high %v4821, 0.0
        %v4846 = vcombine.high %v4828, 0.0
        %v4847 = vcombine.high %v4837, 0.0
        %v4848 = vcombine.high %v4844, 0.0
        %v4849 = vcombine.low %v4510, %v4598
        %v4850 = vcombine.high %v4510, %v4598
        %v4852 = vunpack.c.l.s4 1983009808
        %v4853 = vunpack.c.0.s8 %v4852
        %v4854 = vlaneseq
        %v4855 = vshrl.u32 %v4854, 7
        %v4856 = vsub.s32 %v4853, %v4855
        %v4857 = vrot.slane %v4849, %v4856
        %v4859 = vunpack.c.l.s4 1983009808
        %v4860 = vunpack.c.0.s8 %v4859
        %v4861 = vlaneseq
        %v4862 = vshrl.u32 %v4861, 7
        %v4863 = vsub.s32 %v4860, %v4862
        %v4864 = vrot.slane %v4850, %v4863
        %v4865 = vcombine.low %v4554, %v4642
        %v4866 = vcombine.high %v4554, %v4642
        %v4868 = vunpack.c.l.s4 1983009808
        %v4869 = vunpack.c.0.s8 %v4868
        %v4870 = vlaneseq
        %v4871 = vshrl.u32 %v4870, 7
        %v4872 = vsub.s32 %v4869, %v4871
        %v4873 = vrot.slane %v4865, %v4872
        %v4875 = vunpack.c.l.s4 1983009808
        %v4876 = vunpack.c.0.s8 %v4875
        %v4877 = vlaneseq
        %v4878 = vshrl.u32 %v4877, 7
        %v4879 = vsub.s32 %v4876, %v4878
        %v4880 = vrot.slane %v4866, %v4879
        %v4881 = vcombine.low %v4857, %v4873
        %v4882 = vcombine.high %v4857, %v4873
        %v4884 = vunpack.c.l.s4 1934713408
        %v4885 = vunpack.c.0.s8 %v4884
        %v4886 = vlaneseq
        %v4887 = vshrl.u32 %v4886, 7
        %v4888 = vsub.s32 %v4885, %v4887
        %v4889 = vrot.slane %v4881, %v4888
        %v4891 = vunpack.c.l.s4 1934713408
        %v4892 = vunpack.c.0.s8 %v4891
        %v4893 = vlaneseq
        %v4894 = vshrl.u32 %v4893, 7
        %v4895 = vsub.s32 %v4892, %v4894
        %v4896 = vrot.slane %v4882, %v4895
        %v4897 = vcombine.low %v4864, %v4880
        %v4898 = vcombine.high %v4864, %v4880
        %v4900 = vunpack.c.l.s4 1934713408
        %v4901 = vunpack.c.0.s8 %v4900
        %v4902 = vlaneseq
        %v4903 = vshrl.u32 %v4902, 7
        %v4904 = vsub.s32 %v4901, %v4903
        %v4905 = vrot.slane %v4897, %v4904
        %v4907 = vunpack.c.l.s4 1934713408
        %v4908 = vunpack.c.0.s8 %v4907
        %v4909 = vlaneseq
        %v4910 = vshrl.u32 %v4909, 7
        %v4911 = vsub.s32 %v4908, %v4910
        %v4912 = vrot.slane %v4898, %v4911
        %v4913 = vcombine.high %v4889, 0.0
        %v4914 = vcombine.high %v4896, 0.0
        %v4915 = vcombine.high %v4905, 0.0
        %v4916 = vcombine.high %v4912, 0.0
        %v4917 = vpack.c.bf16 %v4685, %v4685
        %v4918 = vpack.c.bf16 %v4709, %v4709
        %v4919 = vpack.c.bf16 %v4692, %v4692
        %v4920 = vpack.c.bf16 %v4710, %v4710
        %v4921 = vpack.c.bf16 %v4701, %v4701
        %v4922 = vpack.c.bf16 %v4711, %v4711
        %v4923 = vpack.c.bf16 %v4708, %v4708
        %v4924 = vpack.c.bf16 %v4712, %v4712
        %v4925 = vpack.c.bf16 %v4753, %v4753
        %v4926 = vpack.c.bf16 %v4777, %v4777
        %v4927 = vpack.c.bf16 %v4760, %v4760
        %v4928 = vpack.c.bf16 %v4778, %v4778
        %v4929 = vpack.c.bf16 %v4769, %v4769
        %v4930 = vpack.c.bf16 %v4779, %v4779
        %v4931 = vpack.c.bf16 %v4776, %v4776
        %v4932 = vpack.c.bf16 %v4780, %v4780
        %v4933 = vpack.c.bf16 %v4821, %v4821
        %v4934 = vpack.c.bf16 %v4845, %v4845
        %v4935 = vpack.c.bf16 %v4828, %v4828
        %v4936 = vpack.c.bf16 %v4846, %v4846
        %v4937 = vpack.c.bf16 %v4837, %v4837
        %v4938 = vpack.c.bf16 %v4847, %v4847
        %v4939 = vpack.c.bf16 %v4844, %v4844
        %v4940 = vpack.c.bf16 %v4848, %v4848
        %v4941 = vpack.c.bf16 %v4889, %v4889
        %v4942 = vpack.c.bf16 %v4913, %v4913
        %v4943 = vpack.c.bf16 %v4896, %v4896
        %v4944 = vpack.c.bf16 %v4914, %v4914
        %v4945 = vpack.c.bf16 %v4905, %v4905
        %v4946 = vpack.c.bf16 %v4915, %v4915
        %v4947 = vpack.c.bf16 %v4912, %v4912
        %v4948 = vpack.c.bf16 %v4916, %v4916
        %v4949 = vcombine.low %v4917, %v4921
        %v4951 = vunpack.c.l.s4 1983009808
        %v4952 = vunpack.c.0.s8 %v4951
        %v4953 = vlaneseq
        %v4954 = vshrl.u32 %v4953, 7
        %v4955 = vsub.s32 %v4952, %v4954
        %v4956 = vrot.slane %v4949, %v4955
        %v4957 = vcombine.low %v4919, %v4923
        %v4959 = vunpack.c.l.s4 1983009808
        %v4960 = vunpack.c.0.s8 %v4959
        %v4961 = vlaneseq
        %v4962 = vshrl.u32 %v4961, 7
        %v4963 = vsub.s32 %v4960, %v4962
        %v4964 = vrot.slane %v4957, %v4963
        %v4965 = vcombine.low %v4925, %v4929
        %v4967 = vunpack.c.l.s4 1983009808
        %v4968 = vunpack.c.0.s8 %v4967
        %v4969 = vlaneseq
        %v4970 = vshrl.u32 %v4969, 7
        %v4971 = vsub.s32 %v4968, %v4970
        %v4972 = vrot.slane %v4965, %v4971
        %v4973 = vcombine.low %v4927, %v4931
        %v4975 = vunpack.c.l.s4 1983009808
        %v4976 = vunpack.c.0.s8 %v4975
        %v4977 = vlaneseq
        %v4978 = vshrl.u32 %v4977, 7
        %v4979 = vsub.s32 %v4976, %v4978
        %v4980 = vrot.slane %v4973, %v4979
        %v4981 = vcombine.low %v4956, %v4964
        %v4983 = vunpack.c.l.s4 1934713408
        %v4984 = vunpack.c.0.s8 %v4983
        %v4985 = vlaneseq
        %v4986 = vshrl.u32 %v4985, 7
        %v4987 = vsub.s32 %v4984, %v4986
        %v4988 = vrot.slane %v4981, %v4987
        %v4989 = vcombine.low %v4972, %v4980
        %v4991 = vunpack.c.l.s4 1934713408
        %v4992 = vunpack.c.0.s8 %v4991
        %v4993 = vlaneseq
        %v4994 = vshrl.u32 %v4993, 7
        %v4995 = vsub.s32 %v4992, %v4994
        %v4996 = vrot.slane %v4989, %v4995
        %v4997 = vcombine.low %v4988, %v4996
        %v4998 = vcombine.high %v4988, %v4996
        %v4999 = vcombine.low %v4918, %v4922
        %v5001 = vunpack.c.l.s4 1983009808
        %v5002 = vunpack.c.0.s8 %v5001
        %v5003 = vlaneseq
        %v5004 = vshrl.u32 %v5003, 7
        %v5005 = vsub.s32 %v5002, %v5004
        %v5006 = vrot.slane %v4999, %v5005
        %v5007 = vcombine.low %v4920, %v4924
        %v5009 = vunpack.c.l.s4 1983009808
        %v5010 = vunpack.c.0.s8 %v5009
        %v5011 = vlaneseq
        %v5012 = vshrl.u32 %v5011, 7
        %v5013 = vsub.s32 %v5010, %v5012
        %v5014 = vrot.slane %v5007, %v5013
        %v5015 = vcombine.low %v4926, %v4930
        %v5017 = vunpack.c.l.s4 1983009808
        %v5018 = vunpack.c.0.s8 %v5017
        %v5019 = vlaneseq
        %v5020 = vshrl.u32 %v5019, 7
        %v5021 = vsub.s32 %v5018, %v5020
        %v5022 = vrot.slane %v5015, %v5021
        %v5023 = vcombine.low %v4928, %v4932
        %v5025 = vunpack.c.l.s4 1983009808
        %v5026 = vunpack.c.0.s8 %v5025
        %v5027 = vlaneseq
        %v5028 = vshrl.u32 %v5027, 7
        %v5029 = vsub.s32 %v5026, %v5028
        %v5030 = vrot.slane %v5023, %v5029
        %v5031 = vcombine.low %v5006, %v5014
        %v5033 = vunpack.c.l.s4 1934713408
        %v5034 = vunpack.c.0.s8 %v5033
        %v5035 = vlaneseq
        %v5036 = vshrl.u32 %v5035, 7
        %v5037 = vsub.s32 %v5034, %v5036
        %v5038 = vrot.slane %v5031, %v5037
        %v5039 = vcombine.low %v5022, %v5030
        %v5041 = vunpack.c.l.s4 1934713408
        %v5042 = vunpack.c.0.s8 %v5041
        %v5043 = vlaneseq
        %v5044 = vshrl.u32 %v5043, 7
        %v5045 = vsub.s32 %v5042, %v5044
        %v5046 = vrot.slane %v5039, %v5045
        %v5047 = vcombine.low %v5038, %v5046
        %v5048 = vcombine.high %v5038, %v5046
        %v5049 = vcombine.low %v4933, %v4937
        %v5051 = vunpack.c.l.s4 1983009808
        %v5052 = vunpack.c.0.s8 %v5051
        %v5053 = vlaneseq
        %v5054 = vshrl.u32 %v5053, 7
        %v5055 = vsub.s32 %v5052, %v5054
        %v5056 = vrot.slane %v5049, %v5055
        %v5057 = vcombine.low %v4935, %v4939
        %v5059 = vunpack.c.l.s4 1983009808
        %v5060 = vunpack.c.0.s8 %v5059
        %v5061 = vlaneseq
        %v5062 = vshrl.u32 %v5061, 7
        %v5063 = vsub.s32 %v5060, %v5062
        %v5064 = vrot.slane %v5057, %v5063
        %v5065 = vcombine.low %v4941, %v4945
        %v5067 = vunpack.c.l.s4 1983009808
        %v5068 = vunpack.c.0.s8 %v5067
        %v5069 = vlaneseq
        %v5070 = vshrl.u32 %v5069, 7
        %v5071 = vsub.s32 %v5068, %v5070
        %v5072 = vrot.slane %v5065, %v5071
        %v5073 = vcombine.low %v4943, %v4947
        %v5075 = vunpack.c.l.s4 1983009808
        %v5076 = vunpack.c.0.s8 %v5075
        %v5077 = vlaneseq
        %v5078 = vshrl.u32 %v5077, 7
        %v5079 = vsub.s32 %v5076, %v5078
        %v5080 = vrot.slane %v5073, %v5079
        %v5081 = vcombine.low %v5056, %v5064
        %v5083 = vunpack.c.l.s4 1934713408
        %v5084 = vunpack.c.0.s8 %v5083
        %v5085 = vlaneseq
        %v5086 = vshrl.u32 %v5085, 7
        %v5087 = vsub.s32 %v5084, %v5086
        %v5088 = vrot.slane %v5081, %v5087
        %v5089 = vcombine.low %v5072, %v5080
        %v5091 = vunpack.c.l.s4 1934713408
        %v5092 = vunpack.c.0.s8 %v5091
        %v5093 = vlaneseq
        %v5094 = vshrl.u32 %v5093, 7
        %v5095 = vsub.s32 %v5092, %v5094
        %v5096 = vrot.slane %v5089, %v5095
        %v5097 = vcombine.low %v5088, %v5096
        %v5098 = vcombine.high %v5088, %v5096
        %v5099 = vcombine.low %v4934, %v4938
        %v5101 = vunpack.c.l.s4 1983009808
        %v5102 = vunpack.c.0.s8 %v5101
        %v5103 = vlaneseq
        %v5104 = vshrl.u32 %v5103, 7
        %v5105 = vsub.s32 %v5102, %v5104
        %v5106 = vrot.slane %v5099, %v5105
        %v5107 = vcombine.low %v4936, %v4940
        %v5109 = vunpack.c.l.s4 1983009808
        %v5110 = vunpack.c.0.s8 %v5109
        %v5111 = vlaneseq
        %v5112 = vshrl.u32 %v5111, 7
        %v5113 = vsub.s32 %v5110, %v5112
        %v5114 = vrot.slane %v5107, %v5113
        %v5115 = vcombine.low %v4942, %v4946
        %v5117 = vunpack.c.l.s4 1983009808
        %v5118 = vunpack.c.0.s8 %v5117
        %v5119 = vlaneseq
        %v5120 = vshrl.u32 %v5119, 7
        %v5121 = vsub.s32 %v5118, %v5120
        %v5122 = vrot.slane %v5115, %v5121
        %v5123 = vcombine.low %v4944, %v4948
        %v5125 = vunpack.c.l.s4 1983009808
        %v5126 = vunpack.c.0.s8 %v5125
        %v5127 = vlaneseq
        %v5128 = vshrl.u32 %v5127, 7
        %v5129 = vsub.s32 %v5126, %v5128
        %v5130 = vrot.slane %v5123, %v5129
        %v5131 = vcombine.low %v5106, %v5114
        %v5133 = vunpack.c.l.s4 1934713408
        %v5134 = vunpack.c.0.s8 %v5133
        %v5135 = vlaneseq
        %v5136 = vshrl.u32 %v5135, 7
        %v5137 = vsub.s32 %v5134, %v5136
        %v5138 = vrot.slane %v5131, %v5137
        %v5139 = vcombine.low %v5122, %v5130
        %v5141 = vunpack.c.l.s4 1934713408
        %v5142 = vunpack.c.0.s8 %v5141
        %v5143 = vlaneseq
        %v5144 = vshrl.u32 %v5143, 7
        %v5145 = vsub.s32 %v5142, %v5144
        %v5146 = vrot.slane %v5139, %v5145
        %v5147 = vcombine.low %v5138, %v5146
        %v5148 = vcombine.high %v5138, %v5146
        %v5151 = vpack.i.b16 %v5047, %v4997
        %v5152 = vshrl.u32 %v4997, 16
        %v5153 = vshrl.u32 %v5047, 16
        %v5154 = vpack.i.b16 %v5153, %v5152
        %v5157 = vpack.i.b16 %v5048, %v4998
        %v5158 = vshrl.u32 %v4998, 16
        %v5159 = vshrl.u32 %v5048, 16
        %v5160 = vpack.i.b16 %v5159, %v5158
        %v5163 = vpack.i.b16 %v5147, %v5097
        %v5164 = vshrl.u32 %v5097, 16
        %v5165 = vshrl.u32 %v5147, 16
        %v5166 = vpack.i.b16 %v5165, %v5164
        %v5169 = vpack.i.b16 %v5148, %v5098
        %v5170 = vshrl.u32 %v5098, 16
        %v5171 = vshrl.u32 %v5148, 16
        %v5172 = vpack.i.b16 %v5171, %v5170
        %5173 = vrot.lane.b32.xlu0 %v5154, 32
        %v5174 = vpop.permute.xlu0 %5173
        %5175 = vrot.lane.b32.xlu0 %v5166, 32
        %v5176 = vpop.permute.xlu0 %5175
        %5177 = vrot.lane.b32.xlu0 %v5157, 64
        %v5178 = vpop.permute.xlu0 %5177
        %5179 = vrot.lane.b32.xlu0 %v5169, 64
        %v5180 = vpop.permute.xlu0 %5179
        %5181 = vrot.lane.b32.xlu0 %v5160, 96
        %v5182 = vpop.permute.xlu0 %5181
        %5183 = vrot.lane.b32.xlu0 %v5172, 96
        %v5184 = vpop.permute.xlu0 %5183
        %v5187 = vsel %vm3708, %v5151, %v5174
        %v5190 = vsel %vm3708, %v5163, %v5176
        %vm5191 = vcmask 523264
        %v5193 = vsel %vm5191, %v5187, %v5178
        %v5195 = vsel %vm5191, %v5190, %v5180
        %vm5196 = vcmask 785408
        %v5198 = vsel %vm5196, %v5193, %v5182
        %v5201 = vsel %vm5196, %v5195, %v5184
        %v5203 = vld [vmem:[#allocation11] sm:$0xf]
        %v5204 = vld [vmem:[#allocation11 + $0x4] sm:$0xf]
        %v5205 = vld [vmem:[#allocation11 + $0x8] sm:$0xf]
        %v5206 = vld [vmem:[#allocation11 + $0xc] sm:$0xf]
        %v5207 = vld [vmem:[#allocation11 + $0x10] sm:$0xf]
        %v5208 = vld [vmem:[#allocation11 + $0x14] sm:$0xf]
        %v5209 = vld [vmem:[#allocation11 + $0x18] sm:$0xf]
        %v5210 = vld [vmem:[#allocation11 + $0x1c] sm:$0xf]
        %v5211 = vld [vmem:[#allocation11 + $0x20] sm:$0xf]
        %v5212 = vld [vmem:[#allocation11 + $0x24] sm:$0xf]
        %v5213 = vld [vmem:[#allocation11 + $0x28] sm:$0xf]
        %v5214 = vld [vmem:[#allocation11 + $0x2c] sm:$0xf]
        %v5215 = vld [vmem:[#allocation11 + $0x30] sm:$0xf]
        %v5216 = vld [vmem:[#allocation11 + $0x34] sm:$0xf]
        %v5217 = vld [vmem:[#allocation11 + $0x38] sm:$0xf]
        %v5218 = vld [vmem:[#allocation11 + $0x3c] sm:$0xf]
        %v5235 = vunpack.c.l.b16 %v5203
        %v5236 = vunpack.c.l.b16 %v5204
        %v5237 = vunpack.c.l.b16 %v5205
        %v5238 = vunpack.c.l.b16 %v5206
        %v5239 = vunpack.c.l.b16 %v5207
        %v5240 = vunpack.c.l.b16 %v5208
        %v5241 = vunpack.c.l.b16 %v5209
        %v5242 = vunpack.c.l.b16 %v5210
        %v5243 = vunpack.c.l.b16 %v5211
        %v5244 = vunpack.c.l.b16 %v5212
        %v5245 = vunpack.c.l.b16 %v5213
        %v5246 = vunpack.c.l.b16 %v5214
        %v5247 = vunpack.c.l.b16 %v5215
        %v5248 = vunpack.c.l.b16 %v5216
        %v5249 = vunpack.c.l.b16 %v5217
        %v5250 = vunpack.c.l.b16 %v5218
        %v5251 = vpack.c.b16 %v5236, %v5235
        %v5252 = vpack.c.b16 %v5238, %v5237
        %v5253 = vpack.c.b16 %v5240, %v5239
        %v5254 = vpack.c.b16 %v5242, %v5241
        %v5255 = vpack.c.b16 %v5244, %v5243
        %v5256 = vpack.c.b16 %v5246, %v5245
        %v5257 = vpack.c.b16 %v5248, %v5247
        %v5258 = vpack.c.b16 %v5250, %v5249
        %5267 = vmatprep.subr.bf16.mxu0 0
        %5268 = vmatpush1.bf16.msra.mxu0 %v5251
        %5269 = vmatprep.subr.bf16.mxu0 0
        %5270 = vmatpush1.bf16.msra.mxu0 %v5252
        %5271 = vmatprep.subr.bf16.mxu0 0
        %5272 = vmatpush1.bf16.msra.mxu0 %v5253
        %5273 = vmatprep.subr.bf16.mxu0 0
        %5274 = vmatpush1.bf16.msra.mxu0 %v5254
        %5275 = vmatprep.subr.bf16.mxu0 0
        %5276 = vmatpush1.bf16.msra.mxu0 %v5255
        %5277 = vmatprep.subr.bf16.mxu0 0
        %5278 = vmatpush1.bf16.msra.mxu0 %v5256
        %5279 = vmatprep.subr.bf16.mxu0 0
        %5280 = vmatpush1.bf16.msra.mxu0 %v5257
        %5281 = vmatprep.subr.bf16.mxu0 0
        %5282 = vmatpush1.bf16.msra.mxu0 %v5258
        %5283 = vmatprep.subr.bf16.mxu0 0
        %5284 = vmatpush1.bf16.msra.mxu0 0
        %5285 = vmatprep.subr.bf16.mxu0 0
        %5286 = vmatpush1.bf16.msra.mxu0 0
        %5287 = vmatprep.subr.bf16.mxu0 0
        %5288 = vmatpush1.bf16.msra.mxu0 0
        %5289 = vmatprep.subr.bf16.mxu0 0
        %5290 = vmatpush1.bf16.msra.mxu0 0
        %5291 = vmatprep.subr.bf16.mxu0 0
        %5292 = vmatpush1.bf16.msra.mxu0 0
        %5293 = vmatprep.subr.bf16.mxu0 0
        %5294 = vmatpush1.bf16.msra.mxu0 0
        %5295 = vmatprep.subr.bf16.mxu0 0
        %5296 = vmatpush1.bf16.msra.mxu0 0
        %5297 = vmatprep.subr.bf16.mxu0 0
        %5298 = vmatpush1.bf16.msra.mxu0 0
        %5299 = vmatprep.mubr.bf16.mxu0 0
        %5300 = vmatmul.mubr.bf16.gmra.mrb[0].mxu0 %v5198
        %v5301 = vpop.f32.mrb[0].mxu0
        %v5302 = vadd.f32 0.0, %v5301
        %v5303 = vpop.f32.mrb[0].mxu0
        %v5304 = vpop.f32.mrb[0].mxu0
        %v5305 = vadd.f32 0.0, %v5304
        %v5306 = vpop.f32.mrb[0].mxu0
        %5307 = vmatprep.mubr.bf16.mxu0 0
        %5308 = vmatmul.mubr.bf16.gmra.mrb[0].mxu0 %v5201
        %v5309 = vpop.f32.mrb[0].mxu0
        %v5310 = vadd.f32 0.0, %v5309
        %v5311 = vpop.f32.mrb[0].mxu0
        %v5312 = vpop.f32.mrb[0].mxu0
        %v5313 = vadd.f32 0.0, %v5312
        %v5314 = vpop.f32.mrb[0].mxu0
        %5315 = vdwg.mxu0
        %v5316 = vpack.c.bf16 %v5305, %v5302
        %v5317 = vpack.c.bf16 %v5313, %v5310
        %v5320 = vunpack.c.l.b16 %v5316
        %v5321 = vunpack.c.h.b16 %v5316
        %v5322 = vunpack.c.l.b16 %v5317
        %v5323 = vunpack.c.h.b16 %v5317
        %v5324 = vpack.c.b16 %v5320, %v5320
        %v5325 = vpack.c.b16 %v5321, %v5321
        %v5326 = vpack.c.b16 %v5322, %v5322
        %v5327 = vpack.c.b16 %v5323, %v5323
        %5332 = vst [vmem:[%s477] sm:$0xf] %v5324
        %5333 = vst [vmem:[%s477 + $0x4] sm:$0xf] %v5325
        %5334 = vst [vmem:[%s477 + $0x8] sm:$0xf] %v5326
        %5335 = vst [vmem:[%s477 + $0xc] sm:$0xf] %v5327
        %s5336 = sand.u32 %s260, 1
        %s5337 = scalar_lea.sflag [#allocation4], %s5336
        %s5338 = sand.u32 %s260, 1
        %s5339 = smul.addr %s5338, 16
        %s5340 = scalar_lea.vmem [#allocation13], %s5339
        // Predicated region
        $region85: #{tpu_custom_call.1} parent=59 // pred_check
          %p5341 = pneg %p270
        $region86: #{tpu_custom_call.1} parent=59 // pred_check_branch
          %5343 = sbr.rel (%p5341) target = $region88
        $region87: #{tpu_custom_call.1} parent=59 // pred_region
          %s5344 = smul.u32 2, %s32
          %s5346 = ssub.s32 256, 256
          %5347 = vsyncadd %s5337, %s5346
          %s5348 = smul.addr %s5344, 2
          %s5349 = smul.addr %s5348, 64
          %s5350 = scalar_lea.hbm %s10, %s5349
          %s5351 = sshll.u32 %s5340, 4
          %s5352 = int_to_ptr.vmem [resolvable:$true] %s5351
          %5357 = dma.vmem_to_hbm [thread:$0]  %s5352, 256, %s5350, %s5337, 64, 64, 4
        $region88: #{tpu_custom_call.1} parent=59 // pred_fallthru
          _
      $region60: #{tpu_custom_call.1} parent=5 // pred_fallthru
        _
      %p5358 = scmp.le.s32.totalorder 2, %s27
      // Predicated region
      $region89: #{tpu_custom_call.1} parent=5 // pred_check
        %p5359 = pneg %p5358
      $region90: #{tpu_custom_call.1} parent=5 // pred_check_branch
        %5361 = sbr.rel (%p5359) target = $region92
      $region91: #{tpu_custom_call.1} parent=5 // pred_region
        %s5362 = ssub.s32 %s27, 2
        // Predicated region
        $region93: #{tpu_custom_call.1} parent=91 // pred_check
          %p5363 = pneg %p276
        $region94: #{tpu_custom_call.1} parent=91 // pred_check_branch
          %5365 = sbr.rel (%p5363) target = $region96
        $region95: #{tpu_custom_call.1} parent=91 // pred_region
          %s5366 = sand.u32 %s261, 1
          %s5367 = scalar_lea.sflag [#allocation4], %s5366
          %s5368 = sand.u32 %s261, 1
          %s5369 = smul.addr %s5368, 16
          %s5370 = scalar_lea.vmem [#allocation13], %s5369
          %5371 = dma.done %s5367, 256
        $region96: #{tpu_custom_call.1} parent=91 // pred_fallthru
          _
      $region92: #{tpu_custom_call.1} parent=5 // pred_fallthru
        _
    $region6: #{tpu_custom_call.1} parent=1 // loop_footer
      %s31 = sadd.s32 1, %s27
    $region7: #{tpu_custom_call.1} parent=1 // loop_footer_branch
      %26 = sbr.rel target = $region3
    $region8: #{tpu_custom_call.1} parent=1 // loop_exit
      _
    %5372 = vsyncpa [#allocation3], 1
    %s5373 = scalar_lea.sflag [#allocation3], 1
    %5374 = vsyncpa %s5373, 1
    %5375 = vsyncpa [#allocation6], 1
    %s5376 = scalar_lea.sflag [#allocation6], 1
    %5377 = vsyncpa %s5376, 1
    %5378 = vsyncpa [#allocation9], 1
    %5379 = vsyncpa [#allocation12], 1
    %5380 = vsyncpa [#allocation4], 1
    %s5381 = scalar_lea.sflag [#allocation4], 1
    %5382 = vsyncpa %s5381, 1

</llo_original>
